<compile_context>
chip_gen: v7x
topology: tpu7x:2x2x1
jax: 0.10.0
libtpu: 0.0.40
codegen_flags: <defaults>
</compile_context>

<pallas_src>
import functools

import jax
import jax.numpy as jnp
from jax import lax
from jax.experimental import pallas as pl
from jax.experimental.pallas import tpu as pltpu

EPS = 1e-5
LANE = 128


def _round_up(x, m):
    return (x + m - 1) // m * m


# ----------------------------------------------------------------------------
# Fused kernel: (conv3x3 + bias + ReLU) x 2 on one halo'd row tile.
#
# Flattened geometry: padded image rows of width Wp = W + 4 are concatenated,
# so the (kh, kw) conv tap is a *contiguous* row slice at offset kh*Wp + kw.
# Row counts are trimmed (M1, M2) so every tap slice stays in bounds; the
# out-of-image halo ring of stage 1 is zeroed with a precomputed mask (this is
# exactly the zero padding the second conv needs).
# ----------------------------------------------------------------------------
def _double_conv_kernel(W, TR, x_hbm, w1_ref, b1_ref, w2_ref, b2_ref,
                        mask_ref, o_ref, xbuf, sem):
    Wp = W + 4
    M0 = (TR + 4) * Wp        # DMA'd input rows (2-row/col halo on each side)
    M1 = (TR + 2) * Wp - 2    # stage-1 rows (1-row/col halo ring for conv #2)
    M2 = TR * Wp - 4          # stage-2 rows (tile interior)

    n = pl.program_id(0)
    t = pl.program_id(1)
    num_t = pl.num_programs(1)
    slot = t % 2

    def issue(tt, s):
        pltpu.make_async_copy(
            x_hbm.at[n, pl.ds(tt * (TR * Wp), M0)],
            xbuf.at[s], sem.at[s]).start()

    @pl.when(t == 0)
    def _():                     # prime the pipeline for this image
        issue(t, slot)

    pltpu.make_async_copy(       # wait for the current halo'd input tile
        x_hbm.at[n, pl.ds(t * (TR * Wp), M0)],
        xbuf.at[slot], sem.at[slot]).wait()

    @pl.when(t + 1 < num_t)      # prefetch the next row tile (other buffer)
    def _():
        issue(t + 1, 1 - slot)

    xt = xbuf[slot]              # (M0, Cp) bf16

    # ---- stage 1: conv3x3 (BN scale folded into weights) + bias + ReLU ----
    Cm = w1_ref.shape[-1]
    acc1 = jnp.zeros((M1, Cm), jnp.float32)
    for kh in range(3):
        for kw in range(3):
            off = kh * Wp + kw
            acc1 = acc1 + jnp.dot(xt[off:off + M1], w1_ref[kh * 3 + kw],
                                  preferred_element_type=jnp.float32)
    h1 = jnp.maximum(acc1 + b1_ref[...], 0.0)
    # zero the halo ring outside the image == zero padding of h1 for conv #2
    h1 = (h1 * mask_ref[0]).astype(jnp.bfloat16)

    # ---- stage 2: conv3x3 (BN scale folded into weights) + bias + ReLU ----
    Co = w2_ref.shape[-1]
    acc2 = jnp.zeros((M2, Co), jnp.float32)
    for kh in range(3):
        for kw in range(3):
            off = kh * Wp + kw
            acc2 = acc2 + jnp.dot(h1[off:off + M2], w2_ref[kh * 3 + kw],
                                  preferred_element_type=jnp.float32)
    y = jnp.maximum(acc2 + b2_ref[...], 0.0).astype(o_ref.dtype)

    # drop the width padding: store the W valid, lane-dense columns per row
    for a in range(TR):
        o_ref[0, a] = y[a * Wp:a * Wp + W]


# ----------------------------------------------------------------------------
# Parameter folding / tiling helpers
# ----------------------------------------------------------------------------
def _fold_conv_bn(w, b, gamma, beta, mean, var):
    """Fold eval-mode BatchNorm into the conv: bf16 weights + f32 bias."""
    scale = gamma / jnp.sqrt(var + EPS)                # (Cout,)
    w_folded = (w * scale).astype(jnp.bfloat16)        # (3, 3, Cin, Cout)
    bias = (b - mean) * scale + beta                   # (Cout,)
    return w_folded, bias.astype(jnp.float32)


def _choose_tile_rows(H, W, Cp, Cm, Co, budget_bytes=20 * 1024 * 1024,
                      max_rows=128):
    """Largest divisor of H whose working set fits a conservative VMEM budget
    (sized so the same tile also fits v7x's 64 MiB VMEM per TensorCore)."""
    Wp = W + 4
    best = 1
    for tr in range(1, min(H, max_rows) + 1):
        if H % tr:
            continue
        m0, m1, m2 = (tr + 4) * Wp, (tr + 2) * Wp, tr * Wp
        est = (2 * m0 * Cp * 2                       # double-buffered bf16 tile
               + 4 * 9 * (Cp * Cm + Cm * Co)         # weights (bf16, 2 buffers)
               + 2 * tr * W * Co * 4                 # double-buffered out block
               + m1 * (6 * Cm + 2 * Cp)              # h1 acc (f32+bf16) + temps
               + m2 * Co * 4)                        # stage-2 accumulator
        if est <= budget_bytes:
            best = tr
    return best


# ----------------------------------------------------------------------------
# Public wrapper (takes NCHW like the PyTorch module)
# ----------------------------------------------------------------------------
def double_conv(x_nchw, params, tile_rows=None):
    (w1, b1, g1, be1, mu1, v1), (w2, b2, g2, be2, mu2, v2) = params

    x = jnp.transpose(x_nchw, (0, 2, 3, 1))            # NCHW -> NHWC
    N, H, W, Cin = x.shape
    Cout = w1.shape[-1]

    Cp = _round_up(Cin, LANE)      # lane-padded input channels
    Cm = _round_up(Cout, LANE)     # lane-padded mid channels
    Co = Cm                        # lane-padded output channels

    w1f, b1f = _fold_conv_bn(w1, b1, g1, be1, mu1, v1)
    w2f, b2f = _fold_conv_bn(w2, b2, g2, be2, mu2, v2)
    w1p = jnp.zeros((3, 3, Cp, Cm), jnp.bfloat16).at[:, :, :Cin, :Cout].set(w1f)
    w2p = jnp.zeros((3, 3, Cm, Co), jnp.bfloat16).at[:, :, :Cout, :Cout].set(w2f)
    w1p = w1p.reshape(9, Cp, Cm)
    w2p = w2p.reshape(9, Cm, Co)
    b1p = jnp.zeros((1, Cm), jnp.float32).at[0, :Cout].set(b1f)
    b2p = jnp.zeros((1, Co), jnp.float32).at[0, :Cout].set(b2f)

    if tile_rows is None:
        tile_rows = _choose_tile_rows(H, W, Cp, Cm, Co)
    TR = int(tile_rows)
    if H % TR:
        raise ValueError("tile_rows must divide H")    # TODO(synk): ragged tiles
    T = H // TR
    Wp = W + 4
    M0 = (TR + 4) * Wp
    M1 = (TR + 2) * Wp - 2

    # 2-pixel zero halo, channel padding to Cp, bf16, rows flattened so each
    # halo'd tile is one contiguous DMA window.
    x_pad = jnp.zeros((N, H + 4, Wp, Cp), jnp.bfloat16)
    x_pad = x_pad.at[:, 2:2 + H, 2:2 + W, :Cin].set(x.astype(jnp.bfloat16))
    x_flat = x_pad.reshape(N, (H + 4) * Wp, Cp)

    # Per-row-tile mask zeroing the stage-1 halo ring that lies outside the
    # image (precomputed here to keep the kernel free of iota/div/mod).
    p = jnp.arange(M1)
    a, bcol = p // Wp, p % Wp
    col_ok = (bcol >= 1) & (bcol <= W)
    row = jnp.arange(T)[:, None] * TR - 1 + a[None, :]
    mask1 = ((row >= 0) & (row < H) & col_ok[None, :]).astype(jnp.float32)
    mask1 = mask1[:, :, None]                          # (T, M1, 1)

    kernel = functools.partial(_double_conv_kernel, W, TR)
    out = pl.pallas_call(
        kernel,
        out_shape=jax.ShapeDtypeStruct((N, H, W, Co), jnp.float32),
        grid_spec=pltpu.PrefetchScalarGridSpec(
            num_scalar_prefetch=0,
            grid=(N, T),
            in_specs=[
                pl.BlockSpec(memory_space=pl.ANY),                  # x (HBM)
                pl.BlockSpec((9, Cp, Cm), lambda n, t: (0, 0, 0)),  # w1
                pl.BlockSpec((1, Cm), lambda n, t: (0, 0)),         # b1
                pl.BlockSpec((9, Cm, Co), lambda n, t: (0, 0, 0)),  # w2
                pl.BlockSpec((1, Co), lambda n, t: (0, 0)),         # b2
                pl.BlockSpec((1, M1, 1), lambda n, t: (t, 0, 0)),   # halo mask
            ],
            out_specs=pl.BlockSpec((1, TR, W, Co), lambda n, t: (n, t, 0, 0)),
            scratch_shapes=[
                pltpu.VMEM((2, M0, Cp), jnp.bfloat16),   # double-buffered tile
                pltpu.SemaphoreType.DMA((2,)),
            ]),
        compiler_params=pltpu.CompilerParams(
            dimension_semantics=("parallel", "arbitrary"),
            vmem_limit_bytes=48 * 1024 * 1024),
    )(x_flat, w1p, b1p, w2p, b2p, mask1)

    out = out[:, :, :, :Cout]                          # drop channel padding
    return jnp.transpose(out, (0, 3, 1, 2))            # NHWC -> NCHW


# ----------------------------------------------------------------------------
# Deterministic parameter init (shapes match nn.Conv2d / nn.BatchNorm2d)
# ----------------------------------------------------------------------------
def init_params(key, cin, cout):
    def conv_bn(key, ci, co):
        kw_, kb, kg, kbe, km, kv = jax.random.split(key, 6)
        bound = 1.0 / jnp.sqrt(9.0 * ci)
        w = jax.random.uniform(kw_, (3, 3, ci, co), jnp.float32, -bound, bound)
        b = jax.random.uniform(kb, (co,), jnp.float32, -bound, bound)
        gamma = 1.0 + 0.1 * jax.random.normal(kg, (co,), jnp.float32)
        beta = 0.1 * jax.random.normal(kbe, (co,), jnp.float32)
        mean = 0.05 * jax.random.normal(km, (co,), jnp.float32)
        var = 1.0 + 0.1 * jax.random.uniform(kv, (co,), jnp.float32)
        return (w, b, gamma, beta, mean, var)

    k1, k2 = jax.random.split(key)
    return (conv_bn(k1, cin, cout), conv_bn(k2, cout, cout))


# ----------------------------------------------------------------------------
# Plain-JAX reference with matching precision (bf16 operands, f32 accumulate)
# ----------------------------------------------------------------------------
def _ref_double_conv(x_nchw, params):
    def block(x, w_bf16, bias):
        y = lax.conv_general_dilated(
            x.astype(jnp.bfloat16), w_bf16, window_strides=(1, 1),
            padding="SAME", dimension_numbers=("NHWC", "HWIO", "NHWC"),
            preferred_element_type=jnp.float32)
        return jnp.maximum(y + bias, 0.0)

    p1, p2 = params
    w1f, b1f = _fold_conv_bn(*p1)
    w2f, b2f = _fold_conv_bn(*p2)
    x = jnp.transpose(x_nchw, (0, 2, 3, 1))
    h = block(x, w1f, b1f)
    y = block(h, w2f, b2f)
    return jnp.transpose(y, (0, 3, 1, 2))


if __name__ == "__main__":
    key = jax.random.PRNGKey(0)
    kx, kp = jax.random.split(key)

    N, Cin, Cout, H, W = 2, 4, 8, 16, 16
    x = jax.random.normal(kx, (N, Cin, H, W), jnp.float32)   # NCHW like PyTorch
    params = init_params(kp, Cin, Cout)

    fwd = jax.jit(functools.partial(double_conv, tile_rows=8))  # 2 row tiles
    out = jax.block_until_ready(fwd(x, params))

    ref = _ref_double_conv(x, params)
    assert out.shape == (N, Cout, H, W), out.shape
    max_err = float(jnp.max(jnp.abs(out - ref)))
    assert jnp.allclose(out, ref, rtol=1e-2, atol=1e-2), max_err

    print("KERNEL_OK")
</pallas_src>

<mosaic_0001>
module attributes {stable_mosaic.version = 11 : i64} {
  func.func @_double_conv_kernel(%arg0: i32, %arg1: i32, %arg2: memref<2x400x128xbf16, #tpu.memory_space<any>>, %arg3: memref<9x128x128xbf16, #tpu.memory_space<vmem>>, %arg4: memref<1x128xf32, #tpu.memory_space<vmem>>, %arg5: memref<9x128x128xbf16, #tpu.memory_space<vmem>>, %arg6: memref<1x128xf32, #tpu.memory_space<vmem>>, %arg7: memref<1x198x1xf32, #tpu.memory_space<vmem>>, %arg8: memref<1x8x16x128xf32, #tpu.memory_space<vmem>>, %arg9: memref<2x240x128xbf16, #tpu.memory_space<vmem>>, %arg10: memref<2x!tpu.dma_semaphore, #tpu.memory_space<semaphore_mem>>) attributes {dimension_semantics = [#tpu.dimension_semantics<parallel>, #tpu.dimension_semantics<arbitrary>], iteration_bounds = array<i64: 2, 2>, scalar_prefetch = 0 : i64, scratch_operands = 2 : i64, tpu.core_type = #tpu.core_type<tc>, window_params = [{}, {pipeline_mode = #tpu.pipeline_mode<synchronous>, transform_indices = @transform_1, window_bounds = array<i64: 9, 128, 128>}, {pipeline_mode = #tpu.pipeline_mode<synchronous>, transform_indices = @transform_2, window_bounds = array<i64: 1, 128>}, {pipeline_mode = #tpu.pipeline_mode<synchronous>, transform_indices = @transform_3, window_bounds = array<i64: 9, 128, 128>}, {pipeline_mode = #tpu.pipeline_mode<synchronous>, transform_indices = @transform_4, window_bounds = array<i64: 1, 128>}, {transform_indices = @transform_5, window_bounds = array<i64: 1, 198, 1>}, {transform_indices = @transform_6, window_bounds = array<i64: 1, 8, 16, 128>}]} {
    %c2_i32 = arith.constant 2 : i32
    %c0_i32 = arith.constant 0 : i32
    %0 = arith.cmpi eq, %c2_i32, %c0_i32 : i32
    %c1_i32 = arith.constant 1 : i32
    %1 = arith.select %0, %c1_i32, %c2_i32 : i32
    %2 = arith.remsi %arg1, %1 : i32
    %c0_i32_0 = arith.constant 0 : i32
    %3 = arith.cmpi ne, %2, %c0_i32_0 : i32
    %c0_i32_1 = arith.constant 0 : i32
    %4 = arith.cmpi slt, %2, %c0_i32_1 : i32
    %c0_i32_2 = arith.constant 0 : i32
    %5 = arith.cmpi slt, %1, %c0_i32_2 : i32
    %6 = arith.xori %4, %5 : i1
    %7 = arith.andi %6, %3 : i1
    %8 = arith.addi %2, %1 : i32
    %9 = arith.select %7, %8, %2 : i32
    %c0_i32_3 = arith.constant 0 : i32
    %10 = arith.cmpi eq, %arg1, %c0_i32_3 : i32
    %11 = arith.extui %10 : i1 to i32
    %c0_i32_4 = arith.constant 0 : i32
    %12 = arith.cmpi ne, %11, %c0_i32_4 : i32
    scf.if %12 {
      %c160_i32_118 = arith.constant 160 : i32
      %166 = arith.muli %arg1, %c160_i32_118 : i32
      %c0_i32_119 = arith.constant 0 : i32
      %167 = tpu.memref_slice %arg2[%arg0, %166, %c0_i32_119] : memref<2x400x128xbf16, #tpu.memory_space<any>> -> memref<1x240x128xbf16, #tpu.memory_space<any>>
      %168 = tpu.memref_squeeze %167 : memref<1x240x128xbf16, #tpu.memory_space<any>> -> memref<240x128xbf16, #tpu.memory_space<any>>
      %c0_i32_120 = arith.constant 0 : i32
      %c0_i32_121 = arith.constant 0 : i32
      %169 = tpu.memref_slice %arg9[%9, %c0_i32_120, %c0_i32_121] : memref<2x240x128xbf16, #tpu.memory_space<vmem>> -> memref<1x240x128xbf16, #tpu.memory_space<vmem>>
      %170 = tpu.memref_squeeze %169 : memref<1x240x128xbf16, #tpu.memory_space<vmem>> -> memref<240x128xbf16, #tpu.memory_space<vmem>>
      %171 = tpu.memref_slice %arg10[%9] : memref<2x!tpu.dma_semaphore, #tpu.memory_space<semaphore_mem>> -> memref<1x!tpu.dma_semaphore, #tpu.memory_space<semaphore_mem>>
      %172 = tpu.memref_squeeze %171 : memref<1x!tpu.dma_semaphore, #tpu.memory_space<semaphore_mem>> -> memref<!tpu.dma_semaphore, #tpu.memory_space<semaphore_mem>>
      tpu.enqueue_dma source(%168 : memref<240x128xbf16, #tpu.memory_space<any>>) target(%170 : memref<240x128xbf16, #tpu.memory_space<vmem>>) target_semaphore(%172 : memref<!tpu.dma_semaphore, #tpu.memory_space<semaphore_mem>>)
    } else {
    }
    %c160_i32 = arith.constant 160 : i32
    %13 = arith.muli %arg1, %c160_i32 : i32
    %c0_i32_5 = arith.constant 0 : i32
    %14 = tpu.memref_slice %arg2[%arg0, %13, %c0_i32_5] : memref<2x400x128xbf16, #tpu.memory_space<any>> -> memref<1x240x128xbf16, #tpu.memory_space<any>>
    %15 = tpu.memref_squeeze %14 : memref<1x240x128xbf16, #tpu.memory_space<any>> -> memref<240x128xbf16, #tpu.memory_space<any>>
    %c0_i32_6 = arith.constant 0 : i32
    %c0_i32_7 = arith.constant 0 : i32
    %16 = tpu.memref_slice %arg9[%9, %c0_i32_6, %c0_i32_7] : memref<2x240x128xbf16, #tpu.memory_space<vmem>> -> memref<1x240x128xbf16, #tpu.memory_space<vmem>>
    %17 = tpu.memref_squeeze %16 : memref<1x240x128xbf16, #tpu.memory_space<vmem>> -> memref<240x128xbf16, #tpu.memory_space<vmem>>
    %18 = tpu.memref_slice %arg10[%9] : memref<2x!tpu.dma_semaphore, #tpu.memory_space<semaphore_mem>> -> memref<1x!tpu.dma_semaphore, #tpu.memory_space<semaphore_mem>>
    %19 = tpu.memref_squeeze %18 : memref<1x!tpu.dma_semaphore, #tpu.memory_space<semaphore_mem>> -> memref<!tpu.dma_semaphore, #tpu.memory_space<semaphore_mem>>
    tpu.wait_dma2 semaphore(%19 : memref<!tpu.dma_semaphore, #tpu.memory_space<semaphore_mem>>) src(%15 : memref<240x128xbf16, #tpu.memory_space<any>>) dst(%17 : memref<240x128xbf16, #tpu.memory_space<vmem>>)
    %c1_i32_8 = arith.constant 1 : i32
    %20 = arith.addi %arg1, %c1_i32_8 : i32
    %c2_i32_9 = arith.constant 2 : i32
    %21 = arith.cmpi slt, %20, %c2_i32_9 : i32
    %22 = arith.extui %21 : i1 to i32
    %c0_i32_10 = arith.constant 0 : i32
    %23 = arith.cmpi ne, %22, %c0_i32_10 : i32
    scf.if %23 {
      %c1_i32_118 = arith.constant 1 : i32
      %166 = arith.addi %arg1, %c1_i32_118 : i32
      %c1_i32_119 = arith.constant 1 : i32
      %167 = arith.subi %c1_i32_119, %9 : i32
      %c160_i32_120 = arith.constant 160 : i32
      %168 = arith.muli %166, %c160_i32_120 : i32
      %c0_i32_121 = arith.constant 0 : i32
      %169 = tpu.memref_slice %arg2[%arg0, %168, %c0_i32_121] : memref<2x400x128xbf16, #tpu.memory_space<any>> -> memref<1x240x128xbf16, #tpu.memory_space<any>>
      %170 = tpu.memref_squeeze %169 : memref<1x240x128xbf16, #tpu.memory_space<any>> -> memref<240x128xbf16, #tpu.memory_space<any>>
      %c0_i32_122 = arith.constant 0 : i32
      %c0_i32_123 = arith.constant 0 : i32
      %171 = tpu.memref_slice %arg9[%167, %c0_i32_122, %c0_i32_123] : memref<2x240x128xbf16, #tpu.memory_space<vmem>> -> memref<1x240x128xbf16, #tpu.memory_space<vmem>>
      %172 = tpu.memref_squeeze %171 : memref<1x240x128xbf16, #tpu.memory_space<vmem>> -> memref<240x128xbf16, #tpu.memory_space<vmem>>
      %173 = tpu.memref_slice %arg10[%167] : memref<2x!tpu.dma_semaphore, #tpu.memory_space<semaphore_mem>> -> memref<1x!tpu.dma_semaphore, #tpu.memory_space<semaphore_mem>>
      %174 = tpu.memref_squeeze %173 : memref<1x!tpu.dma_semaphore, #tpu.memory_space<semaphore_mem>> -> memref<!tpu.dma_semaphore, #tpu.memory_space<semaphore_mem>>
      tpu.enqueue_dma source(%170 : memref<240x128xbf16, #tpu.memory_space<any>>) target(%172 : memref<240x128xbf16, #tpu.memory_space<vmem>>) target_semaphore(%174 : memref<!tpu.dma_semaphore, #tpu.memory_space<semaphore_mem>>)
    } else {
    }
    %24 = arith.index_cast %9 : i32 to index
    %c0 = arith.constant 0 : index
    %c0_11 = arith.constant 0 : index
    %25 = vector.load %arg9[%24, %c0, %c0_11] : memref<2x240x128xbf16, #tpu.memory_space<vmem>>, vector<1x240x128xbf16>
    %26 = vector.shape_cast %25 : vector<1x240x128xbf16> to vector<240x128xbf16>
    %cst = arith.constant 0.000000e+00 : f32
    %27 = vector.broadcast %cst : f32 to vector<198x128xf32>
    %28 = vector.extract_strided_slice %26 {offsets = [0, 0], sizes = [198, 128], strides = [1, 1]} : vector<240x128xbf16> to vector<198x128xbf16>
    %c0_12 = arith.constant 0 : index
    %c0_13 = arith.constant 0 : index
    %c0_14 = arith.constant 0 : index
    %29 = vector.load %arg3[%c0_12, %c0_13, %c0_14] : memref<9x128x128xbf16, #tpu.memory_space<vmem>>, vector<1x128x128xbf16>
    %30 = vector.shape_cast %29 : vector<1x128x128xbf16> to vector<128x128xbf16>
    %cst_15 = arith.constant dense<0.000000e+00> : vector<198x128xf32>
    %31 = tpu.matmul %28, %30, %cst_15 {dimension_numbers = #tpu.dot_dimension_numbers<[1], [0], [0], [1], [0, 0, 1, 1], [], []>} : vector<198x128xbf16>, vector<128x128xbf16>, vector<198x128xf32> -> vector<198x128xf32>
    %32 = arith.addf %27, %31 : vector<198x128xf32>
    %33 = vector.extract_strided_slice %26 {offsets = [1, 0], sizes = [198, 128], strides = [1, 1]} : vector<240x128xbf16> to vector<198x128xbf16>
    %c1 = arith.constant 1 : index
    %c0_16 = arith.constant 0 : index
    %c0_17 = arith.constant 0 : index
    %34 = vector.load %arg3[%c1, %c0_16, %c0_17] : memref<9x128x128xbf16, #tpu.memory_space<vmem>>, vector<1x128x128xbf16>
    %35 = vector.shape_cast %34 : vector<1x128x128xbf16> to vector<128x128xbf16>
    %cst_18 = arith.constant dense<0.000000e+00> : vector<198x128xf32>
    %36 = tpu.matmul %33, %35, %cst_18 {dimension_numbers = #tpu.dot_dimension_numbers<[1], [0], [0], [1], [0, 0, 1, 1], [], []>} : vector<198x128xbf16>, vector<128x128xbf16>, vector<198x128xf32> -> vector<198x128xf32>
    %37 = arith.addf %32, %36 : vector<198x128xf32>
    %38 = vector.extract_strided_slice %26 {offsets = [2, 0], sizes = [198, 128], strides = [1, 1]} : vector<240x128xbf16> to vector<198x128xbf16>
    %c2 = arith.constant 2 : index
    %c0_19 = arith.constant 0 : index
    %c0_20 = arith.constant 0 : index
    %39 = vector.load %arg3[%c2, %c0_19, %c0_20] : memref<9x128x128xbf16, #tpu.memory_space<vmem>>, vector<1x128x128xbf16>
    %40 = vector.shape_cast %39 : vector<1x128x128xbf16> to vector<128x128xbf16>
    %cst_21 = arith.constant dense<0.000000e+00> : vector<198x128xf32>
    %41 = tpu.matmul %38, %40, %cst_21 {dimension_numbers = #tpu.dot_dimension_numbers<[1], [0], [0], [1], [0, 0, 1, 1], [], []>} : vector<198x128xbf16>, vector<128x128xbf16>, vector<198x128xf32> -> vector<198x128xf32>
    %42 = arith.addf %37, %41 : vector<198x128xf32>
    %43 = vector.extract_strided_slice %26 {offsets = [20, 0], sizes = [198, 128], strides = [1, 1]} : vector<240x128xbf16> to vector<198x128xbf16>
    %c3 = arith.constant 3 : index
    %c0_22 = arith.constant 0 : index
    %c0_23 = arith.constant 0 : index
    %44 = vector.load %arg3[%c3, %c0_22, %c0_23] : memref<9x128x128xbf16, #tpu.memory_space<vmem>>, vector<1x128x128xbf16>
    %45 = vector.shape_cast %44 : vector<1x128x128xbf16> to vector<128x128xbf16>
    %cst_24 = arith.constant dense<0.000000e+00> : vector<198x128xf32>
    %46 = tpu.matmul %43, %45, %cst_24 {dimension_numbers = #tpu.dot_dimension_numbers<[1], [0], [0], [1], [0, 0, 1, 1], [], []>} : vector<198x128xbf16>, vector<128x128xbf16>, vector<198x128xf32> -> vector<198x128xf32>
    %47 = arith.addf %42, %46 : vector<198x128xf32>
    %48 = vector.extract_strided_slice %26 {offsets = [21, 0], sizes = [198, 128], strides = [1, 1]} : vector<240x128xbf16> to vector<198x128xbf16>
    %c4 = arith.constant 4 : index
    %c0_25 = arith.constant 0 : index
    %c0_26 = arith.constant 0 : index
    %49 = vector.load %arg3[%c4, %c0_25, %c0_26] : memref<9x128x128xbf16, #tpu.memory_space<vmem>>, vector<1x128x128xbf16>
    %50 = vector.shape_cast %49 : vector<1x128x128xbf16> to vector<128x128xbf16>
    %cst_27 = arith.constant dense<0.000000e+00> : vector<198x128xf32>
    %51 = tpu.matmul %48, %50, %cst_27 {dimension_numbers = #tpu.dot_dimension_numbers<[1], [0], [0], [1], [0, 0, 1, 1], [], []>} : vector<198x128xbf16>, vector<128x128xbf16>, vector<198x128xf32> -> vector<198x128xf32>
    %52 = arith.addf %47, %51 : vector<198x128xf32>
    %53 = vector.extract_strided_slice %26 {offsets = [22, 0], sizes = [198, 128], strides = [1, 1]} : vector<240x128xbf16> to vector<198x128xbf16>
    %c5 = arith.constant 5 : index
    %c0_28 = arith.constant 0 : index
    %c0_29 = arith.constant 0 : index
    %54 = vector.load %arg3[%c5, %c0_28, %c0_29] : memref<9x128x128xbf16, #tpu.memory_space<vmem>>, vector<1x128x128xbf16>
    %55 = vector.shape_cast %54 : vector<1x128x128xbf16> to vector<128x128xbf16>
    %cst_30 = arith.constant dense<0.000000e+00> : vector<198x128xf32>
    %56 = tpu.matmul %53, %55, %cst_30 {dimension_numbers = #tpu.dot_dimension_numbers<[1], [0], [0], [1], [0, 0, 1, 1], [], []>} : vector<198x128xbf16>, vector<128x128xbf16>, vector<198x128xf32> -> vector<198x128xf32>
    %57 = arith.addf %52, %56 : vector<198x128xf32>
    %58 = vector.extract_strided_slice %26 {offsets = [40, 0], sizes = [198, 128], strides = [1, 1]} : vector<240x128xbf16> to vector<198x128xbf16>
    %c6 = arith.constant 6 : index
    %c0_31 = arith.constant 0 : index
    %c0_32 = arith.constant 0 : index
    %59 = vector.load %arg3[%c6, %c0_31, %c0_32] : memref<9x128x128xbf16, #tpu.memory_space<vmem>>, vector<1x128x128xbf16>
    %60 = vector.shape_cast %59 : vector<1x128x128xbf16> to vector<128x128xbf16>
    %cst_33 = arith.constant dense<0.000000e+00> : vector<198x128xf32>
    %61 = tpu.matmul %58, %60, %cst_33 {dimension_numbers = #tpu.dot_dimension_numbers<[1], [0], [0], [1], [0, 0, 1, 1], [], []>} : vector<198x128xbf16>, vector<128x128xbf16>, vector<198x128xf32> -> vector<198x128xf32>
    %62 = arith.addf %57, %61 : vector<198x128xf32>
    %63 = vector.extract_strided_slice %26 {offsets = [41, 0], sizes = [198, 128], strides = [1, 1]} : vector<240x128xbf16> to vector<198x128xbf16>
    %c7 = arith.constant 7 : index
    %c0_34 = arith.constant 0 : index
    %c0_35 = arith.constant 0 : index
    %64 = vector.load %arg3[%c7, %c0_34, %c0_35] : memref<9x128x128xbf16, #tpu.memory_space<vmem>>, vector<1x128x128xbf16>
    %65 = vector.shape_cast %64 : vector<1x128x128xbf16> to vector<128x128xbf16>
    %cst_36 = arith.constant dense<0.000000e+00> : vector<198x128xf32>
    %66 = tpu.matmul %63, %65, %cst_36 {dimension_numbers = #tpu.dot_dimension_numbers<[1], [0], [0], [1], [0, 0, 1, 1], [], []>} : vector<198x128xbf16>, vector<128x128xbf16>, vector<198x128xf32> -> vector<198x128xf32>
    %67 = arith.addf %62, %66 : vector<198x128xf32>
    %68 = vector.extract_strided_slice %26 {offsets = [42, 0], sizes = [198, 128], strides = [1, 1]} : vector<240x128xbf16> to vector<198x128xbf16>
    %c8 = arith.constant 8 : index
    %c0_37 = arith.constant 0 : index
    %c0_38 = arith.constant 0 : index
    %69 = vector.load %arg3[%c8, %c0_37, %c0_38] : memref<9x128x128xbf16, #tpu.memory_space<vmem>>, vector<1x128x128xbf16>
    %70 = vector.shape_cast %69 : vector<1x128x128xbf16> to vector<128x128xbf16>
    %cst_39 = arith.constant dense<0.000000e+00> : vector<198x128xf32>
    %71 = tpu.matmul %68, %70, %cst_39 {dimension_numbers = #tpu.dot_dimension_numbers<[1], [0], [0], [1], [0, 0, 1, 1], [], []>} : vector<198x128xbf16>, vector<128x128xbf16>, vector<198x128xf32> -> vector<198x128xf32>
    %72 = arith.addf %67, %71 : vector<198x128xf32>
    %c0_40 = arith.constant 0 : index
    %c0_41 = arith.constant 0 : index
    %73 = vector.load %arg4[%c0_40, %c0_41] : memref<1x128xf32, #tpu.memory_space<vmem>>, vector<1x128xf32>
    %74 = vector.broadcast %73 : vector<1x128xf32> to vector<198x128xf32>
    %75 = arith.addf %72, %74 : vector<198x128xf32>
    %cst_42 = arith.constant 0.000000e+00 : f32
    %76 = vector.broadcast %cst_42 : f32 to vector<198x128xf32>
    %77 = arith.maximumf %75, %76 : vector<198x128xf32>
    %c0_43 = arith.constant 0 : index
    %c0_44 = arith.constant 0 : index
    %c0_45 = arith.constant 0 : index
    %78 = vector.load %arg7[%c0_43, %c0_44, %c0_45] : memref<1x198x1xf32, #tpu.memory_space<vmem>>, vector<1x198x1xf32>
    %79 = vector.shape_cast %78 : vector<1x198x1xf32> to vector<198x1xf32>
    %80 = vector.broadcast %79 : vector<198x1xf32> to vector<198x128xf32>
    %81 = arith.mulf %77, %80 : vector<198x128xf32>
    %82 = arith.truncf %81 : vector<198x128xf32> to vector<198x128xbf16>
    %cst_46 = arith.constant 0.000000e+00 : f32
    %83 = vector.broadcast %cst_46 : f32 to vector<156x128xf32>
    %84 = vector.extract_strided_slice %82 {offsets = [0, 0], sizes = [156, 128], strides = [1, 1]} : vector<198x128xbf16> to vector<156x128xbf16>
    %c0_47 = arith.constant 0 : index
    %c0_48 = arith.constant 0 : index
    %c0_49 = arith.constant 0 : index
    %85 = vector.load %arg5[%c0_47, %c0_48, %c0_49] : memref<9x128x128xbf16, #tpu.memory_space<vmem>>, vector<1x128x128xbf16>
    %86 = vector.shape_cast %85 : vector<1x128x128xbf16> to vector<128x128xbf16>
    %cst_50 = arith.constant dense<0.000000e+00> : vector<156x128xf32>
    %87 = tpu.matmul %84, %86, %cst_50 {dimension_numbers = #tpu.dot_dimension_numbers<[1], [0], [0], [1], [0, 0, 1, 1], [], []>} : vector<156x128xbf16>, vector<128x128xbf16>, vector<156x128xf32> -> vector<156x128xf32>
    %88 = arith.addf %83, %87 : vector<156x128xf32>
    %89 = vector.extract_strided_slice %82 {offsets = [1, 0], sizes = [156, 128], strides = [1, 1]} : vector<198x128xbf16> to vector<156x128xbf16>
    %c1_51 = arith.constant 1 : index
    %c0_52 = arith.constant 0 : index
    %c0_53 = arith.constant 0 : index
    %90 = vector.load %arg5[%c1_51, %c0_52, %c0_53] : memref<9x128x128xbf16, #tpu.memory_space<vmem>>, vector<1x128x128xbf16>
    %91 = vector.shape_cast %90 : vector<1x128x128xbf16> to vector<128x128xbf16>
    %cst_54 = arith.constant dense<0.000000e+00> : vector<156x128xf32>
    %92 = tpu.matmul %89, %91, %cst_54 {dimension_numbers = #tpu.dot_dimension_numbers<[1], [0], [0], [1], [0, 0, 1, 1], [], []>} : vector<156x128xbf16>, vector<128x128xbf16>, vector<156x128xf32> -> vector<156x128xf32>
    %93 = arith.addf %88, %92 : vector<156x128xf32>
    %94 = vector.extract_strided_slice %82 {offsets = [2, 0], sizes = [156, 128], strides = [1, 1]} : vector<198x128xbf16> to vector<156x128xbf16>
    %c2_55 = arith.constant 2 : index
    %c0_56 = arith.constant 0 : index
    %c0_57 = arith.constant 0 : index
    %95 = vector.load %arg5[%c2_55, %c0_56, %c0_57] : memref<9x128x128xbf16, #tpu.memory_space<vmem>>, vector<1x128x128xbf16>
    %96 = vector.shape_cast %95 : vector<1x128x128xbf16> to vector<128x128xbf16>
    %cst_58 = arith.constant dense<0.000000e+00> : vector<156x128xf32>
    %97 = tpu.matmul %94, %96, %cst_58 {dimension_numbers = #tpu.dot_dimension_numbers<[1], [0], [0], [1], [0, 0, 1, 1], [], []>} : vector<156x128xbf16>, vector<128x128xbf16>, vector<156x128xf32> -> vector<156x128xf32>
    %98 = arith.addf %93, %97 : vector<156x128xf32>
    %99 = vector.extract_strided_slice %82 {offsets = [20, 0], sizes = [156, 128], strides = [1, 1]} : vector<198x128xbf16> to vector<156x128xbf16>
    %c3_59 = arith.constant 3 : index
    %c0_60 = arith.constant 0 : index
    %c0_61 = arith.constant 0 : index
    %100 = vector.load %arg5[%c3_59, %c0_60, %c0_61] : memref<9x128x128xbf16, #tpu.memory_space<vmem>>, vector<1x128x128xbf16>
    %101 = vector.shape_cast %100 : vector<1x128x128xbf16> to vector<128x128xbf16>
    %cst_62 = arith.constant dense<0.000000e+00> : vector<156x128xf32>
    %102 = tpu.matmul %99, %101, %cst_62 {dimension_numbers = #tpu.dot_dimension_numbers<[1], [0], [0], [1], [0, 0, 1, 1], [], []>} : vector<156x128xbf16>, vector<128x128xbf16>, vector<156x128xf32> -> vector<156x128xf32>
    %103 = arith.addf %98, %102 : vector<156x128xf32>
    %104 = vector.extract_strided_slice %82 {offsets = [21, 0], sizes = [156, 128], strides = [1, 1]} : vector<198x128xbf16> to vector<156x128xbf16>
    %c4_63 = arith.constant 4 : index
    %c0_64 = arith.constant 0 : index
    %c0_65 = arith.constant 0 : index
    %105 = vector.load %arg5[%c4_63, %c0_64, %c0_65] : memref<9x128x128xbf16, #tpu.memory_space<vmem>>, vector<1x128x128xbf16>
    %106 = vector.shape_cast %105 : vector<1x128x128xbf16> to vector<128x128xbf16>
    %cst_66 = arith.constant dense<0.000000e+00> : vector<156x128xf32>
    %107 = tpu.matmul %104, %106, %cst_66 {dimension_numbers = #tpu.dot_dimension_numbers<[1], [0], [0], [1], [0, 0, 1, 1], [], []>} : vector<156x128xbf16>, vector<128x128xbf16>, vector<156x128xf32> -> vector<156x128xf32>
    %108 = arith.addf %103, %107 : vector<156x128xf32>
    %109 = vector.extract_strided_slice %82 {offsets = [22, 0], sizes = [156, 128], strides = [1, 1]} : vector<198x128xbf16> to vector<156x128xbf16>
    %c5_67 = arith.constant 5 : index
    %c0_68 = arith.constant 0 : index
    %c0_69 = arith.constant 0 : index
    %110 = vector.load %arg5[%c5_67, %c0_68, %c0_69] : memref<9x128x128xbf16, #tpu.memory_space<vmem>>, vector<1x128x128xbf16>
    %111 = vector.shape_cast %110 : vector<1x128x128xbf16> to vector<128x128xbf16>
    %cst_70 = arith.constant dense<0.000000e+00> : vector<156x128xf32>
    %112 = tpu.matmul %109, %111, %cst_70 {dimension_numbers = #tpu.dot_dimension_numbers<[1], [0], [0], [1], [0, 0, 1, 1], [], []>} : vector<156x128xbf16>, vector<128x128xbf16>, vector<156x128xf32> -> vector<156x128xf32>
    %113 = arith.addf %108, %112 : vector<156x128xf32>
    %114 = vector.extract_strided_slice %82 {offsets = [40, 0], sizes = [156, 128], strides = [1, 1]} : vector<198x128xbf16> to vector<156x128xbf16>
    %c6_71 = arith.constant 6 : index
    %c0_72 = arith.constant 0 : index
    %c0_73 = arith.constant 0 : index
    %115 = vector.load %arg5[%c6_71, %c0_72, %c0_73] : memref<9x128x128xbf16, #tpu.memory_space<vmem>>, vector<1x128x128xbf16>
    %116 = vector.shape_cast %115 : vector<1x128x128xbf16> to vector<128x128xbf16>
    %cst_74 = arith.constant dense<0.000000e+00> : vector<156x128xf32>
    %117 = tpu.matmul %114, %116, %cst_74 {dimension_numbers = #tpu.dot_dimension_numbers<[1], [0], [0], [1], [0, 0, 1, 1], [], []>} : vector<156x128xbf16>, vector<128x128xbf16>, vector<156x128xf32> -> vector<156x128xf32>
    %118 = arith.addf %113, %117 : vector<156x128xf32>
    %119 = vector.extract_strided_slice %82 {offsets = [41, 0], sizes = [156, 128], strides = [1, 1]} : vector<198x128xbf16> to vector<156x128xbf16>
    %c7_75 = arith.constant 7 : index
    %c0_76 = arith.constant 0 : index
    %c0_77 = arith.constant 0 : index
    %120 = vector.load %arg5[%c7_75, %c0_76, %c0_77] : memref<9x128x128xbf16, #tpu.memory_space<vmem>>, vector<1x128x128xbf16>
    %121 = vector.shape_cast %120 : vector<1x128x128xbf16> to vector<128x128xbf16>
    %cst_78 = arith.constant dense<0.000000e+00> : vector<156x128xf32>
    %122 = tpu.matmul %119, %121, %cst_78 {dimension_numbers = #tpu.dot_dimension_numbers<[1], [0], [0], [1], [0, 0, 1, 1], [], []>} : vector<156x128xbf16>, vector<128x128xbf16>, vector<156x128xf32> -> vector<156x128xf32>
    %123 = arith.addf %118, %122 : vector<156x128xf32>
    %124 = vector.extract_strided_slice %82 {offsets = [42, 0], sizes = [156, 128], strides = [1, 1]} : vector<198x128xbf16> to vector<156x128xbf16>
    %c8_79 = arith.constant 8 : index
    %c0_80 = arith.constant 0 : index
    %c0_81 = arith.constant 0 : index
    %125 = vector.load %arg5[%c8_79, %c0_80, %c0_81] : memref<9x128x128xbf16, #tpu.memory_space<vmem>>, vector<1x128x128xbf16>
    %126 = vector.shape_cast %125 : vector<1x128x128xbf16> to vector<128x128xbf16>
    %cst_82 = arith.constant dense<0.000000e+00> : vector<156x128xf32>
    %127 = tpu.matmul %124, %126, %cst_82 {dimension_numbers = #tpu.dot_dimension_numbers<[1], [0], [0], [1], [0, 0, 1, 1], [], []>} : vector<156x128xbf16>, vector<128x128xbf16>, vector<156x128xf32> -> vector<156x128xf32>
    %128 = arith.addf %123, %127 : vector<156x128xf32>
    %c0_83 = arith.constant 0 : index
    %c0_84 = arith.constant 0 : index
    %129 = vector.load %arg6[%c0_83, %c0_84] : memref<1x128xf32, #tpu.memory_space<vmem>>, vector<1x128xf32>
    %130 = vector.broadcast %129 : vector<1x128xf32> to vector<156x128xf32>
    %131 = arith.addf %128, %130 : vector<156x128xf32>
    %cst_85 = arith.constant 0.000000e+00 : f32
    %132 = vector.broadcast %cst_85 : f32 to vector<156x128xf32>
    %133 = arith.maximumf %131, %132 : vector<156x128xf32>
    %134 = vector.extract_strided_slice %133 {offsets = [0, 0], sizes = [16, 128], strides = [1, 1]} : vector<156x128xf32> to vector<16x128xf32>
    %c0_86 = arith.constant 0 : index
    %c0_87 = arith.constant 0 : index
    %c0_88 = arith.constant 0 : index
    %c0_89 = arith.constant 0 : index
    %135 = vector.load %arg8[%c0_86, %c0_87, %c0_88, %c0_89] : memref<1x8x16x128xf32, #tpu.memory_space<vmem>>, vector<1x1x16x128xf32>
    %136 = vector.shape_cast %135 : vector<1x1x16x128xf32> to vector<16x128xf32>
    %137 = vector.shape_cast %134 : vector<16x128xf32> to vector<1x1x16x128xf32>
    tpu.vector_store %arg8[%c0_86, %c0_87, %c0_88, %c0_89], %137 {strides = array<i32>} : memref<1x8x16x128xf32, #tpu.memory_space<vmem>>, vector<1x1x16x128xf32>,
    %138 = vector.extract_strided_slice %133 {offsets = [20, 0], sizes = [16, 128], strides = [1, 1]} : vector<156x128xf32> to vector<16x128xf32>
    %c0_90 = arith.constant 0 : index
    %c1_91 = arith.constant 1 : index
    %c0_92 = arith.constant 0 : index
    %c0_93 = arith.constant 0 : index
    %139 = vector.load %arg8[%c0_90, %c1_91, %c0_92, %c0_93] : memref<1x8x16x128xf32, #tpu.memory_space<vmem>>, vector<1x1x16x128xf32>
    %140 = vector.shape_cast %139 : vector<1x1x16x128xf32> to vector<16x128xf32>
    %141 = vector.shape_cast %138 : vector<16x128xf32> to vector<1x1x16x128xf32>
    tpu.vector_store %arg8[%c0_90, %c1_91, %c0_92, %c0_93], %141 {strides = array<i32>} : memref<1x8x16x128xf32, #tpu.memory_space<vmem>>, vector<1x1x16x128xf32>,
    %142 = vector.extract_strided_slice %133 {offsets = [40, 0], sizes = [16, 128], strides = [1, 1]} : vector<156x128xf32> to vector<16x128xf32>
    %c0_94 = arith.constant 0 : index
    %c2_95 = arith.constant 2 : index
    %c0_96 = arith.constant 0 : index
    %c0_97 = arith.constant 0 : index
    %143 = vector.load %arg8[%c0_94, %c2_95, %c0_96, %c0_97] : memref<1x8x16x128xf32, #tpu.memory_space<vmem>>, vector<1x1x16x128xf32>
    %144 = vector.shape_cast %143 : vector<1x1x16x128xf32> to vector<16x128xf32>
    %145 = vector.shape_cast %142 : vector<16x128xf32> to vector<1x1x16x128xf32>
    tpu.vector_store %arg8[%c0_94, %c2_95, %c0_96, %c0_97], %145 {strides = array<i32>} : memref<1x8x16x128xf32, #tpu.memory_space<vmem>>, vector<1x1x16x128xf32>,
    %146 = vector.extract_strided_slice %133 {offsets = [60, 0], sizes = [16, 128], strides = [1, 1]} : vector<156x128xf32> to vector<16x128xf32>
    %c0_98 = arith.constant 0 : index
    %c3_99 = arith.constant 3 : index
    %c0_100 = arith.constant 0 : index
    %c0_101 = arith.constant 0 : index
    %147 = vector.load %arg8[%c0_98, %c3_99, %c0_100, %c0_101] : memref<1x8x16x128xf32, #tpu.memory_space<vmem>>, vector<1x1x16x128xf32>
    %148 = vector.shape_cast %147 : vector<1x1x16x128xf32> to vector<16x128xf32>
    %149 = vector.shape_cast %146 : vector<16x128xf32> to vector<1x1x16x128xf32>
    tpu.vector_store %arg8[%c0_98, %c3_99, %c0_100, %c0_101], %149 {strides = array<i32>} : memref<1x8x16x128xf32, #tpu.memory_space<vmem>>, vector<1x1x16x128xf32>,
    %150 = vector.extract_strided_slice %133 {offsets = [80, 0], sizes = [16, 128], strides = [1, 1]} : vector<156x128xf32> to vector<16x128xf32>
    %c0_102 = arith.constant 0 : index
    %c4_103 = arith.constant 4 : index
    %c0_104 = arith.constant 0 : index
    %c0_105 = arith.constant 0 : index
    %151 = vector.load %arg8[%c0_102, %c4_103, %c0_104, %c0_105] : memref<1x8x16x128xf32, #tpu.memory_space<vmem>>, vector<1x1x16x128xf32>
    %152 = vector.shape_cast %151 : vector<1x1x16x128xf32> to vector<16x128xf32>
    %153 = vector.shape_cast %150 : vector<16x128xf32> to vector<1x1x16x128xf32>
    tpu.vector_store %arg8[%c0_102, %c4_103, %c0_104, %c0_105], %153 {strides = array<i32>} : memref<1x8x16x128xf32, #tpu.memory_space<vmem>>, vector<1x1x16x128xf32>,
    %154 = vector.extract_strided_slice %133 {offsets = [100, 0], sizes = [16, 128], strides = [1, 1]} : vector<156x128xf32> to vector<16x128xf32>
    %c0_106 = arith.constant 0 : index
    %c5_107 = arith.constant 5 : index
    %c0_108 = arith.constant 0 : index
    %c0_109 = arith.constant 0 : index
    %155 = vector.load %arg8[%c0_106, %c5_107, %c0_108, %c0_109] : memref<1x8x16x128xf32, #tpu.memory_space<vmem>>, vector<1x1x16x128xf32>
    %156 = vector.shape_cast %155 : vector<1x1x16x128xf32> to vector<16x128xf32>
    %157 = vector.shape_cast %154 : vector<16x128xf32> to vector<1x1x16x128xf32>
    tpu.vector_store %arg8[%c0_106, %c5_107, %c0_108, %c0_109], %157 {strides = array<i32>} : memref<1x8x16x128xf32, #tpu.memory_space<vmem>>, vector<1x1x16x128xf32>,
    %158 = vector.extract_strided_slice %133 {offsets = [120, 0], sizes = [16, 128], strides = [1, 1]} : vector<156x128xf32> to vector<16x128xf32>
    %c0_110 = arith.constant 0 : index
    %c6_111 = arith.constant 6 : index
    %c0_112 = arith.constant 0 : index
    %c0_113 = arith.constant 0 : index
    %159 = vector.load %arg8[%c0_110, %c6_111, %c0_112, %c0_113] : memref<1x8x16x128xf32, #tpu.memory_space<vmem>>, vector<1x1x16x128xf32>
    %160 = vector.shape_cast %159 : vector<1x1x16x128xf32> to vector<16x128xf32>
    %161 = vector.shape_cast %158 : vector<16x128xf32> to vector<1x1x16x128xf32>
    tpu.vector_store %arg8[%c0_110, %c6_111, %c0_112, %c0_113], %161 {strides = array<i32>} : memref<1x8x16x128xf32, #tpu.memory_space<vmem>>, vector<1x1x16x128xf32>,
    %162 = vector.extract_strided_slice %133 {offsets = [140, 0], sizes = [16, 128], strides = [1, 1]} : vector<156x128xf32> to vector<16x128xf32>
    %c0_114 = arith.constant 0 : index
    %c7_115 = arith.constant 7 : index
    %c0_116 = arith.constant 0 : index
    %c0_117 = arith.constant 0 : index
    %163 = vector.load %arg8[%c0_114, %c7_115, %c0_116, %c0_117] : memref<1x8x16x128xf32, #tpu.memory_space<vmem>>, vector<1x1x16x128xf32>
    %164 = vector.shape_cast %163 : vector<1x1x16x128xf32> to vector<16x128xf32>
    %165 = vector.shape_cast %162 : vector<16x128xf32> to vector<1x1x16x128xf32>
    tpu.vector_store %arg8[%c0_114, %c7_115, %c0_116, %c0_117], %165 {strides = array<i32>} : memref<1x8x16x128xf32, #tpu.memory_space<vmem>>, vector<1x1x16x128xf32>,
    return
  }
  func.func @transform_1(%arg0: i32, %arg1: i32) -> (i32, i32, i32) {
    %c0_i32 = arith.constant 0 : i32
    %c0_i32_0 = arith.constant 0 : i32
    %c0_i32_1 = arith.constant 0 : i32
    %c0_i32_2 = arith.constant 0 : i32
    return %c0_i32, %c0_i32_0, %c0_i32_1 : i32, i32, i32
  }
  func.func @transform_2(%arg0: i32, %arg1: i32) -> (i32, i32) {
    %c0_i32 = arith.constant 0 : i32
    %c0_i32_0 = arith.constant 0 : i32
    %c0_i32_1 = arith.constant 0 : i32
    return %c0_i32, %c0_i32_0 : i32, i32
  }
  func.func @transform_3(%arg0: i32, %arg1: i32) -> (i32, i32, i32) {
    %c0_i32 = arith.constant 0 : i32
    %c0_i32_0 = arith.constant 0 : i32
    %c0_i32_1 = arith.constant 0 : i32
    %c0_i32_2 = arith.constant 0 : i32
    return %c0_i32, %c0_i32_0, %c0_i32_1 : i32, i32, i32
  }
  func.func @transform_4(%arg0: i32, %arg1: i32) -> (i32, i32) {
    %c0_i32 = arith.constant 0 : i32
    %c0_i32_0 = arith.constant 0 : i32
    %c0_i32_1 = arith.constant 0 : i32
    return %c0_i32, %c0_i32_0 : i32, i32
  }
  func.func @transform_5(%arg0: i32, %arg1: i32) -> (i32, i32, i32) {
    %c0_i32 = arith.constant 0 : i32
    %c0_i32_0 = arith.constant 0 : i32
    %c0_i32_1 = arith.constant 0 : i32
    return %arg1, %c0_i32, %c0_i32_0 : i32, i32, i32
  }
  func.func @transform_6(%arg0: i32, %arg1: i32) -> (i32, i32, i32, i32) {
    %c0_i32 = arith.constant 0 : i32
    %c0_i32_0 = arith.constant 0 : i32
    %c0_i32_1 = arith.constant 0 : i32
    return %arg0, %arg1, %c0_i32, %c0_i32_0 : i32, i32, i32, i32
  }
}

</mosaic_0001>

<llo_original>
// kernel: double_conv.1
$region0: #{double_conv.1}
  #allocation0 [shape = 'u32[]', space=smem, size = 0x4, offset = 0x4, fixed_abs, tag = 'smem constant byte address 0x4 - core index']
  #allocation1 [shape = 'u32[144,128]{1,0:T(1,128)}', space=vmem, size = 0x12000, scoped, tag = 'internal scratch']
  #allocation2 [shape = 'bf16[2,240,128]{2,1,0:T(16,128)(2,1)}', space=vmem, size = 0x1e000, scoped, tag = 'scratch operand']
  #allocation3 [shape = 's32[2]{0}', space=sflag, size = 0x8, scoped, tag = 'scratch operand']
  #allocation4 [shape = 's32[]', space=sflag, size = 0x4, offset = 0, fixed_abs, tag = 'sflag constant byte address 0x0 - dummy sync flag']
  #allocation5 [shape = 's32[]', space=sflag, size = 0x4, offset = 0, fixed_abs, tag = 'sflag constant byte address 0x0 - dummy sync flag']
  %s0 = inlined_call_operand.vmem [shape: bf16[2,400,128], index: 0, kind: input, shape index: {}]
  %s1 = inlined_call_operand.vmem [shape: bf16[9,128,128], index: 1, kind: input, shape index: {}]
  %s2 = inlined_call_operand.vmem [shape: f32[1,128], index: 2, kind: input, shape index: {}]
  %s3 = inlined_call_operand.vmem [shape: bf16[9,128,128], index: 3, kind: input, shape index: {}]
  %s4 = inlined_call_operand.vmem [shape: f32[1,128], index: 4, kind: input, shape index: {}]
  %s5 = inlined_call_operand.vmem [shape: f32[2,198,1], index: 5, kind: input, shape index: {}]
  %s6 = inlined_call_operand.vmem [shape: f32[2,16,16,128], index: 6, kind: output, shape index: {}]
  %s7 = sld [smem:[#allocation0]]
  $region129: #{double_conv.1} parent=0
    _
  %s9 = ssub.s32 1, %s7
  %s10 = scalar_select 0, %s9, %s7
  loop: start=0, step=1, limit=6
  $region2: #{double_conv.1} parent=0 // loop_pre_header
    _
  $region3: #{double_conv.1} parent=0 // loop_header
    %s12 = sphi 0, %s16
    %p13 = scmp.ge.s32.totalorder %s12, 6
    %s19 = sphi 0, %s31
    %s20 = sphi 0, %s27
    %s21 = sphi 0, %s19
    %s22 = sphi 0, %s20
    %s23 = sphi 0, %s21
    %s24 = sphi 0, %s22
    %s32 = sphi 0, %s32
    %s34 = sphi 0, %s32
    %s35 = sphi 0, %s34
    %s49 = sphi 0, %s35
    %s53 = sphi 0, %s53
    %s55 = sphi 0, %s53
    %s56 = sphi 0, %s55
    %s70 = sphi 0, %s56
    %s74 = sphi 0, %s74
    %s76 = sphi 0, %s74
    %s77 = sphi 0, %s76
    %s91 = sphi 0, %s77
    %s95 = sphi 0, %s95
    %s97 = sphi 0, %s95
    %s98 = sphi 0, %s97
    %s112 = sphi 0, %s98
    %s118 = sphi 0, %s120
    %s121 = sphi 0, %s118
    %s122 = sphi 0, %s121
    %s138 = sphi 0, %s122
    %s146 = sphi 0, %s148
    %s149 = sphi 0, %s146
    %s150 = sphi 0, %s149
    %s166 = sphi 0, %s150
  $region4: #{double_conv.1} parent=0 // loop_header_branch
    %15 = sbr.rel (%p13) target = $region8
  $region5: #{double_conv.1} parent=0 // loop_body
    %s17 = ssub.s32 %s12, 1
    %s18 = ssub.s32 %s12, 2
    %s25 = sadd.s32 1, %s20
    %p26 = scmp.ge.s32.totalorder %s25, 2
    %s27 = scalar_select %p26, 0, %s25
    %s28 = sadd.s32 1, %s19
    %s29 = scalar_select %p26, %s28, %s19
    %p30 = scmp.ge.s32.totalorder %s29, 2
    %s31 = scalar_select %p30, 0, %s29
    %s33 = sadd.s32 %s32, 1
    %p36 = scmp.eq.s32.totalorder %s12, 3
    %p37 = scmp.ne.s32.totalorder %s32, %s34
    %p38 = scmp.eq.s32.totalorder %s12, 0
    %p39 = por %p37, %p38
    %p40 = scmp.ne.s32.totalorder %s32, %s34
    %p41 = scmp.eq.s32.totalorder %s17, 3
    %p42 = por %p40, %p41
    %p43 = scmp.ne.s32.totalorder %s34, %s35
    %p44 = scmp.eq.s32.totalorder %s17, 0
    %p45 = por %p43, %p44
    %p46 = scmp.ne.s32.totalorder %s34, %s35
    %p47 = scmp.eq.s32.totalorder %s18, 3
    %p48 = por %p46, %p47
    %p50 = scmp.ne.s32.totalorder %s35, %s49
    %p51 = scmp.eq.s32.totalorder %s18, 0
    %p52 = por %p50, %p51
    %s54 = sadd.s32 %s53, 1
    %p57 = scmp.eq.s32.totalorder %s12, 3
    %p58 = scmp.ne.s32.totalorder %s53, %s55
    %p59 = scmp.eq.s32.totalorder %s12, 0
    %p60 = por %p58, %p59
    %p61 = scmp.ne.s32.totalorder %s53, %s55
    %p62 = scmp.eq.s32.totalorder %s17, 3
    %p63 = por %p61, %p62
    %p64 = scmp.ne.s32.totalorder %s55, %s56
    %p65 = scmp.eq.s32.totalorder %s17, 0
    %p66 = por %p64, %p65
    %p67 = scmp.ne.s32.totalorder %s55, %s56
    %p68 = scmp.eq.s32.totalorder %s18, 3
    %p69 = por %p67, %p68
    %p71 = scmp.ne.s32.totalorder %s56, %s70
    %p72 = scmp.eq.s32.totalorder %s18, 0
    %p73 = por %p71, %p72
    %s75 = sadd.s32 %s74, 1
    %p78 = scmp.eq.s32.totalorder %s12, 3
    %p79 = scmp.ne.s32.totalorder %s74, %s76
    %p80 = scmp.eq.s32.totalorder %s12, 0
    %p81 = por %p79, %p80
    %p82 = scmp.ne.s32.totalorder %s74, %s76
    %p83 = scmp.eq.s32.totalorder %s17, 3
    %p84 = por %p82, %p83
    %p85 = scmp.ne.s32.totalorder %s76, %s77
    %p86 = scmp.eq.s32.totalorder %s17, 0
    %p87 = por %p85, %p86
    %p88 = scmp.ne.s32.totalorder %s76, %s77
    %p89 = scmp.eq.s32.totalorder %s18, 3
    %p90 = por %p88, %p89
    %p92 = scmp.ne.s32.totalorder %s77, %s91
    %p93 = scmp.eq.s32.totalorder %s18, 0
    %p94 = por %p92, %p93
    %s96 = sadd.s32 %s95, 1
    %p99 = scmp.eq.s32.totalorder %s12, 3
    %p100 = scmp.ne.s32.totalorder %s95, %s97
    %p101 = scmp.eq.s32.totalorder %s12, 0
    %p102 = por %p100, %p101
    %p103 = scmp.ne.s32.totalorder %s95, %s97
    %p104 = scmp.eq.s32.totalorder %s17, 3
    %p105 = por %p103, %p104
    %p106 = scmp.ne.s32.totalorder %s97, %s98
    %p107 = scmp.eq.s32.totalorder %s17, 0
    %p108 = por %p106, %p107
    %p109 = scmp.ne.s32.totalorder %s97, %s98
    %p110 = scmp.eq.s32.totalorder %s18, 3
    %p111 = por %p109, %p110
    %p113 = scmp.ne.s32.totalorder %s98, %s112
    %p114 = scmp.eq.s32.totalorder %s18, 0
    %p115 = por %p113, %p114
    %s116 = ssub.s32 %s20, %s27
    %p117 = scmp.eq.s32.totalorder %s116, 0
    %s119 = sadd.s32 %s118, 1
    %s120 = scalar_select %p117, %s118, %s119
    %p123 = pneg %p117
    %p124 = scmp.eq.s32.totalorder %s12, 3
    %p125 = por %p123, %p124
    %p126 = scmp.ne.s32.totalorder %s118, %s121
    %p127 = scmp.eq.s32.totalorder %s12, 0
    %p128 = por %p126, %p127
    %p129 = scmp.ne.s32.totalorder %s118, %s121
    %p130 = scmp.eq.s32.totalorder %s17, 3
    %p131 = por %p129, %p130
    %p132 = scmp.ne.s32.totalorder %s121, %s122
    %p133 = scmp.eq.s32.totalorder %s17, 0
    %p134 = por %p132, %p133
    %p135 = scmp.ne.s32.totalorder %s121, %s122
    %p136 = scmp.eq.s32.totalorder %s18, 3
    %p137 = por %p135, %p136
    %p139 = scmp.ne.s32.totalorder %s122, %s138
    %p140 = scmp.eq.s32.totalorder %s18, 0
    %p141 = por %p139, %p140
    %s142 = ssub.s32 %s19, %s31
    %s143 = ssub.s32 %s20, %s27
    %s144 = sor.u32 %s142, %s143
    %p145 = scmp.eq.s32.totalorder %s144, 0
    %s147 = sadd.s32 %s146, 1
    %s148 = scalar_select %p145, %s146, %s147
    %p151 = pneg %p145
    %p152 = scmp.eq.s32.totalorder %s12, 3
    %p153 = por %p151, %p152
    %p154 = scmp.ne.s32.totalorder %s146, %s149
    %p155 = scmp.eq.s32.totalorder %s12, 0
    %p156 = por %p154, %p155
    %p157 = scmp.ne.s32.totalorder %s146, %s149
    %p158 = scmp.eq.s32.totalorder %s17, 3
    %p159 = por %p157, %p158
    %p160 = scmp.ne.s32.totalorder %s149, %s150
    %p161 = scmp.eq.s32.totalorder %s17, 0
    %p162 = por %p160, %p161
    %p163 = scmp.ne.s32.totalorder %s149, %s150
    %p164 = scmp.eq.s32.totalorder %s18, 3
    %p165 = por %p163, %p164
    %p167 = scmp.ne.s32.totalorder %s150, %s166
    %p168 = scmp.eq.s32.totalorder %s18, 0
    %p169 = por %p167, %p168
    %p170 = scmp.le.s32.totalorder 1, %s12
    %p171 = scmp.lt.s32.totalorder %s12, 5
    %p172 = pnand %p170, %p171
    %p173 = pneg %p172
    // Predicated region
    $region9: #{double_conv.1} parent=5 // pred_check
      _
    $region10: #{double_conv.1} parent=5 // pred_check_branch
      %175 = sbr.rel (%p172) target = $region12
    $region11: #{double_conv.1} parent=5 // pred_region
      %s176 = ssub.s32 %s12, 1
      // Predicated region
      $region13: #{double_conv.1} parent=11 // pred_check
        %p177 = pneg %p45
      $region14: #{double_conv.1} parent=11 // pred_check_branch
        %179 = sbr.rel (%p177) target = $region16
      $region15: #{double_conv.1} parent=11 // pred_region
        _
      $region16: #{double_conv.1} parent=11 // pred_fallthru
        _
      // Predicated region
      $region17: #{double_conv.1} parent=11 // pred_check
        %p180 = pneg %p66
      $region18: #{double_conv.1} parent=11 // pred_check_branch
        %182 = sbr.rel (%p180) target = $region20
      $region19: #{double_conv.1} parent=11 // pred_region
        _
      $region20: #{double_conv.1} parent=11 // pred_fallthru
        _
      // Predicated region
      $region21: #{double_conv.1} parent=11 // pred_check
        %p183 = pneg %p87
      $region22: #{double_conv.1} parent=11 // pred_check_branch
        %185 = sbr.rel (%p183) target = $region24
      $region23: #{double_conv.1} parent=11 // pred_region
        _
      $region24: #{double_conv.1} parent=11 // pred_fallthru
        _
      // Predicated region
      $region25: #{double_conv.1} parent=11 // pred_check
        %p186 = pneg %p108
      $region26: #{double_conv.1} parent=11 // pred_check_branch
        %188 = sbr.rel (%p186) target = $region28
      $region27: #{double_conv.1} parent=11 // pred_region
        _
      $region28: #{double_conv.1} parent=11 // pred_fallthru
        _
    $region12: #{double_conv.1} parent=5 // pred_fallthru
      _
    %p189 = scmp.lt.s32.totalorder %s12, 4
    // Predicated region
    $region29: #{double_conv.1} parent=5 // pred_check
      %p190 = pneg %p189
    $region30: #{double_conv.1} parent=5 // pred_check_branch
      %192 = sbr.rel (%p190) target = $region32
    $region31: #{double_conv.1} parent=5 // pred_region
      // Predicated region
      $region33: #{double_conv.1} parent=31 // pred_check
        %p193 = pneg %p128
      $region34: #{double_conv.1} parent=31 // pred_check_branch
        %195 = sbr.rel (%p193) target = $region36
      $region35: #{double_conv.1} parent=31 // pred_region
        %p196 = scmp.lt.s32.totalorder %s20, 1
        %s197 = scalar_select %p196, %s20, 1
        %s198 = smul.addr %s197, 25
        %s199 = smul.addr %s198, 8
        %s200 = scalar_lea.vmem %s5, %s199
      $region36: #{double_conv.1} parent=31 // pred_fallthru
        _
    $region32: #{double_conv.1} parent=5 // pred_fallthru
      _
    %p201 = scmp.le.s32.totalorder 1, %s12
    %p202 = scmp.lt.s32.totalorder %s12, 5
    %p203 = pnand %p201, %p202
    %p204 = pneg %p203
    // Predicated region
    $region37: #{double_conv.1} parent=5 // pred_check
      _
    $region38: #{double_conv.1} parent=5 // pred_check_branch
      %206 = sbr.rel (%p203) target = $region40
    $region39: #{double_conv.1} parent=5 // pred_region
      %s207 = ssub.s32 %s12, 1
      %p208 = pneg %p45
      %p209 = pneg %p42
      %p210 = pneg %p66
      %p211 = pneg %p63
      %p212 = pneg %p87
      %p213 = pneg %p84
      %p214 = pneg %p108
      %p215 = pneg %p105
      %p216 = scmp.lt.s32.totalorder %s22, 1
      %s217 = scalar_select %p216, %s22, 1
      %s218 = smul.addr %s217, 25
      %s219 = smul.addr %s218, 8
      %s220 = scalar_lea.vmem %s5, %s219
      %p221 = pneg %p134
      %p222 = pneg %p131
      %p223 = pneg %p162
      %p224 = pneg %p159
      %s225 = smul.u32 8, %s22
      %p226 = scmp.lt.s32.totalorder %s21, 1
      %s227 = scalar_select %p226, %s21, 1
      %p228 = scmp.lt.s32.totalorder %s225, 15
      %s229 = scalar_select %p228, %s225, 15
      %s230 = smul.addr %s229, 2
      %s231 = smul.addr %s227, 32
      %s232 = sadd.s32 %s230, %s231
      %s233 = smul.addr %s232, 8
      %s234 = scalar_lea.vmem %s6, %s233
      %p235 = scmp.lt.s32.totalorder %s22, 1
      %s236 = scalar_select %p235, %s22, 1
      %s237 = smul.addr %s236, 25
      %s238 = smul.addr %s237, 8
      %s239 = scalar_lea.vmem %s5, %s238
      %s240 = smul.u32 8, %s22
      %p241 = scmp.lt.s32.totalorder %s21, 1
      %s242 = scalar_select %p241, %s21, 1
      %p243 = scmp.lt.s32.totalorder %s240, 15
      %s244 = scalar_select %p243, %s240, 15
      %s245 = smul.addr %s244, 2
      %s246 = smul.addr %s242, 32
      %s247 = sadd.s32 %s245, %s246
      %s248 = smul.addr %s247, 8
      %s249 = scalar_lea.vmem %s6, %s248
      %s250 = smul.u32 8, %s22
      %p252 = scmp.lt.s32.totalorder %s22, 0
      %s253 = ssub.s32 0, %s22
      %s254 = scalar_select %p252, %s253, %s22
      %s255 = sand.u32 %s254, 1
      %s256 = ssub.s32 0, %s255
      %s257 = scalar_select %p252, %s256, %s255
      %p258 = scmp.ne.s32.totalorder %s257, 0
      %p259 = scmp.lt.s32.totalorder %s257, 0
      %p260 = pnand %p259, %p258
      %p261 = pneg %p260
      %s262 = sadd.s32 %s257, 2
      %s263 = scalar_select %p261, %s262, %s257
      %p264 = scmp.eq.s32.totalorder %s22, 0
      // Predicated region
      $region41: #{double_conv.1} parent=39 // pred_check
        %p265 = pneg %p264
      $region42: #{double_conv.1} parent=39 // pred_check_branch
        %267 = sbr.rel (%p265) target = $region44
      $region43: #{double_conv.1} parent=39 // pred_region
        %s268 = smul.u32 %s22, 160
        %s269 = sshra.s32 %s268, 3
        %s270 = sand.u32 %s268, 7
        %s271 = smul.u32 %s21, 50
        %s272 = sadd.s32 %s269, %s271
        %s273 = smul.addr %s272, 4
        %s274 = scalar_lea.vmem %s0, %s273
        %s275 = smul.u32 %s263, 15
        %s276 = smul.addr %s275, 8
        %s277 = scalar_lea.vmem [#allocation2], %s276
        %s278 = scalar_lea.sflag [#allocation3], %s263
        %p280 = scmp.lt.u32.totalorder 120, 8
        %p281 = pneg %p280
        // Predicated region
        $region45: #{double_conv.1} parent=43 // pred_check
          _
        $region46: #{double_conv.1} parent=43 // pred_check_branch
          %283 = sbr.rel (%p280) target = $region48
        $region47: #{double_conv.1} parent=43 // pred_region
          %s298 = sand.u32 120, 7
          %p299 = scmp.eq.s32.totalorder %s298, 0
          // Predicated region
          $region60: #{double_conv.1} parent=47 // pred_check
            %p300 = pneg %p299
          $region61: #{double_conv.1} parent=47 // pred_check_branch
            %302 = sbr.rel (%p300) target = $region63
          $region62: #{double_conv.1} parent=47 // pred_region
            loop: start=0, step=1, limit=1
            $region64: #{double_conv.1} parent=62 // loop_pre_header
              _
            $region65: #{double_conv.1} parent=62 // loop_header
              %s304 = sphi 0, %s308
              %p305 = scmp.ge.s32.totalorder %s304, 1
              %s309 = sphi %s274, %s274
              %s310 = sphi %s277, %s277
            $region66: #{double_conv.1} parent=62 // loop_header_branch
              %307 = sbr.rel (%p305) target = $region70
            $region67: #{double_conv.1} parent=62 // loop_body
              %v311 = vld [vmem:[%s309] sm:$0xff]
              %312 = vst [vmem:[%s310] sm:$0xff] %v311
              %v313 = vld [vmem:[%s309 + $0x8] sm:$0xff]
              %314 = vst [vmem:[%s310 + $0x8] sm:$0xff] %v313
              %v315 = vld [vmem:[%s309 + $0x10] sm:$0xff]
              %316 = vst [vmem:[%s310 + $0x10] sm:$0xff] %v315
              %v317 = vld [vmem:[%s309 + $0x18] sm:$0xff]
              %318 = vst [vmem:[%s310 + $0x18] sm:$0xff] %v317
              %v319 = vld [vmem:[%s309 + $0x20] sm:$0xff]
              %320 = vst [vmem:[%s310 + $0x20] sm:$0xff] %v319
              %v321 = vld [vmem:[%s309 + $0x28] sm:$0xff]
              %322 = vst [vmem:[%s310 + $0x28] sm:$0xff] %v321
              %v323 = vld [vmem:[%s309 + $0x30] sm:$0xff]
              %324 = vst [vmem:[%s310 + $0x30] sm:$0xff] %v323
              %v325 = vld [vmem:[%s309 + $0x38] sm:$0xff]
              %326 = vst [vmem:[%s310 + $0x38] sm:$0xff] %v325
              %v327 = vld [vmem:[%s309 + $0x40] sm:$0xff]
              %328 = vst [vmem:[%s310 + $0x40] sm:$0xff] %v327
              %v329 = vld [vmem:[%s309 + $0x48] sm:$0xff]
              %330 = vst [vmem:[%s310 + $0x48] sm:$0xff] %v329
              %v331 = vld [vmem:[%s309 + $0x50] sm:$0xff]
              %332 = vst [vmem:[%s310 + $0x50] sm:$0xff] %v331
              %v333 = vld [vmem:[%s309 + $0x58] sm:$0xff]
              %334 = vst [vmem:[%s310 + $0x58] sm:$0xff] %v333
              %v335 = vld [vmem:[%s309 + $0x60] sm:$0xff]
              %336 = vst [vmem:[%s310 + $0x60] sm:$0xff] %v335
              %v337 = vld [vmem:[%s309 + $0x68] sm:$0xff]
              %338 = vst [vmem:[%s310 + $0x68] sm:$0xff] %v337
              %v339 = vld [vmem:[%s309 + $0x70] sm:$0xff]
              %340 = vst [vmem:[%s310 + $0x70] sm:$0xff] %v339
            $region68: #{double_conv.1} parent=62 // loop_footer
              %s308 = sadd.s32 1, %s304
            $region69: #{double_conv.1} parent=62 // loop_footer_branch
              %303 = sbr.rel target = $region65
            $region70: #{double_conv.1} parent=62 // loop_exit
              _
          $region63: #{double_conv.1} parent=47 // pred_fallthru
            _
          %p341 = pneg %p299
          // Predicated region
          $region71: #{double_conv.1} parent=47 // pred_check
            _
          $region72: #{double_conv.1} parent=47 // pred_check_branch
            %343 = sbr.rel (%p299) target = $region74
          $region73: #{double_conv.1} parent=47 // pred_region
            %s344 = sand.u32 120, 7
          $region74: #{double_conv.1} parent=47 // pred_fallthru
            _
        $region48: #{double_conv.1} parent=43 // pred_fallthru
          _
        // Predicated region
        $region49: #{double_conv.1} parent=43 // pred_check
          %p284 = pneg %p280
        $region50: #{double_conv.1} parent=43 // pred_check_branch
          %286 = sbr.rel (%p284) target = $region52
        $region51: #{double_conv.1} parent=43 // pred_region
          %s287 = sshllo.u32 0, 120
          loop: start=0, step=1, limit=1
          $region53: #{double_conv.1} parent=51 // loop_pre_header
            _
          $region54: #{double_conv.1} parent=51 // loop_header
            %s289 = sphi 0, %s293
            %p290 = scmp.ge.s32.totalorder %s289, 1
            %s294 = sphi %s274, %s274
            %s295 = sphi %s277, %s277
          $region55: #{double_conv.1} parent=51 // loop_header_branch
            %292 = sbr.rel (%p290) target = $region59
          $region56: #{double_conv.1} parent=51 // loop_body
            %v296 = vld [vmem:[%s294] sm:%s287]
            %297 = vst [vmem:[%s295] sm:%s287] %v296
          $region57: #{double_conv.1} parent=51 // loop_footer
            %s293 = sadd.s32 1, %s289
          $region58: #{double_conv.1} parent=51 // loop_footer_branch
            %288 = sbr.rel target = $region54
          $region59: #{double_conv.1} parent=51 // loop_exit
            _
        $region52: #{double_conv.1} parent=43 // pred_fallthru
          _
        // Predicated region
        $region75: #{double_conv.1} parent=43 // pred_check
          _
        $region76: #{double_conv.1} parent=43 // pred_check_branch
          %347 = sbr.rel (0) target = $region78
        $region77: #{double_conv.1} parent=43 // pred_region
          %348 = vsyncadd %s278, 1920
        $region78: #{double_conv.1} parent=43 // pred_fallthru
          _
      $region44: #{double_conv.1} parent=39 // pred_fallthru
        _
      %s349 = smul.u32 %s263, 15
      %s350 = smul.addr %s349, 8
      %s351 = scalar_lea.vmem [#allocation2], %s350
      %s352 = scalar_lea.sflag [#allocation3], %s263
      %s353 = smul.u32 4, 30
      %s354 = smul.u32 %s353, 1
      %s355 = sshll.u32 %s354, 4
      %356 = dma.done %s352, %s355
      %s357 = sadd.s32 %s22, 1
      %p358 = scmp.lt.s32.totalorder %s357, 2
      // Predicated region
      $region79: #{double_conv.1} parent=39 // pred_check
        %p359 = pneg %p358
      $region80: #{double_conv.1} parent=39 // pred_check_branch
        %361 = sbr.rel (%p359) target = $region82
      $region81: #{double_conv.1} parent=39 // pred_region
        %s362 = ssub.s32 1, %s263
        %s363 = smul.u32 %s357, 160
        %s364 = sshra.s32 %s363, 3
        %s365 = sand.u32 %s363, 7
        %s366 = smul.u32 %s21, 50
        %s367 = sadd.s32 %s364, %s366
        %s368 = smul.addr %s367, 4
        %s369 = scalar_lea.vmem %s0, %s368
        %s370 = smul.u32 %s362, 15
        %s371 = smul.addr %s370, 8
        %s372 = scalar_lea.vmem [#allocation2], %s371
        %s373 = scalar_lea.sflag [#allocation3], %s362
        %p375 = scmp.lt.u32.totalorder 120, 8
        %p376 = pneg %p375
        // Predicated region
        $region83: #{double_conv.1} parent=81 // pred_check
          _
        $region84: #{double_conv.1} parent=81 // pred_check_branch
          %378 = sbr.rel (%p375) target = $region86
        $region85: #{double_conv.1} parent=81 // pred_region
          %s393 = sand.u32 120, 7
          %p394 = scmp.eq.s32.totalorder %s393, 0
          // Predicated region
          $region98: #{double_conv.1} parent=85 // pred_check
            %p395 = pneg %p394
          $region99: #{double_conv.1} parent=85 // pred_check_branch
            %397 = sbr.rel (%p395) target = $region101
          $region100: #{double_conv.1} parent=85 // pred_region
            loop: start=0, step=1, limit=1
            $region102: #{double_conv.1} parent=100 // loop_pre_header
              _
            $region103: #{double_conv.1} parent=100 // loop_header
              %s399 = sphi 0, %s403
              %p400 = scmp.ge.s32.totalorder %s399, 1
              %s404 = sphi %s369, %s369
              %s405 = sphi %s372, %s372
            $region104: #{double_conv.1} parent=100 // loop_header_branch
              %402 = sbr.rel (%p400) target = $region108
            $region105: #{double_conv.1} parent=100 // loop_body
              %v406 = vld [vmem:[%s404] sm:$0xff]
              %407 = vst [vmem:[%s405] sm:$0xff] %v406
              %v408 = vld [vmem:[%s404 + $0x8] sm:$0xff]
              %409 = vst [vmem:[%s405 + $0x8] sm:$0xff] %v408
              %v410 = vld [vmem:[%s404 + $0x10] sm:$0xff]
              %411 = vst [vmem:[%s405 + $0x10] sm:$0xff] %v410
              %v412 = vld [vmem:[%s404 + $0x18] sm:$0xff]
              %413 = vst [vmem:[%s405 + $0x18] sm:$0xff] %v412
              %v414 = vld [vmem:[%s404 + $0x20] sm:$0xff]
              %415 = vst [vmem:[%s405 + $0x20] sm:$0xff] %v414
              %v416 = vld [vmem:[%s404 + $0x28] sm:$0xff]
              %417 = vst [vmem:[%s405 + $0x28] sm:$0xff] %v416
              %v418 = vld [vmem:[%s404 + $0x30] sm:$0xff]
              %419 = vst [vmem:[%s405 + $0x30] sm:$0xff] %v418
              %v420 = vld [vmem:[%s404 + $0x38] sm:$0xff]
              %421 = vst [vmem:[%s405 + $0x38] sm:$0xff] %v420
              %v422 = vld [vmem:[%s404 + $0x40] sm:$0xff]
              %423 = vst [vmem:[%s405 + $0x40] sm:$0xff] %v422
              %v424 = vld [vmem:[%s404 + $0x48] sm:$0xff]
              %425 = vst [vmem:[%s405 + $0x48] sm:$0xff] %v424
              %v426 = vld [vmem:[%s404 + $0x50] sm:$0xff]
              %427 = vst [vmem:[%s405 + $0x50] sm:$0xff] %v426
              %v428 = vld [vmem:[%s404 + $0x58] sm:$0xff]
              %429 = vst [vmem:[%s405 + $0x58] sm:$0xff] %v428
              %v430 = vld [vmem:[%s404 + $0x60] sm:$0xff]
              %431 = vst [vmem:[%s405 + $0x60] sm:$0xff] %v430
              %v432 = vld [vmem:[%s404 + $0x68] sm:$0xff]
              %433 = vst [vmem:[%s405 + $0x68] sm:$0xff] %v432
              %v434 = vld [vmem:[%s404 + $0x70] sm:$0xff]
              %435 = vst [vmem:[%s405 + $0x70] sm:$0xff] %v434
            $region106: #{double_conv.1} parent=100 // loop_footer
              %s403 = sadd.s32 1, %s399
            $region107: #{double_conv.1} parent=100 // loop_footer_branch
              %398 = sbr.rel target = $region103
            $region108: #{double_conv.1} parent=100 // loop_exit
              _
          $region101: #{double_conv.1} parent=85 // pred_fallthru
            _
          %p436 = pneg %p394
          // Predicated region
          $region109: #{double_conv.1} parent=85 // pred_check
            _
          $region110: #{double_conv.1} parent=85 // pred_check_branch
            %438 = sbr.rel (%p394) target = $region112
          $region111: #{double_conv.1} parent=85 // pred_region
            %s439 = sand.u32 120, 7
          $region112: #{double_conv.1} parent=85 // pred_fallthru
            _
        $region86: #{double_conv.1} parent=81 // pred_fallthru
          _
        // Predicated region
        $region87: #{double_conv.1} parent=81 // pred_check
          %p379 = pneg %p375
        $region88: #{double_conv.1} parent=81 // pred_check_branch
          %381 = sbr.rel (%p379) target = $region90
        $region89: #{double_conv.1} parent=81 // pred_region
          %s382 = sshllo.u32 0, 120
          loop: start=0, step=1, limit=1
          $region91: #{double_conv.1} parent=89 // loop_pre_header
            _
          $region92: #{double_conv.1} parent=89 // loop_header
            %s384 = sphi 0, %s388
            %p385 = scmp.ge.s32.totalorder %s384, 1
            %s389 = sphi %s369, %s369
            %s390 = sphi %s372, %s372
          $region93: #{double_conv.1} parent=89 // loop_header_branch
            %387 = sbr.rel (%p385) target = $region97
          $region94: #{double_conv.1} parent=89 // loop_body
            %v391 = vld [vmem:[%s389] sm:%s382]
            %392 = vst [vmem:[%s390] sm:%s382] %v391
          $region95: #{double_conv.1} parent=89 // loop_footer
            %s388 = sadd.s32 1, %s384
          $region96: #{double_conv.1} parent=89 // loop_footer_branch
            %383 = sbr.rel target = $region92
          $region97: #{double_conv.1} parent=89 // loop_exit
            _
        $region90: #{double_conv.1} parent=81 // pred_fallthru
          _
        // Predicated region
        $region113: #{double_conv.1} parent=81 // pred_check
          _
        $region114: #{double_conv.1} parent=81 // pred_check_branch
          %442 = sbr.rel (0) target = $region116
        $region115: #{double_conv.1} parent=81 // pred_region
          %443 = vsyncadd %s373, 1920
        $region116: #{double_conv.1} parent=81 // pred_fallthru
          _
      $region82: #{double_conv.1} parent=39 // pred_fallthru
        _
      %v444 = vld [vmem:[%s351] sm:$0xff]
      %v445 = vld [vmem:[%s351 + $0x8] sm:$0xff]
      %v446 = vld [vmem:[%s351 + $0x10] sm:$0xff]
      %v447 = vld [vmem:[%s351 + $0x18] sm:$0xff]
      %v448 = vld [vmem:[%s351 + $0x20] sm:$0xff]
      %v449 = vld [vmem:[%s351 + $0x28] sm:$0xff]
      %v450 = vld [vmem:[%s351 + $0x30] sm:$0xff]
      %v451 = vld [vmem:[%s351 + $0x38] sm:$0xff]
      %v452 = vld [vmem:[%s351 + $0x40] sm:$0xff]
      %v453 = vld [vmem:[%s351 + $0x48] sm:$0xff]
      %v454 = vld [vmem:[%s351 + $0x50] sm:$0xff]
      %v455 = vld [vmem:[%s351 + $0x58] sm:$0xff]
      %v456 = vld [vmem:[%s351 + $0x60] sm:$0xff]
      %v457 = vld [vmem:[%s351 + $0x68] sm:$0xff]
      %v458 = vld [vmem:[%s351 + $0x70] sm:$0xff]
      %v459 = vld [vmem:[%s1] sm:$0xf]
      %v460 = vld [vmem:[%s1 + $0x4] sm:$0xf]
      %v461 = vld [vmem:[%s1 + $0x8] sm:$0xf]
      %v462 = vld [vmem:[%s1 + $0xc] sm:$0xf]
      %v463 = vld [vmem:[%s1 + $0x10] sm:$0xf]
      %v464 = vld [vmem:[%s1 + $0x14] sm:$0xf]
      %v465 = vld [vmem:[%s1 + $0x18] sm:$0xf]
      %v466 = vld [vmem:[%s1 + $0x1c] sm:$0xf]
      %v467 = vld [vmem:[%s1 + $0x20] sm:$0xf]
      %v468 = vld [vmem:[%s1 + $0x24] sm:$0xf]
      %v469 = vld [vmem:[%s1 + $0x28] sm:$0xf]
      %v470 = vld [vmem:[%s1 + $0x2c] sm:$0xf]
      %v471 = vld [vmem:[%s1 + $0x30] sm:$0xf]
      %v472 = vld [vmem:[%s1 + $0x34] sm:$0xf]
      %v473 = vld [vmem:[%s1 + $0x38] sm:$0xf]
      %v474 = vld [vmem:[%s1 + $0x3c] sm:$0xf]
      %s475 = scalar_lea.vmem %s1, 64
      %v476 = vld [vmem:[%s475] sm:$0xf]
      %v477 = vld [vmem:[%s475 + $0x4] sm:$0xf]
      %v478 = vld [vmem:[%s475 + $0x8] sm:$0xf]
      %v479 = vld [vmem:[%s475 + $0xc] sm:$0xf]
      %v480 = vld [vmem:[%s475 + $0x10] sm:$0xf]
      %v481 = vld [vmem:[%s475 + $0x14] sm:$0xf]
      %v482 = vld [vmem:[%s475 + $0x18] sm:$0xf]
      %v483 = vld [vmem:[%s475 + $0x1c] sm:$0xf]
      %v484 = vld [vmem:[%s475 + $0x20] sm:$0xf]
      %v485 = vld [vmem:[%s475 + $0x24] sm:$0xf]
      %v486 = vld [vmem:[%s475 + $0x28] sm:$0xf]
      %v487 = vld [vmem:[%s475 + $0x2c] sm:$0xf]
      %v488 = vld [vmem:[%s475 + $0x30] sm:$0xf]
      %v489 = vld [vmem:[%s475 + $0x34] sm:$0xf]
      %v490 = vld [vmem:[%s475 + $0x38] sm:$0xf]
      %v491 = vld [vmem:[%s475 + $0x3c] sm:$0xf]
      %vm492 = vsmask.f32 7424
      %v494 = vshrl.u32 %v444, 16
      %v496 = vshll.u32 %v444, 16
      %v498 = vrot.slane %v496, 1
      %v499 = vor.u32 %v494, %v498
      %v501 = vshll.u32 %v445, 16
      %v503 = vrot.slane %v501, 1
      %v504 = vsel %vm492, %v499, %v503
      %v505 = vshrl.u32 %v445, 16
      %v507 = vor.u32 %v505, %v503
      %v509 = vshll.u32 %v446, 16
      %v511 = vrot.slane %v509, 1
      %v512 = vsel %vm492, %v507, %v511
      %v513 = vshrl.u32 %v446, 16
      %v515 = vor.u32 %v513, %v511
      %v517 = vshll.u32 %v447, 16
      %v519 = vrot.slane %v517, 1
      %v520 = vsel %vm492, %v515, %v519
      %v521 = vshrl.u32 %v447, 16
      %v523 = vor.u32 %v521, %v519
      %v525 = vshll.u32 %v448, 16
      %v527 = vrot.slane %v525, 1
      %v528 = vsel %vm492, %v523, %v527
      %v529 = vshrl.u32 %v448, 16
      %v531 = vor.u32 %v529, %v527
      %v533 = vshll.u32 %v449, 16
      %v535 = vrot.slane %v533, 1
      %v536 = vsel %vm492, %v531, %v535
      %v537 = vshrl.u32 %v449, 16
      %v539 = vor.u32 %v537, %v535
      %v541 = vshll.u32 %v450, 16
      %v543 = vrot.slane %v541, 1
      %v544 = vsel %vm492, %v539, %v543
      %v545 = vshrl.u32 %v450, 16
      %v547 = vor.u32 %v545, %v543
      %v549 = vshll.u32 %v451, 16
      %v551 = vrot.slane %v549, 1
      %v552 = vsel %vm492, %v547, %v551
      %v553 = vshrl.u32 %v451, 16
      %v555 = vor.u32 %v553, %v551
      %v557 = vshll.u32 %v452, 16
      %v559 = vrot.slane %v557, 1
      %v560 = vsel %vm492, %v555, %v559
      %v561 = vshrl.u32 %v452, 16
      %v563 = vor.u32 %v561, %v559
      %v565 = vshll.u32 %v453, 16
      %v567 = vrot.slane %v565, 1
      %v568 = vsel %vm492, %v563, %v567
      %v569 = vshrl.u32 %v453, 16
      %v571 = vor.u32 %v569, %v567
      %v573 = vshll.u32 %v454, 16
      %v575 = vrot.slane %v573, 1
      %v576 = vsel %vm492, %v571, %v575
      %v577 = vshrl.u32 %v454, 16
      %v579 = vor.u32 %v577, %v575
      %v581 = vshll.u32 %v455, 16
      %v583 = vrot.slane %v581, 1
      %v584 = vsel %vm492, %v579, %v583
      %v585 = vshrl.u32 %v455, 16
      %v587 = vor.u32 %v585, %v583
      %v589 = vshll.u32 %v456, 16
      %v591 = vrot.slane %v589, 1
      %v592 = vsel %vm492, %v587, %v591
      %v593 = vshrl.u32 %v456, 16
      %v595 = vor.u32 %v593, %v591
      %v625 = vunpack.c.l.b16 %v476
      %v626 = vunpack.c.l.b16 %v477
      %v627 = vunpack.c.l.b16 %v478
      %v628 = vunpack.c.l.b16 %v479
      %v629 = vunpack.c.l.b16 %v480
      %v630 = vunpack.c.l.b16 %v481
      %v631 = vunpack.c.l.b16 %v482
      %v632 = vunpack.c.l.b16 %v483
      %v633 = vunpack.c.l.b16 %v484
      %v634 = vunpack.c.l.b16 %v485
      %v635 = vunpack.c.l.b16 %v486
      %v636 = vunpack.c.l.b16 %v487
      %v637 = vunpack.c.l.b16 %v488
      %v638 = vunpack.c.l.b16 %v489
      %v639 = vunpack.c.l.b16 %v490
      %v640 = vunpack.c.l.b16 %v491
      %v641 = vpack.c.b16 %v626, %v625
      %v642 = vpack.c.b16 %v628, %v627
      %v643 = vpack.c.b16 %v630, %v629
      %v644 = vpack.c.b16 %v632, %v631
      %v645 = vpack.c.b16 %v634, %v633
      %v646 = vpack.c.b16 %v636, %v635
      %v647 = vpack.c.b16 %v638, %v637
      %v648 = vpack.c.b16 %v640, %v639
      %657 = vmatprep.subr.bf16.mxu0 0
      %658 = vmatpush1.bf16.msra.mxu0 %v641
      %659 = vmatprep.subr.bf16.mxu0 0
      %660 = vmatpush1.bf16.msra.mxu0 %v642
      %661 = vmatprep.subr.bf16.mxu0 0
      %662 = vmatpush1.bf16.msra.mxu0 %v643
      %663 = vmatprep.subr.bf16.mxu0 0
      %664 = vmatpush1.bf16.msra.mxu0 %v644
      %665 = vmatprep.subr.bf16.mxu0 0
      %666 = vmatpush1.bf16.msra.mxu0 %v645
      %667 = vmatprep.subr.bf16.mxu0 0
      %668 = vmatpush1.bf16.msra.mxu0 %v646
      %669 = vmatprep.subr.bf16.mxu0 0
      %670 = vmatpush1.bf16.msra.mxu0 %v647
      %671 = vmatprep.subr.bf16.mxu0 0
      %672 = vmatpush1.bf16.msra.mxu0 %v648
      %673 = vmatprep.subr.bf16.mxu0 0
      %674 = vmatpush1.bf16.msra.mxu0 0
      %675 = vmatprep.subr.bf16.mxu0 0
      %676 = vmatpush1.bf16.msra.mxu0 0
      %677 = vmatprep.subr.bf16.mxu0 0
      %678 = vmatpush1.bf16.msra.mxu0 0
      %679 = vmatprep.subr.bf16.mxu0 0
      %680 = vmatpush1.bf16.msra.mxu0 0
      %681 = vmatprep.subr.bf16.mxu0 0
      %682 = vmatpush1.bf16.msra.mxu0 0
      %683 = vmatprep.subr.bf16.mxu0 0
      %684 = vmatpush1.bf16.msra.mxu0 0
      %685 = vmatprep.subr.bf16.mxu0 0
      %686 = vmatpush1.bf16.msra.mxu0 0
      %687 = vmatprep.subr.bf16.mxu0 0
      %688 = vmatpush1.bf16.msra.mxu0 0
      %689 = vmatprep.mubr.bf16.mxu0 0
      %690 = vmatmul.mubr.bf16.gmra.mrb[0].mxu0 %v504
      %v691 = vpop.f32.mrb[0].mxu0
      %v692 = vadd.f32 0.0, %v691
      %v693 = vpop.f32.mrb[0].mxu0
      %v694 = vpop.f32.mrb[0].mxu0
      %v695 = vadd.f32 0.0, %v694
      %v696 = vpop.f32.mrb[0].mxu0
      %697 = vmatprep.mubr.bf16.mxu0 0
      %698 = vmatmul.mubr.bf16.gmra.mrb[0].mxu0 %v512
      %v699 = vpop.f32.mrb[0].mxu0
      %v700 = vadd.f32 0.0, %v699
      %v701 = vpop.f32.mrb[0].mxu0
      %v702 = vpop.f32.mrb[0].mxu0
      %v703 = vadd.f32 0.0, %v702
      %v704 = vpop.f32.mrb[0].mxu0
      %705 = vmatprep.mubr.bf16.mxu0 0
      %706 = vmatmul.mubr.bf16.gmra.mrb[0].mxu0 %v520
      %v707 = vpop.f32.mrb[0].mxu0
      %v708 = vadd.f32 0.0, %v707
      %v709 = vpop.f32.mrb[0].mxu0
      %v710 = vpop.f32.mrb[0].mxu0
      %v711 = vadd.f32 0.0, %v710
      %v712 = vpop.f32.mrb[0].mxu0
      %713 = vmatprep.mubr.bf16.mxu0 0
      %714 = vmatmul.mubr.bf16.gmra.mrb[0].mxu0 %v528
      %v715 = vpop.f32.mrb[0].mxu0
      %v716 = vadd.f32 0.0, %v715
      %v717 = vpop.f32.mrb[0].mxu0
      %v718 = vpop.f32.mrb[0].mxu0
      %v719 = vadd.f32 0.0, %v718
      %v720 = vpop.f32.mrb[0].mxu0
      %721 = vmatprep.mubr.bf16.mxu0 0
      %722 = vmatmul.mubr.bf16.gmra.mrb[0].mxu0 %v536
      %v723 = vpop.f32.mrb[0].mxu0
      %v724 = vadd.f32 0.0, %v723
      %v725 = vpop.f32.mrb[0].mxu0
      %v726 = vpop.f32.mrb[0].mxu0
      %v727 = vadd.f32 0.0, %v726
      %v728 = vpop.f32.mrb[0].mxu0
      %729 = vmatprep.mubr.bf16.mxu0 0
      %730 = vmatmul.mubr.bf16.gmra.mrb[0].mxu0 %v544
      %v731 = vpop.f32.mrb[0].mxu0
      %v732 = vadd.f32 0.0, %v731
      %v733 = vpop.f32.mrb[0].mxu0
      %v734 = vpop.f32.mrb[0].mxu0
      %v735 = vadd.f32 0.0, %v734
      %v736 = vpop.f32.mrb[0].mxu0
      %737 = vmatprep.mubr.bf16.mxu0 0
      %738 = vmatmul.mubr.bf16.gmra.mrb[0].mxu0 %v552
      %v739 = vpop.f32.mrb[0].mxu0
      %v740 = vadd.f32 0.0, %v739
      %v741 = vpop.f32.mrb[0].mxu0
      %v742 = vpop.f32.mrb[0].mxu0
      %v743 = vadd.f32 0.0, %v742
      %v744 = vpop.f32.mrb[0].mxu0
      %745 = vmatprep.mubr.bf16.mxu0 0
      %746 = vmatmul.mubr.bf16.gmra.mrb[0].mxu0 %v560
      %v747 = vpop.f32.mrb[0].mxu0
      %v748 = vadd.f32 0.0, %v747
      %v749 = vpop.f32.mrb[0].mxu0
      %v750 = vpop.f32.mrb[0].mxu0
      %v751 = vadd.f32 0.0, %v750
      %v752 = vpop.f32.mrb[0].mxu0
      %753 = vmatprep.mubr.bf16.mxu0 0
      %754 = vmatmul.mubr.bf16.gmra.mrb[0].mxu0 %v568
      %v755 = vpop.f32.mrb[0].mxu0
      %v756 = vadd.f32 0.0, %v755
      %v757 = vpop.f32.mrb[0].mxu0
      %v758 = vpop.f32.mrb[0].mxu0
      %v759 = vadd.f32 0.0, %v758
      %v760 = vpop.f32.mrb[0].mxu0
      %761 = vmatprep.mubr.bf16.mxu0 0
      %762 = vmatmul.mubr.bf16.gmra.mrb[0].mxu0 %v576
      %v763 = vpop.f32.mrb[0].mxu0
      %v764 = vadd.f32 0.0, %v763
      %v765 = vpop.f32.mrb[0].mxu0
      %v766 = vpop.f32.mrb[0].mxu0
      %v767 = vadd.f32 0.0, %v766
      %v768 = vpop.f32.mrb[0].mxu0
      %769 = vmatprep.mubr.bf16.mxu0 0
      %770 = vmatmul.mubr.bf16.gmra.mrb[0].mxu0 %v584
      %v771 = vpop.f32.mrb[0].mxu0
      %v772 = vadd.f32 0.0, %v771
      %v773 = vpop.f32.mrb[0].mxu0
      %v774 = vpop.f32.mrb[0].mxu0
      %v775 = vadd.f32 0.0, %v774
      %v776 = vpop.f32.mrb[0].mxu0
      %777 = vmatprep.mubr.bf16.mxu0 0
      %778 = vmatmul.mubr.bf16.gmra.mrb[0].mxu0 %v592
      %v779 = vpop.f32.mrb[0].mxu0
      %v780 = vadd.f32 0.0, %v779
      %v781 = vpop.f32.mrb[0].mxu0
      %v782 = vpop.f32.mrb[0].mxu0
      %v783 = vadd.f32 0.0, %v782
      %v784 = vpop.f32.mrb[0].mxu0
      %785 = vmatprep.mubr.bf16.mxu0 0
      %786 = vmatmul.mubr.bf16.gmra.mrb[0].mxu0 %v595
      %v787 = vpop.f32.mrb[0].mxu0
      %v788 = vadd.f32 0.0, %v787
      %v789 = vpop.f32.mrb[0].mxu0
      %v790 = vpop.f32.mrb[0].mxu0
      %v791 = vpop.f32.mrb[0].mxu0
      %792 = vdwg.mxu0
      %v809 = vunpack.c.l.b16 %v459
      %v810 = vunpack.c.l.b16 %v460
      %v811 = vunpack.c.l.b16 %v461
      %v812 = vunpack.c.l.b16 %v462
      %v813 = vunpack.c.l.b16 %v463
      %v814 = vunpack.c.l.b16 %v464
      %v815 = vunpack.c.l.b16 %v465
      %v816 = vunpack.c.l.b16 %v466
      %v817 = vunpack.c.l.b16 %v467
      %v818 = vunpack.c.l.b16 %v468
      %v819 = vunpack.c.l.b16 %v469
      %v820 = vunpack.c.l.b16 %v470
      %v821 = vunpack.c.l.b16 %v471
      %v822 = vunpack.c.l.b16 %v472
      %v823 = vunpack.c.l.b16 %v473
      %v824 = vunpack.c.l.b16 %v474
      %v825 = vpack.c.b16 %v810, %v809
      %v826 = vpack.c.b16 %v812, %v811
      %v827 = vpack.c.b16 %v814, %v813
      %v828 = vpack.c.b16 %v816, %v815
      %v829 = vpack.c.b16 %v818, %v817
      %v830 = vpack.c.b16 %v820, %v819
      %v831 = vpack.c.b16 %v822, %v821
      %v832 = vpack.c.b16 %v824, %v823
      %841 = vmatprep.subr.bf16.mxu0 0
      %842 = vmatpush1.bf16.msra.mxu0 %v825
      %843 = vmatprep.subr.bf16.mxu0 0
      %844 = vmatpush1.bf16.msra.mxu0 %v826
      %845 = vmatprep.subr.bf16.mxu0 0
      %846 = vmatpush1.bf16.msra.mxu0 %v827
      %847 = vmatprep.subr.bf16.mxu0 0
      %848 = vmatpush1.bf16.msra.mxu0 %v828
      %849 = vmatprep.subr.bf16.mxu0 0
      %850 = vmatpush1.bf16.msra.mxu0 %v829
      %851 = vmatprep.subr.bf16.mxu0 0
      %852 = vmatpush1.bf16.msra.mxu0 %v830
      %853 = vmatprep.subr.bf16.mxu0 0
      %854 = vmatpush1.bf16.msra.mxu0 %v831
      %855 = vmatprep.subr.bf16.mxu0 0
      %856 = vmatpush1.bf16.msra.mxu0 %v832
      %857 = vmatprep.subr.bf16.mxu0 0
      %858 = vmatpush1.bf16.msra.mxu0 0
      %859 = vmatprep.subr.bf16.mxu0 0
      %860 = vmatpush1.bf16.msra.mxu0 0
      %861 = vmatprep.subr.bf16.mxu0 0
      %862 = vmatpush1.bf16.msra.mxu0 0
      %863 = vmatprep.subr.bf16.mxu0 0
      %864 = vmatpush1.bf16.msra.mxu0 0
      %865 = vmatprep.subr.bf16.mxu0 0
      %866 = vmatpush1.bf16.msra.mxu0 0
      %867 = vmatprep.subr.bf16.mxu0 0
      %868 = vmatpush1.bf16.msra.mxu0 0
      %869 = vmatprep.subr.bf16.mxu0 0
      %870 = vmatpush1.bf16.msra.mxu0 0
      %871 = vmatprep.subr.bf16.mxu0 0
      %872 = vmatpush1.bf16.msra.mxu0 0
      %873 = vmatprep.mubr.bf16.mxu0 0
      %874 = vmatmul.mubr.bf16.gmra.mrb[0].mxu0 %v444
      %v875 = vpop.f32.mrb[0].mxu0
      %v876 = vadd.f32 %v692, %v875
      %v877 = vpop.f32.mrb[0].mxu0
      %v878 = vpop.f32.mrb[0].mxu0
      %v879 = vadd.f32 %v695, %v878
      %v880 = vpop.f32.mrb[0].mxu0
      %881 = vmatprep.mubr.bf16.mxu0 0
      %882 = vmatmul.mubr.bf16.gmra.mrb[0].mxu0 %v445
      %v883 = vpop.f32.mrb[0].mxu0
      %v884 = vadd.f32 %v700, %v883
      %v885 = vpop.f32.mrb[0].mxu0
      %v886 = vpop.f32.mrb[0].mxu0
      %v887 = vadd.f32 %v703, %v886
      %v888 = vpop.f32.mrb[0].mxu0
      %889 = vmatprep.mubr.bf16.mxu0 0
      %890 = vmatmul.mubr.bf16.gmra.mrb[0].mxu0 %v446
      %v891 = vpop.f32.mrb[0].mxu0
      %v892 = vadd.f32 %v708, %v891
      %v893 = vpop.f32.mrb[0].mxu0
      %v894 = vpop.f32.mrb[0].mxu0
      %v895 = vadd.f32 %v711, %v894
      %v896 = vpop.f32.mrb[0].mxu0
      %897 = vmatprep.mubr.bf16.mxu0 0
      %898 = vmatmul.mubr.bf16.gmra.mrb[0].mxu0 %v447
      %v899 = vpop.f32.mrb[0].mxu0
      %v900 = vadd.f32 %v716, %v899
      %v901 = vpop.f32.mrb[0].mxu0
      %v902 = vpop.f32.mrb[0].mxu0
      %v903 = vadd.f32 %v719, %v902
      %v904 = vpop.f32.mrb[0].mxu0
      %905 = vmatprep.mubr.bf16.mxu0 0
      %906 = vmatmul.mubr.bf16.gmra.mrb[0].mxu0 %v448
      %v907 = vpop.f32.mrb[0].mxu0
      %v908 = vadd.f32 %v724, %v907
      %v909 = vpop.f32.mrb[0].mxu0
      %v910 = vpop.f32.mrb[0].mxu0
      %v911 = vadd.f32 %v727, %v910
      %v912 = vpop.f32.mrb[0].mxu0
      %913 = vmatprep.mubr.bf16.mxu0 0
      %914 = vmatmul.mubr.bf16.gmra.mrb[0].mxu0 %v449
      %v915 = vpop.f32.mrb[0].mxu0
      %v916 = vadd.f32 %v732, %v915
      %v917 = vpop.f32.mrb[0].mxu0
      %v918 = vpop.f32.mrb[0].mxu0
      %v919 = vadd.f32 %v735, %v918
      %v920 = vpop.f32.mrb[0].mxu0
      %921 = vmatprep.mubr.bf16.mxu0 0
      %922 = vmatmul.mubr.bf16.gmra.mrb[0].mxu0 %v450
      %v923 = vpop.f32.mrb[0].mxu0
      %v924 = vadd.f32 %v740, %v923
      %v925 = vpop.f32.mrb[0].mxu0
      %v926 = vpop.f32.mrb[0].mxu0
      %v927 = vadd.f32 %v743, %v926
      %v928 = vpop.f32.mrb[0].mxu0
      %929 = vmatprep.mubr.bf16.mxu0 0
      %930 = vmatmul.mubr.bf16.gmra.mrb[0].mxu0 %v451
      %v931 = vpop.f32.mrb[0].mxu0
      %v932 = vadd.f32 %v748, %v931
      %v933 = vpop.f32.mrb[0].mxu0
      %v934 = vpop.f32.mrb[0].mxu0
      %v935 = vadd.f32 %v751, %v934
      %v936 = vpop.f32.mrb[0].mxu0
      %937 = vmatprep.mubr.bf16.mxu0 0
      %938 = vmatmul.mubr.bf16.gmra.mrb[0].mxu0 %v452
      %v939 = vpop.f32.mrb[0].mxu0
      %v940 = vadd.f32 %v756, %v939
      %v941 = vpop.f32.mrb[0].mxu0
      %v942 = vpop.f32.mrb[0].mxu0
      %v943 = vadd.f32 %v759, %v942
      %v944 = vpop.f32.mrb[0].mxu0
      %945 = vmatprep.mubr.bf16.mxu0 0
      %946 = vmatmul.mubr.bf16.gmra.mrb[0].mxu0 %v453
      %v947 = vpop.f32.mrb[0].mxu0
      %v948 = vadd.f32 %v764, %v947
      %v949 = vpop.f32.mrb[0].mxu0
      %v950 = vpop.f32.mrb[0].mxu0
      %v951 = vadd.f32 %v767, %v950
      %v952 = vpop.f32.mrb[0].mxu0
      %953 = vmatprep.mubr.bf16.mxu0 0
      %954 = vmatmul.mubr.bf16.gmra.mrb[0].mxu0 %v454
      %v955 = vpop.f32.mrb[0].mxu0
      %v956 = vadd.f32 %v772, %v955
      %v957 = vpop.f32.mrb[0].mxu0
      %v958 = vpop.f32.mrb[0].mxu0
      %v959 = vadd.f32 %v775, %v958
      %v960 = vpop.f32.mrb[0].mxu0
      %961 = vmatprep.mubr.bf16.mxu0 0
      %962 = vmatmul.mubr.bf16.gmra.mrb[0].mxu0 %v455
      %v963 = vpop.f32.mrb[0].mxu0
      %v964 = vadd.f32 %v780, %v963
      %v965 = vpop.f32.mrb[0].mxu0
      %v966 = vpop.f32.mrb[0].mxu0
      %v967 = vadd.f32 %v783, %v966
      %v968 = vpop.f32.mrb[0].mxu0
      %969 = vmatprep.mubr.bf16.mxu0 0
      %970 = vmatmul.mubr.bf16.gmra.mrb[0].mxu0 %v456
      %v971 = vpop.f32.mrb[0].mxu0
      %v972 = vadd.f32 %v788, %v971
      %v973 = vpop.f32.mrb[0].mxu0
      %v974 = vpop.f32.mrb[0].mxu0
      %v975 = vpop.f32.mrb[0].mxu0
      %976 = vdwg.mxu0
      %s977 = scalar_lea.vmem %s1, 128
      %v978 = vld [vmem:[%s977] sm:$0xf]
      %v979 = vld [vmem:[%s977 + $0x4] sm:$0xf]
      %v980 = vld [vmem:[%s977 + $0x8] sm:$0xf]
      %v981 = vld [vmem:[%s977 + $0xc] sm:$0xf]
      %v982 = vld [vmem:[%s977 + $0x10] sm:$0xf]
      %v983 = vld [vmem:[%s977 + $0x14] sm:$0xf]
      %v984 = vld [vmem:[%s977 + $0x18] sm:$0xf]
      %v985 = vld [vmem:[%s977 + $0x1c] sm:$0xf]
      %v986 = vld [vmem:[%s977 + $0x20] sm:$0xf]
      %v987 = vld [vmem:[%s977 + $0x24] sm:$0xf]
      %v988 = vld [vmem:[%s977 + $0x28] sm:$0xf]
      %v989 = vld [vmem:[%s977 + $0x2c] sm:$0xf]
      %v990 = vld [vmem:[%s977 + $0x30] sm:$0xf]
      %v991 = vld [vmem:[%s977 + $0x34] sm:$0xf]
      %v992 = vld [vmem:[%s977 + $0x38] sm:$0xf]
      %v993 = vld [vmem:[%s977 + $0x3c] sm:$0xf]
      %vm1007 = vcmask 1046528
      %v1008 = vrot.slane %v444, 1
      %v1009 = vrot.slane %v445, 1
      %v1010 = vsel %vm1007, %v1008, %v1009
      %v1011 = vrot.slane %v446, 1
      %v1012 = vsel %vm1007, %v1009, %v1011
      %v1013 = vrot.slane %v447, 1
      %v1014 = vsel %vm1007, %v1011, %v1013
      %v1015 = vrot.slane %v448, 1
      %v1016 = vsel %vm1007, %v1013, %v1015
      %v1017 = vrot.slane %v449, 1
      %v1018 = vsel %vm1007, %v1015, %v1017
      %v1019 = vrot.slane %v450, 1
      %v1020 = vsel %vm1007, %v1017, %v1019
      %v1021 = vrot.slane %v451, 1
      %v1022 = vsel %vm1007, %v1019, %v1021
      %v1023 = vrot.slane %v452, 1
      %v1024 = vsel %vm1007, %v1021, %v1023
      %v1025 = vrot.slane %v453, 1
      %v1026 = vsel %vm1007, %v1023, %v1025
      %v1027 = vrot.slane %v454, 1
      %v1028 = vsel %vm1007, %v1025, %v1027
      %v1029 = vrot.slane %v455, 1
      %v1030 = vsel %vm1007, %v1027, %v1029
      %v1031 = vrot.slane %v456, 1
      %v1032 = vsel %vm1007, %v1029, %v1031
      %v1062 = vunpack.c.l.b16 %v978
      %v1063 = vunpack.c.l.b16 %v979
      %v1064 = vunpack.c.l.b16 %v980
      %v1065 = vunpack.c.l.b16 %v981
      %v1066 = vunpack.c.l.b16 %v982
      %v1067 = vunpack.c.l.b16 %v983
      %v1068 = vunpack.c.l.b16 %v984
      %v1069 = vunpack.c.l.b16 %v985
      %v1070 = vunpack.c.l.b16 %v986
      %v1071 = vunpack.c.l.b16 %v987
      %v1072 = vunpack.c.l.b16 %v988
      %v1073 = vunpack.c.l.b16 %v989
      %v1074 = vunpack.c.l.b16 %v990
      %v1075 = vunpack.c.l.b16 %v991
      %v1076 = vunpack.c.l.b16 %v992
      %v1077 = vunpack.c.l.b16 %v993
      %v1078 = vpack.c.b16 %v1063, %v1062
      %v1079 = vpack.c.b16 %v1065, %v1064
      %v1080 = vpack.c.b16 %v1067, %v1066
      %v1081 = vpack.c.b16 %v1069, %v1068
      %v1082 = vpack.c.b16 %v1071, %v1070
      %v1083 = vpack.c.b16 %v1073, %v1072
      %v1084 = vpack.c.b16 %v1075, %v1074
      %v1085 = vpack.c.b16 %v1077, %v1076
      %1094 = vmatprep.subr.bf16.mxu0 0
      %1095 = vmatpush1.bf16.msra.mxu0 %v1078
      %1096 = vmatprep.subr.bf16.mxu0 0
      %1097 = vmatpush1.bf16.msra.mxu0 %v1079
      %1098 = vmatprep.subr.bf16.mxu0 0
      %1099 = vmatpush1.bf16.msra.mxu0 %v1080
      %1100 = vmatprep.subr.bf16.mxu0 0
      %1101 = vmatpush1.bf16.msra.mxu0 %v1081
      %1102 = vmatprep.subr.bf16.mxu0 0
      %1103 = vmatpush1.bf16.msra.mxu0 %v1082
      %1104 = vmatprep.subr.bf16.mxu0 0
      %1105 = vmatpush1.bf16.msra.mxu0 %v1083
      %1106 = vmatprep.subr.bf16.mxu0 0
      %1107 = vmatpush1.bf16.msra.mxu0 %v1084
      %1108 = vmatprep.subr.bf16.mxu0 0
      %1109 = vmatpush1.bf16.msra.mxu0 %v1085
      %1110 = vmatprep.subr.bf16.mxu0 0
      %1111 = vmatpush1.bf16.msra.mxu0 0
      %1112 = vmatprep.subr.bf16.mxu0 0
      %1113 = vmatpush1.bf16.msra.mxu0 0
      %1114 = vmatprep.subr.bf16.mxu0 0
      %1115 = vmatpush1.bf16.msra.mxu0 0
      %1116 = vmatprep.subr.bf16.mxu0 0
      %1117 = vmatpush1.bf16.msra.mxu0 0
      %1118 = vmatprep.subr.bf16.mxu0 0
      %1119 = vmatpush1.bf16.msra.mxu0 0
      %1120 = vmatprep.subr.bf16.mxu0 0
      %1121 = vmatpush1.bf16.msra.mxu0 0
      %1122 = vmatprep.subr.bf16.mxu0 0
      %1123 = vmatpush1.bf16.msra.mxu0 0
      %1124 = vmatprep.subr.bf16.mxu0 0
      %1125 = vmatpush1.bf16.msra.mxu0 0
      %1126 = vmatprep.mubr.bf16.mxu0 0
      %1127 = vmatmul.mubr.bf16.gmra.mrb[0].mxu0 %v1010
      %v1128 = vpop.f32.mrb[0].mxu0
      %v1129 = vadd.f32 0.0, %v1128
      %v1130 = vpop.f32.mrb[0].mxu0
      %v1131 = vpop.f32.mrb[0].mxu0
      %v1132 = vadd.f32 0.0, %v1131
      %v1133 = vpop.f32.mrb[0].mxu0
      %1134 = vmatprep.mubr.bf16.mxu0 0
      %1135 = vmatmul.mubr.bf16.gmra.mrb[0].mxu0 %v1012
      %v1136 = vpop.f32.mrb[0].mxu0
      %v1137 = vadd.f32 0.0, %v1136
      %v1138 = vpop.f32.mrb[0].mxu0
      %v1139 = vpop.f32.mrb[0].mxu0
      %v1140 = vadd.f32 0.0, %v1139
      %v1141 = vpop.f32.mrb[0].mxu0
      %1142 = vmatprep.mubr.bf16.mxu0 0
      %1143 = vmatmul.mubr.bf16.gmra.mrb[0].mxu0 %v1014
      %v1144 = vpop.f32.mrb[0].mxu0
      %v1145 = vadd.f32 0.0, %v1144
      %v1146 = vpop.f32.mrb[0].mxu0
      %v1147 = vpop.f32.mrb[0].mxu0
      %v1148 = vadd.f32 0.0, %v1147
      %v1149 = vpop.f32.mrb[0].mxu0
      %1150 = vmatprep.mubr.bf16.mxu0 0
      %1151 = vmatmul.mubr.bf16.gmra.mrb[0].mxu0 %v1016
      %v1152 = vpop.f32.mrb[0].mxu0
      %v1153 = vadd.f32 0.0, %v1152
      %v1154 = vpop.f32.mrb[0].mxu0
      %v1155 = vpop.f32.mrb[0].mxu0
      %v1156 = vadd.f32 0.0, %v1155
      %v1157 = vpop.f32.mrb[0].mxu0
      %1158 = vmatprep.mubr.bf16.mxu0 0
      %1159 = vmatmul.mubr.bf16.gmra.mrb[0].mxu0 %v1018
      %v1160 = vpop.f32.mrb[0].mxu0
      %v1161 = vadd.f32 0.0, %v1160
      %v1162 = vpop.f32.mrb[0].mxu0
      %v1163 = vpop.f32.mrb[0].mxu0
      %v1164 = vadd.f32 0.0, %v1163
      %v1165 = vpop.f32.mrb[0].mxu0
      %1166 = vmatprep.mubr.bf16.mxu0 0
      %1167 = vmatmul.mubr.bf16.gmra.mrb[0].mxu0 %v1020
      %v1168 = vpop.f32.mrb[0].mxu0
      %v1169 = vadd.f32 0.0, %v1168
      %v1170 = vpop.f32.mrb[0].mxu0
      %v1171 = vpop.f32.mrb[0].mxu0
      %v1172 = vadd.f32 0.0, %v1171
      %v1173 = vpop.f32.mrb[0].mxu0
      %1174 = vmatprep.mubr.bf16.mxu0 0
      %1175 = vmatmul.mubr.bf16.gmra.mrb[0].mxu0 %v1022
      %v1176 = vpop.f32.mrb[0].mxu0
      %v1177 = vadd.f32 0.0, %v1176
      %v1178 = vpop.f32.mrb[0].mxu0
      %v1179 = vpop.f32.mrb[0].mxu0
      %v1180 = vadd.f32 0.0, %v1179
      %v1181 = vpop.f32.mrb[0].mxu0
      %1182 = vmatprep.mubr.bf16.mxu0 0
      %1183 = vmatmul.mubr.bf16.gmra.mrb[0].mxu0 %v1024
      %v1184 = vpop.f32.mrb[0].mxu0
      %v1185 = vadd.f32 0.0, %v1184
      %v1186 = vpop.f32.mrb[0].mxu0
      %v1187 = vpop.f32.mrb[0].mxu0
      %v1188 = vadd.f32 0.0, %v1187
      %v1189 = vpop.f32.mrb[0].mxu0
      %1190 = vmatprep.mubr.bf16.mxu0 0
      %1191 = vmatmul.mubr.bf16.gmra.mrb[0].mxu0 %v1026
      %v1192 = vpop.f32.mrb[0].mxu0
      %v1193 = vadd.f32 0.0, %v1192
      %v1194 = vpop.f32.mrb[0].mxu0
      %v1195 = vpop.f32.mrb[0].mxu0
      %v1196 = vadd.f32 0.0, %v1195
      %v1197 = vpop.f32.mrb[0].mxu0
      %1198 = vmatprep.mubr.bf16.mxu0 0
      %1199 = vmatmul.mubr.bf16.gmra.mrb[0].mxu0 %v1028
      %v1200 = vpop.f32.mrb[0].mxu0
      %v1201 = vadd.f32 0.0, %v1200
      %v1202 = vpop.f32.mrb[0].mxu0
      %v1203 = vpop.f32.mrb[0].mxu0
      %v1204 = vadd.f32 0.0, %v1203
      %v1205 = vpop.f32.mrb[0].mxu0
      %1206 = vmatprep.mubr.bf16.mxu0 0
      %1207 = vmatmul.mubr.bf16.gmra.mrb[0].mxu0 %v1030
      %v1208 = vpop.f32.mrb[0].mxu0
      %v1209 = vadd.f32 0.0, %v1208
      %v1210 = vpop.f32.mrb[0].mxu0
      %v1211 = vpop.f32.mrb[0].mxu0
      %v1212 = vadd.f32 0.0, %v1211
      %v1213 = vpop.f32.mrb[0].mxu0
      %1214 = vmatprep.mubr.bf16.mxu0 0
      %1215 = vmatmul.mubr.bf16.gmra.mrb[0].mxu0 %v1032
      %v1216 = vpop.f32.mrb[0].mxu0
      %v1217 = vadd.f32 0.0, %v1216
      %v1218 = vpop.f32.mrb[0].mxu0
      %v1219 = vpop.f32.mrb[0].mxu0
      %v1220 = vadd.f32 0.0, %v1219
      %v1221 = vpop.f32.mrb[0].mxu0
      %1222 = vmatprep.mubr.bf16.mxu0 0
      %1223 = vmatmul.mubr.bf16.gmra.mrb[0].mxu0 %v1031
      %v1224 = vpop.f32.mrb[0].mxu0
      %v1225 = vadd.f32 0.0, %v1224
      %v1226 = vpop.f32.mrb[0].mxu0
      %v1227 = vpop.f32.mrb[0].mxu0
      %v1228 = vpop.f32.mrb[0].mxu0
      %1229 = vdwg.mxu0
      %v1230 = vadd.f32 %v876, %v1129
      %v1231 = vadd.f32 %v879, %v1132
      %v1232 = vadd.f32 %v884, %v1137
      %v1233 = vadd.f32 %v887, %v1140
      %v1234 = vadd.f32 %v892, %v1145
      %v1235 = vadd.f32 %v895, %v1148
      %v1236 = vadd.f32 %v900, %v1153
      %v1237 = vadd.f32 %v903, %v1156
      %v1238 = vadd.f32 %v908, %v1161
      %v1239 = vadd.f32 %v911, %v1164
      %v1240 = vadd.f32 %v916, %v1169
      %v1241 = vadd.f32 %v919, %v1172
      %v1242 = vadd.f32 %v924, %v1177
      %v1243 = vadd.f32 %v927, %v1180
      %v1244 = vadd.f32 %v932, %v1185
      %v1245 = vadd.f32 %v935, %v1188
      %v1246 = vadd.f32 %v940, %v1193
      %v1247 = vadd.f32 %v943, %v1196
      %v1248 = vadd.f32 %v948, %v1201
      %v1249 = vadd.f32 %v951, %v1204
      %v1250 = vadd.f32 %v956, %v1209
      %v1251 = vadd.f32 %v959, %v1212
      %v1252 = vadd.f32 %v964, %v1217
      %v1253 = vadd.f32 %v967, %v1220
      %v1254 = vadd.f32 %v972, %v1225
      %s1255 = scalar_lea.vmem %s1, 192
      %v1256 = vld [vmem:[%s1255] sm:$0xf]
      %v1257 = vld [vmem:[%s1255 + $0x4] sm:$0xf]
      %v1258 = vld [vmem:[%s1255 + $0x8] sm:$0xf]
      %v1259 = vld [vmem:[%s1255 + $0xc] sm:$0xf]
      %v1260 = vld [vmem:[%s1255 + $0x10] sm:$0xf]
      %v1261 = vld [vmem:[%s1255 + $0x14] sm:$0xf]
      %v1262 = vld [vmem:[%s1255 + $0x18] sm:$0xf]
      %v1263 = vld [vmem:[%s1255 + $0x1c] sm:$0xf]
      %v1264 = vld [vmem:[%s1255 + $0x20] sm:$0xf]
      %v1265 = vld [vmem:[%s1255 + $0x24] sm:$0xf]
      %v1266 = vld [vmem:[%s1255 + $0x28] sm:$0xf]
      %v1267 = vld [vmem:[%s1255 + $0x2c] sm:$0xf]
      %v1268 = vld [vmem:[%s1255 + $0x30] sm:$0xf]
      %v1269 = vld [vmem:[%s1255 + $0x34] sm:$0xf]
      %v1270 = vld [vmem:[%s1255 + $0x38] sm:$0xf]
      %v1271 = vld [vmem:[%s1255 + $0x3c] sm:$0xf]
      %vm1273 = vcmask 1045504
      %v1274 = vrot.slane %v445, 2
      %v1275 = vrot.slane %v446, 2
      %v1276 = vsel %vm1273, %v1274, %v1275
      %v1277 = vrot.slane %v447, 2
      %v1278 = vsel %vm1273, %v1275, %v1277
      %v1279 = vrot.slane %v448, 2
      %v1280 = vsel %vm1273, %v1277, %v1279
      %v1281 = vrot.slane %v449, 2
      %v1282 = vsel %vm1273, %v1279, %v1281
      %v1283 = vrot.slane %v450, 2
      %v1284 = vsel %vm1273, %v1281, %v1283
      %v1285 = vrot.slane %v451, 2
      %v1286 = vsel %vm1273, %v1283, %v1285
      %v1287 = vrot.slane %v452, 2
      %v1288 = vsel %vm1273, %v1285, %v1287
      %v1289 = vrot.slane %v453, 2
      %v1290 = vsel %vm1273, %v1287, %v1289
      %v1291 = vrot.slane %v454, 2
      %v1292 = vsel %vm1273, %v1289, %v1291
      %v1293 = vrot.slane %v455, 2
      %v1294 = vsel %vm1273, %v1291, %v1293
      %v1295 = vrot.slane %v456, 2
      %v1296 = vsel %vm1273, %v1293, %v1295
      %v1297 = vrot.slane %v457, 2
      %v1298 = vsel %vm1273, %v1295, %v1297
      %v1328 = vunpack.c.l.b16 %v1256
      %v1329 = vunpack.c.l.b16 %v1257
      %v1330 = vunpack.c.l.b16 %v1258
      %v1331 = vunpack.c.l.b16 %v1259
      %v1332 = vunpack.c.l.b16 %v1260
      %v1333 = vunpack.c.l.b16 %v1261
      %v1334 = vunpack.c.l.b16 %v1262
      %v1335 = vunpack.c.l.b16 %v1263
      %v1336 = vunpack.c.l.b16 %v1264
      %v1337 = vunpack.c.l.b16 %v1265
      %v1338 = vunpack.c.l.b16 %v1266
      %v1339 = vunpack.c.l.b16 %v1267
      %v1340 = vunpack.c.l.b16 %v1268
      %v1341 = vunpack.c.l.b16 %v1269
      %v1342 = vunpack.c.l.b16 %v1270
      %v1343 = vunpack.c.l.b16 %v1271
      %v1344 = vpack.c.b16 %v1329, %v1328
      %v1345 = vpack.c.b16 %v1331, %v1330
      %v1346 = vpack.c.b16 %v1333, %v1332
      %v1347 = vpack.c.b16 %v1335, %v1334
      %v1348 = vpack.c.b16 %v1337, %v1336
      %v1349 = vpack.c.b16 %v1339, %v1338
      %v1350 = vpack.c.b16 %v1341, %v1340
      %v1351 = vpack.c.b16 %v1343, %v1342
      %1360 = vmatprep.subr.bf16.mxu0 0
      %1361 = vmatpush1.bf16.msra.mxu0 %v1344
      %1362 = vmatprep.subr.bf16.mxu0 0
      %1363 = vmatpush1.bf16.msra.mxu0 %v1345
      %1364 = vmatprep.subr.bf16.mxu0 0
      %1365 = vmatpush1.bf16.msra.mxu0 %v1346
      %1366 = vmatprep.subr.bf16.mxu0 0
      %1367 = vmatpush1.bf16.msra.mxu0 %v1347
      %1368 = vmatprep.subr.bf16.mxu0 0
      %1369 = vmatpush1.bf16.msra.mxu0 %v1348
      %1370 = vmatprep.subr.bf16.mxu0 0
      %1371 = vmatpush1.bf16.msra.mxu0 %v1349
      %1372 = vmatprep.subr.bf16.mxu0 0
      %1373 = vmatpush1.bf16.msra.mxu0 %v1350
      %1374 = vmatprep.subr.bf16.mxu0 0
      %1375 = vmatpush1.bf16.msra.mxu0 %v1351
      %1376 = vmatprep.subr.bf16.mxu0 0
      %1377 = vmatpush1.bf16.msra.mxu0 0
      %1378 = vmatprep.subr.bf16.mxu0 0
      %1379 = vmatpush1.bf16.msra.mxu0 0
      %1380 = vmatprep.subr.bf16.mxu0 0
      %1381 = vmatpush1.bf16.msra.mxu0 0
      %1382 = vmatprep.subr.bf16.mxu0 0
      %1383 = vmatpush1.bf16.msra.mxu0 0
      %1384 = vmatprep.subr.bf16.mxu0 0
      %1385 = vmatpush1.bf16.msra.mxu0 0
      %1386 = vmatprep.subr.bf16.mxu0 0
      %1387 = vmatpush1.bf16.msra.mxu0 0
      %1388 = vmatprep.subr.bf16.mxu0 0
      %1389 = vmatpush1.bf16.msra.mxu0 0
      %1390 = vmatprep.subr.bf16.mxu0 0
      %1391 = vmatpush1.bf16.msra.mxu0 0
      %1392 = vmatprep.mubr.bf16.mxu0 0
      %1393 = vmatmul.mubr.bf16.gmra.mrb[0].mxu0 %v1276
      %v1394 = vpop.f32.mrb[0].mxu0
      %v1395 = vadd.f32 0.0, %v1394
      %v1396 = vpop.f32.mrb[0].mxu0
      %v1397 = vpop.f32.mrb[0].mxu0
      %v1398 = vadd.f32 0.0, %v1397
      %v1399 = vpop.f32.mrb[0].mxu0
      %1400 = vmatprep.mubr.bf16.mxu0 0
      %1401 = vmatmul.mubr.bf16.gmra.mrb[0].mxu0 %v1278
      %v1402 = vpop.f32.mrb[0].mxu0
      %v1403 = vadd.f32 0.0, %v1402
      %v1404 = vpop.f32.mrb[0].mxu0
      %v1405 = vpop.f32.mrb[0].mxu0
      %v1406 = vadd.f32 0.0, %v1405
      %v1407 = vpop.f32.mrb[0].mxu0
      %1408 = vmatprep.mubr.bf16.mxu0 0
      %1409 = vmatmul.mubr.bf16.gmra.mrb[0].mxu0 %v1280
      %v1410 = vpop.f32.mrb[0].mxu0
      %v1411 = vadd.f32 0.0, %v1410
      %v1412 = vpop.f32.mrb[0].mxu0
      %v1413 = vpop.f32.mrb[0].mxu0
      %v1414 = vadd.f32 0.0, %v1413
      %v1415 = vpop.f32.mrb[0].mxu0
      %1416 = vmatprep.mubr.bf16.mxu0 0
      %1417 = vmatmul.mubr.bf16.gmra.mrb[0].mxu0 %v1282
      %v1418 = vpop.f32.mrb[0].mxu0
      %v1419 = vadd.f32 0.0, %v1418
      %v1420 = vpop.f32.mrb[0].mxu0
      %v1421 = vpop.f32.mrb[0].mxu0
      %v1422 = vadd.f32 0.0, %v1421
      %v1423 = vpop.f32.mrb[0].mxu0
      %1424 = vmatprep.mubr.bf16.mxu0 0
      %1425 = vmatmul.mubr.bf16.gmra.mrb[0].mxu0 %v1284
      %v1426 = vpop.f32.mrb[0].mxu0
      %v1427 = vadd.f32 0.0, %v1426
      %v1428 = vpop.f32.mrb[0].mxu0
      %v1429 = vpop.f32.mrb[0].mxu0
      %v1430 = vadd.f32 0.0, %v1429
      %v1431 = vpop.f32.mrb[0].mxu0
      %1432 = vmatprep.mubr.bf16.mxu0 0
      %1433 = vmatmul.mubr.bf16.gmra.mrb[0].mxu0 %v1286
      %v1434 = vpop.f32.mrb[0].mxu0
      %v1435 = vadd.f32 0.0, %v1434
      %v1436 = vpop.f32.mrb[0].mxu0
      %v1437 = vpop.f32.mrb[0].mxu0
      %v1438 = vadd.f32 0.0, %v1437
      %v1439 = vpop.f32.mrb[0].mxu0
      %1440 = vmatprep.mubr.bf16.mxu0 0
      %1441 = vmatmul.mubr.bf16.gmra.mrb[0].mxu0 %v1288
      %v1442 = vpop.f32.mrb[0].mxu0
      %v1443 = vadd.f32 0.0, %v1442
      %v1444 = vpop.f32.mrb[0].mxu0
      %v1445 = vpop.f32.mrb[0].mxu0
      %v1446 = vadd.f32 0.0, %v1445
      %v1447 = vpop.f32.mrb[0].mxu0
      %1448 = vmatprep.mubr.bf16.mxu0 0
      %1449 = vmatmul.mubr.bf16.gmra.mrb[0].mxu0 %v1290
      %v1450 = vpop.f32.mrb[0].mxu0
      %v1451 = vadd.f32 0.0, %v1450
      %v1452 = vpop.f32.mrb[0].mxu0
      %v1453 = vpop.f32.mrb[0].mxu0
      %v1454 = vadd.f32 0.0, %v1453
      %v1455 = vpop.f32.mrb[0].mxu0
      %1456 = vmatprep.mubr.bf16.mxu0 0
      %1457 = vmatmul.mubr.bf16.gmra.mrb[0].mxu0 %v1292
      %v1458 = vpop.f32.mrb[0].mxu0
      %v1459 = vadd.f32 0.0, %v1458
      %v1460 = vpop.f32.mrb[0].mxu0
      %v1461 = vpop.f32.mrb[0].mxu0
      %v1462 = vadd.f32 0.0, %v1461
      %v1463 = vpop.f32.mrb[0].mxu0
      %1464 = vmatprep.mubr.bf16.mxu0 0
      %1465 = vmatmul.mubr.bf16.gmra.mrb[0].mxu0 %v1294
      %v1466 = vpop.f32.mrb[0].mxu0
      %v1467 = vadd.f32 0.0, %v1466
      %v1468 = vpop.f32.mrb[0].mxu0
      %v1469 = vpop.f32.mrb[0].mxu0
      %v1470 = vadd.f32 0.0, %v1469
      %v1471 = vpop.f32.mrb[0].mxu0
      %1472 = vmatprep.mubr.bf16.mxu0 0
      %1473 = vmatmul.mubr.bf16.gmra.mrb[0].mxu0 %v1296
      %v1474 = vpop.f32.mrb[0].mxu0
      %v1475 = vadd.f32 0.0, %v1474
      %v1476 = vpop.f32.mrb[0].mxu0
      %v1477 = vpop.f32.mrb[0].mxu0
      %v1478 = vadd.f32 0.0, %v1477
      %v1479 = vpop.f32.mrb[0].mxu0
      %1480 = vmatprep.mubr.bf16.mxu0 0
      %1481 = vmatmul.mubr.bf16.gmra.mrb[0].mxu0 %v1298
      %v1482 = vpop.f32.mrb[0].mxu0
      %v1483 = vadd.f32 0.0, %v1482
      %v1484 = vpop.f32.mrb[0].mxu0
      %v1485 = vpop.f32.mrb[0].mxu0
      %v1486 = vadd.f32 0.0, %v1485
      %v1487 = vpop.f32.mrb[0].mxu0
      %1488 = vmatprep.mubr.bf16.mxu0 0
      %1489 = vmatmul.mubr.bf16.gmra.mrb[0].mxu0 %v1297
      %v1490 = vpop.f32.mrb[0].mxu0
      %v1491 = vadd.f32 0.0, %v1490
      %v1492 = vpop.f32.mrb[0].mxu0
      %v1493 = vpop.f32.mrb[0].mxu0
      %v1494 = vpop.f32.mrb[0].mxu0
      %1495 = vdwg.mxu0
      %v1496 = vadd.f32 %v1230, %v1395
      %v1497 = vadd.f32 %v1231, %v1398
      %v1498 = vadd.f32 %v1232, %v1403
      %v1499 = vadd.f32 %v1233, %v1406
      %v1500 = vadd.f32 %v1234, %v1411
      %v1501 = vadd.f32 %v1235, %v1414
      %v1502 = vadd.f32 %v1236, %v1419
      %v1503 = vadd.f32 %v1237, %v1422
      %v1504 = vadd.f32 %v1238, %v1427
      %v1505 = vadd.f32 %v1239, %v1430
      %v1506 = vadd.f32 %v1240, %v1435
      %v1507 = vadd.f32 %v1241, %v1438
      %v1508 = vadd.f32 %v1242, %v1443
      %v1509 = vadd.f32 %v1243, %v1446
      %v1510 = vadd.f32 %v1244, %v1451
      %v1511 = vadd.f32 %v1245, %v1454
      %v1512 = vadd.f32 %v1246, %v1459
      %v1513 = vadd.f32 %v1247, %v1462
      %v1514 = vadd.f32 %v1248, %v1467
      %v1515 = vadd.f32 %v1249, %v1470
      %v1516 = vadd.f32 %v1250, %v1475
      %v1517 = vadd.f32 %v1251, %v1478
      %v1518 = vadd.f32 %v1252, %v1483
      %v1519 = vadd.f32 %v1253, %v1486
      %v1520 = vadd.f32 %v1254, %v1491
      %s1521 = scalar_lea.vmem %s1, 256
      %v1522 = vld [vmem:[%s1521] sm:$0xf]
      %v1523 = vld [vmem:[%s1521 + $0x4] sm:$0xf]
      %v1524 = vld [vmem:[%s1521 + $0x8] sm:$0xf]
      %v1525 = vld [vmem:[%s1521 + $0xc] sm:$0xf]
      %v1526 = vld [vmem:[%s1521 + $0x10] sm:$0xf]
      %v1527 = vld [vmem:[%s1521 + $0x14] sm:$0xf]
      %v1528 = vld [vmem:[%s1521 + $0x18] sm:$0xf]
      %v1529 = vld [vmem:[%s1521 + $0x1c] sm:$0xf]
      %v1530 = vld [vmem:[%s1521 + $0x20] sm:$0xf]
      %v1531 = vld [vmem:[%s1521 + $0x24] sm:$0xf]
      %v1532 = vld [vmem:[%s1521 + $0x28] sm:$0xf]
      %v1533 = vld [vmem:[%s1521 + $0x2c] sm:$0xf]
      %v1534 = vld [vmem:[%s1521 + $0x30] sm:$0xf]
      %v1535 = vld [vmem:[%s1521 + $0x34] sm:$0xf]
      %v1536 = vld [vmem:[%s1521 + $0x38] sm:$0xf]
      %v1537 = vld [vmem:[%s1521 + $0x3c] sm:$0xf]
      %vm1538 = vsmask.f32 5376
      %v1539 = vrot.slane %v505, 2
      %v1540 = vrot.slane %v501, 3
      %v1541 = vor.u32 %v1539, %v1540
      %v1542 = vrot.slane %v513, 2
      %v1543 = vrot.slane %v509, 3
      %v1544 = vor.u32 %v1542, %v1543
      %v1545 = vsel %vm1538, %v1541, %v1544
      %v1546 = vrot.slane %v521, 2
      %v1547 = vrot.slane %v517, 3
      %v1548 = vor.u32 %v1546, %v1547
      %v1549 = vsel %vm1538, %v1544, %v1548
      %v1550 = vrot.slane %v529, 2
      %v1551 = vrot.slane %v525, 3
      %v1552 = vor.u32 %v1550, %v1551
      %v1553 = vsel %vm1538, %v1548, %v1552
      %v1554 = vrot.slane %v537, 2
      %v1555 = vrot.slane %v533, 3
      %v1556 = vor.u32 %v1554, %v1555
      %v1557 = vsel %vm1538, %v1552, %v1556
      %v1558 = vrot.slane %v545, 2
      %v1559 = vrot.slane %v541, 3
      %v1560 = vor.u32 %v1558, %v1559
      %v1561 = vsel %vm1538, %v1556, %v1560
      %v1562 = vrot.slane %v553, 2
      %v1563 = vrot.slane %v549, 3
      %v1564 = vor.u32 %v1562, %v1563
      %v1565 = vsel %vm1538, %v1560, %v1564
      %v1566 = vrot.slane %v561, 2
      %v1567 = vrot.slane %v557, 3
      %v1568 = vor.u32 %v1566, %v1567
      %v1569 = vsel %vm1538, %v1564, %v1568
      %v1570 = vrot.slane %v569, 2
      %v1571 = vrot.slane %v565, 3
      %v1572 = vor.u32 %v1570, %v1571
      %v1573 = vsel %vm1538, %v1568, %v1572
      %v1574 = vrot.slane %v577, 2
      %v1575 = vrot.slane %v573, 3
      %v1576 = vor.u32 %v1574, %v1575
      %v1577 = vsel %vm1538, %v1572, %v1576
      %v1578 = vrot.slane %v585, 2
      %v1579 = vrot.slane %v581, 3
      %v1580 = vor.u32 %v1578, %v1579
      %v1581 = vsel %vm1538, %v1576, %v1580
      %v1582 = vrot.slane %v593, 2
      %v1583 = vrot.slane %v589, 3
      %v1584 = vor.u32 %v1582, %v1583
      %v1585 = vsel %vm1538, %v1580, %v1584
      %v1587 = vshrl.u32 %v457, 16
      %v1589 = vrot.slane %v1587, 2
      %v1590 = vshll.u32 %v457, 16
      %v1592 = vrot.slane %v1590, 3
      %v1593 = vor.u32 %v1589, %v1592
      %v1594 = vsel %vm1538, %v1584, %v1593
      %v1624 = vunpack.c.l.b16 %v1522
      %v1625 = vunpack.c.l.b16 %v1523
      %v1626 = vunpack.c.l.b16 %v1524
      %v1627 = vunpack.c.l.b16 %v1525
      %v1628 = vunpack.c.l.b16 %v1526
      %v1629 = vunpack.c.l.b16 %v1527
      %v1630 = vunpack.c.l.b16 %v1528
      %v1631 = vunpack.c.l.b16 %v1529
      %v1632 = vunpack.c.l.b16 %v1530
      %v1633 = vunpack.c.l.b16 %v1531
      %v1634 = vunpack.c.l.b16 %v1532
      %v1635 = vunpack.c.l.b16 %v1533
      %v1636 = vunpack.c.l.b16 %v1534
      %v1637 = vunpack.c.l.b16 %v1535
      %v1638 = vunpack.c.l.b16 %v1536
      %v1639 = vunpack.c.l.b16 %v1537
      %v1640 = vpack.c.b16 %v1625, %v1624
      %v1641 = vpack.c.b16 %v1627, %v1626
      %v1642 = vpack.c.b16 %v1629, %v1628
      %v1643 = vpack.c.b16 %v1631, %v1630
      %v1644 = vpack.c.b16 %v1633, %v1632
      %v1645 = vpack.c.b16 %v1635, %v1634
      %v1646 = vpack.c.b16 %v1637, %v1636
      %v1647 = vpack.c.b16 %v1639, %v1638
      %1656 = vmatprep.subr.bf16.mxu0 0
      %1657 = vmatpush1.bf16.msra.mxu0 %v1640
      %1658 = vmatprep.subr.bf16.mxu0 0
      %1659 = vmatpush1.bf16.msra.mxu0 %v1641
      %1660 = vmatprep.subr.bf16.mxu0 0
      %1661 = vmatpush1.bf16.msra.mxu0 %v1642
      %1662 = vmatprep.subr.bf16.mxu0 0
      %1663 = vmatpush1.bf16.msra.mxu0 %v1643
      %1664 = vmatprep.subr.bf16.mxu0 0
      %1665 = vmatpush1.bf16.msra.mxu0 %v1644
      %1666 = vmatprep.subr.bf16.mxu0 0
      %1667 = vmatpush1.bf16.msra.mxu0 %v1645
      %1668 = vmatprep.subr.bf16.mxu0 0
      %1669 = vmatpush1.bf16.msra.mxu0 %v1646
      %1670 = vmatprep.subr.bf16.mxu0 0
      %1671 = vmatpush1.bf16.msra.mxu0 %v1647
      %1672 = vmatprep.subr.bf16.mxu0 0
      %1673 = vmatpush1.bf16.msra.mxu0 0
      %1674 = vmatprep.subr.bf16.mxu0 0
      %1675 = vmatpush1.bf16.msra.mxu0 0
      %1676 = vmatprep.subr.bf16.mxu0 0
      %1677 = vmatpush1.bf16.msra.mxu0 0
      %1678 = vmatprep.subr.bf16.mxu0 0
      %1679 = vmatpush1.bf16.msra.mxu0 0
      %1680 = vmatprep.subr.bf16.mxu0 0
      %1681 = vmatpush1.bf16.msra.mxu0 0
      %1682 = vmatprep.subr.bf16.mxu0 0
      %1683 = vmatpush1.bf16.msra.mxu0 0
      %1684 = vmatprep.subr.bf16.mxu0 0
      %1685 = vmatpush1.bf16.msra.mxu0 0
      %1686 = vmatprep.subr.bf16.mxu0 0
      %1687 = vmatpush1.bf16.msra.mxu0 0
      %1688 = vmatprep.mubr.bf16.mxu0 0
      %1689 = vmatmul.mubr.bf16.gmra.mrb[0].mxu0 %v1545
      %v1690 = vpop.f32.mrb[0].mxu0
      %v1691 = vadd.f32 0.0, %v1690
      %v1692 = vpop.f32.mrb[0].mxu0
      %v1693 = vpop.f32.mrb[0].mxu0
      %v1694 = vadd.f32 0.0, %v1693
      %v1695 = vpop.f32.mrb[0].mxu0
      %1696 = vmatprep.mubr.bf16.mxu0 0
      %1697 = vmatmul.mubr.bf16.gmra.mrb[0].mxu0 %v1549
      %v1698 = vpop.f32.mrb[0].mxu0
      %v1699 = vadd.f32 0.0, %v1698
      %v1700 = vpop.f32.mrb[0].mxu0
      %v1701 = vpop.f32.mrb[0].mxu0
      %v1702 = vadd.f32 0.0, %v1701
      %v1703 = vpop.f32.mrb[0].mxu0
      %1704 = vmatprep.mubr.bf16.mxu0 0
      %1705 = vmatmul.mubr.bf16.gmra.mrb[0].mxu0 %v1553
      %v1706 = vpop.f32.mrb[0].mxu0
      %v1707 = vadd.f32 0.0, %v1706
      %v1708 = vpop.f32.mrb[0].mxu0
      %v1709 = vpop.f32.mrb[0].mxu0
      %v1710 = vadd.f32 0.0, %v1709
      %v1711 = vpop.f32.mrb[0].mxu0
      %1712 = vmatprep.mubr.bf16.mxu0 0
      %1713 = vmatmul.mubr.bf16.gmra.mrb[0].mxu0 %v1557
      %v1714 = vpop.f32.mrb[0].mxu0
      %v1715 = vadd.f32 0.0, %v1714
      %v1716 = vpop.f32.mrb[0].mxu0
      %v1717 = vpop.f32.mrb[0].mxu0
      %v1718 = vadd.f32 0.0, %v1717
      %v1719 = vpop.f32.mrb[0].mxu0
      %1720 = vmatprep.mubr.bf16.mxu0 0
      %1721 = vmatmul.mubr.bf16.gmra.mrb[0].mxu0 %v1561
      %v1722 = vpop.f32.mrb[0].mxu0
      %v1723 = vadd.f32 0.0, %v1722
      %v1724 = vpop.f32.mrb[0].mxu0
      %v1725 = vpop.f32.mrb[0].mxu0
      %v1726 = vadd.f32 0.0, %v1725
      %v1727 = vpop.f32.mrb[0].mxu0
      %1728 = vmatprep.mubr.bf16.mxu0 0
      %1729 = vmatmul.mubr.bf16.gmra.mrb[0].mxu0 %v1565
      %v1730 = vpop.f32.mrb[0].mxu0
      %v1731 = vadd.f32 0.0, %v1730
      %v1732 = vpop.f32.mrb[0].mxu0
      %v1733 = vpop.f32.mrb[0].mxu0
      %v1734 = vadd.f32 0.0, %v1733
      %v1735 = vpop.f32.mrb[0].mxu0
      %1736 = vmatprep.mubr.bf16.mxu0 0
      %1737 = vmatmul.mubr.bf16.gmra.mrb[0].mxu0 %v1569
      %v1738 = vpop.f32.mrb[0].mxu0
      %v1739 = vadd.f32 0.0, %v1738
      %v1740 = vpop.f32.mrb[0].mxu0
      %v1741 = vpop.f32.mrb[0].mxu0
      %v1742 = vadd.f32 0.0, %v1741
      %v1743 = vpop.f32.mrb[0].mxu0
      %1744 = vmatprep.mubr.bf16.mxu0 0
      %1745 = vmatmul.mubr.bf16.gmra.mrb[0].mxu0 %v1573
      %v1746 = vpop.f32.mrb[0].mxu0
      %v1747 = vadd.f32 0.0, %v1746
      %v1748 = vpop.f32.mrb[0].mxu0
      %v1749 = vpop.f32.mrb[0].mxu0
      %v1750 = vadd.f32 0.0, %v1749
      %v1751 = vpop.f32.mrb[0].mxu0
      %1752 = vmatprep.mubr.bf16.mxu0 0
      %1753 = vmatmul.mubr.bf16.gmra.mrb[0].mxu0 %v1577
      %v1754 = vpop.f32.mrb[0].mxu0
      %v1755 = vadd.f32 0.0, %v1754
      %v1756 = vpop.f32.mrb[0].mxu0
      %v1757 = vpop.f32.mrb[0].mxu0
      %v1758 = vadd.f32 0.0, %v1757
      %v1759 = vpop.f32.mrb[0].mxu0
      %1760 = vmatprep.mubr.bf16.mxu0 0
      %1761 = vmatmul.mubr.bf16.gmra.mrb[0].mxu0 %v1581
      %v1762 = vpop.f32.mrb[0].mxu0
      %v1763 = vadd.f32 0.0, %v1762
      %v1764 = vpop.f32.mrb[0].mxu0
      %v1765 = vpop.f32.mrb[0].mxu0
      %v1766 = vadd.f32 0.0, %v1765
      %v1767 = vpop.f32.mrb[0].mxu0
      %1768 = vmatprep.mubr.bf16.mxu0 0
      %1769 = vmatmul.mubr.bf16.gmra.mrb[0].mxu0 %v1585
      %v1770 = vpop.f32.mrb[0].mxu0
      %v1771 = vadd.f32 0.0, %v1770
      %v1772 = vpop.f32.mrb[0].mxu0
      %v1773 = vpop.f32.mrb[0].mxu0
      %v1774 = vadd.f32 0.0, %v1773
      %v1775 = vpop.f32.mrb[0].mxu0
      %1776 = vmatprep.mubr.bf16.mxu0 0
      %1777 = vmatmul.mubr.bf16.gmra.mrb[0].mxu0 %v1594
      %v1778 = vpop.f32.mrb[0].mxu0
      %v1779 = vadd.f32 0.0, %v1778
      %v1780 = vpop.f32.mrb[0].mxu0
      %v1781 = vpop.f32.mrb[0].mxu0
      %v1782 = vadd.f32 0.0, %v1781
      %v1783 = vpop.f32.mrb[0].mxu0
      %1784 = vmatprep.mubr.bf16.mxu0 0
      %1785 = vmatmul.mubr.bf16.gmra.mrb[0].mxu0 %v1593
      %v1786 = vpop.f32.mrb[0].mxu0
      %v1787 = vadd.f32 0.0, %v1786
      %v1788 = vpop.f32.mrb[0].mxu0
      %v1789 = vpop.f32.mrb[0].mxu0
      %v1790 = vpop.f32.mrb[0].mxu0
      %1791 = vdwg.mxu0
      %v1792 = vadd.f32 %v1496, %v1691
      %v1793 = vadd.f32 %v1497, %v1694
      %v1794 = vadd.f32 %v1498, %v1699
      %v1795 = vadd.f32 %v1499, %v1702
      %v1796 = vadd.f32 %v1500, %v1707
      %v1797 = vadd.f32 %v1501, %v1710
      %v1798 = vadd.f32 %v1502, %v1715
      %v1799 = vadd.f32 %v1503, %v1718
      %v1800 = vadd.f32 %v1504, %v1723
      %v1801 = vadd.f32 %v1505, %v1726
      %v1802 = vadd.f32 %v1506, %v1731
      %v1803 = vadd.f32 %v1507, %v1734
      %v1804 = vadd.f32 %v1508, %v1739
      %v1805 = vadd.f32 %v1509, %v1742
      %v1806 = vadd.f32 %v1510, %v1747
      %v1807 = vadd.f32 %v1511, %v1750
      %v1808 = vadd.f32 %v1512, %v1755
      %v1809 = vadd.f32 %v1513, %v1758
      %v1810 = vadd.f32 %v1514, %v1763
      %v1811 = vadd.f32 %v1515, %v1766
      %v1812 = vadd.f32 %v1516, %v1771
      %v1813 = vadd.f32 %v1517, %v1774
      %v1814 = vadd.f32 %v1518, %v1779
      %v1815 = vadd.f32 %v1519, %v1782
      %v1816 = vadd.f32 %v1520, %v1787
      %s1817 = scalar_lea.vmem %s1, 320
      %v1818 = vld [vmem:[%s1817] sm:$0xf]
      %v1819 = vld [vmem:[%s1817 + $0x4] sm:$0xf]
      %v1820 = vld [vmem:[%s1817 + $0x8] sm:$0xf]
      %v1821 = vld [vmem:[%s1817 + $0xc] sm:$0xf]
      %v1822 = vld [vmem:[%s1817 + $0x10] sm:$0xf]
      %v1823 = vld [vmem:[%s1817 + $0x14] sm:$0xf]
      %v1824 = vld [vmem:[%s1817 + $0x18] sm:$0xf]
      %v1825 = vld [vmem:[%s1817 + $0x1c] sm:$0xf]
      %v1826 = vld [vmem:[%s1817 + $0x20] sm:$0xf]
      %v1827 = vld [vmem:[%s1817 + $0x24] sm:$0xf]
      %v1828 = vld [vmem:[%s1817 + $0x28] sm:$0xf]
      %v1829 = vld [vmem:[%s1817 + $0x2c] sm:$0xf]
      %v1830 = vld [vmem:[%s1817 + $0x30] sm:$0xf]
      %v1831 = vld [vmem:[%s1817 + $0x34] sm:$0xf]
      %v1832 = vld [vmem:[%s1817 + $0x38] sm:$0xf]
      %v1833 = vld [vmem:[%s1817 + $0x3c] sm:$0xf]
      %vm1834 = vcmask 1044480
      %v1835 = vrot.slane %v445, 3
      %v1836 = vrot.slane %v446, 3
      %v1837 = vsel %vm1834, %v1835, %v1836
      %v1838 = vrot.slane %v447, 3
      %v1839 = vsel %vm1834, %v1836, %v1838
      %v1840 = vrot.slane %v448, 3
      %v1841 = vsel %vm1834, %v1838, %v1840
      %v1842 = vrot.slane %v449, 3
      %v1843 = vsel %vm1834, %v1840, %v1842
      %v1844 = vrot.slane %v450, 3
      %v1845 = vsel %vm1834, %v1842, %v1844
      %v1846 = vrot.slane %v451, 3
      %v1847 = vsel %vm1834, %v1844, %v1846
      %v1848 = vrot.slane %v452, 3
      %v1849 = vsel %vm1834, %v1846, %v1848
      %v1850 = vrot.slane %v453, 3
      %v1851 = vsel %vm1834, %v1848, %v1850
      %v1852 = vrot.slane %v454, 3
      %v1853 = vsel %vm1834, %v1850, %v1852
      %v1854 = vrot.slane %v455, 3
      %v1855 = vsel %vm1834, %v1852, %v1854
      %v1856 = vrot.slane %v456, 3
      %v1857 = vsel %vm1834, %v1854, %v1856
      %v1858 = vrot.slane %v457, 3
      %v1859 = vsel %vm1834, %v1856, %v1858
      %v1889 = vunpack.c.l.b16 %v1818
      %v1890 = vunpack.c.l.b16 %v1819
      %v1891 = vunpack.c.l.b16 %v1820
      %v1892 = vunpack.c.l.b16 %v1821
      %v1893 = vunpack.c.l.b16 %v1822
      %v1894 = vunpack.c.l.b16 %v1823
      %v1895 = vunpack.c.l.b16 %v1824
      %v1896 = vunpack.c.l.b16 %v1825
      %v1897 = vunpack.c.l.b16 %v1826
      %v1898 = vunpack.c.l.b16 %v1827
      %v1899 = vunpack.c.l.b16 %v1828
      %v1900 = vunpack.c.l.b16 %v1829
      %v1901 = vunpack.c.l.b16 %v1830
      %v1902 = vunpack.c.l.b16 %v1831
      %v1903 = vunpack.c.l.b16 %v1832
      %v1904 = vunpack.c.l.b16 %v1833
      %v1905 = vpack.c.b16 %v1890, %v1889
      %v1906 = vpack.c.b16 %v1892, %v1891
      %v1907 = vpack.c.b16 %v1894, %v1893
      %v1908 = vpack.c.b16 %v1896, %v1895
      %v1909 = vpack.c.b16 %v1898, %v1897
      %v1910 = vpack.c.b16 %v1900, %v1899
      %v1911 = vpack.c.b16 %v1902, %v1901
      %v1912 = vpack.c.b16 %v1904, %v1903
      %1921 = vmatprep.subr.bf16.mxu0 0
      %1922 = vmatpush1.bf16.msra.mxu0 %v1905
      %1923 = vmatprep.subr.bf16.mxu0 0
      %1924 = vmatpush1.bf16.msra.mxu0 %v1906
      %1925 = vmatprep.subr.bf16.mxu0 0
      %1926 = vmatpush1.bf16.msra.mxu0 %v1907
      %1927 = vmatprep.subr.bf16.mxu0 0
      %1928 = vmatpush1.bf16.msra.mxu0 %v1908
      %1929 = vmatprep.subr.bf16.mxu0 0
      %1930 = vmatpush1.bf16.msra.mxu0 %v1909
      %1931 = vmatprep.subr.bf16.mxu0 0
      %1932 = vmatpush1.bf16.msra.mxu0 %v1910
      %1933 = vmatprep.subr.bf16.mxu0 0
      %1934 = vmatpush1.bf16.msra.mxu0 %v1911
      %1935 = vmatprep.subr.bf16.mxu0 0
      %1936 = vmatpush1.bf16.msra.mxu0 %v1912
      %1937 = vmatprep.subr.bf16.mxu0 0
      %1938 = vmatpush1.bf16.msra.mxu0 0
      %1939 = vmatprep.subr.bf16.mxu0 0
      %1940 = vmatpush1.bf16.msra.mxu0 0
      %1941 = vmatprep.subr.bf16.mxu0 0
      %1942 = vmatpush1.bf16.msra.mxu0 0
      %1943 = vmatprep.subr.bf16.mxu0 0
      %1944 = vmatpush1.bf16.msra.mxu0 0
      %1945 = vmatprep.subr.bf16.mxu0 0
      %1946 = vmatpush1.bf16.msra.mxu0 0
      %1947 = vmatprep.subr.bf16.mxu0 0
      %1948 = vmatpush1.bf16.msra.mxu0 0
      %1949 = vmatprep.subr.bf16.mxu0 0
      %1950 = vmatpush1.bf16.msra.mxu0 0
      %1951 = vmatprep.subr.bf16.mxu0 0
      %1952 = vmatpush1.bf16.msra.mxu0 0
      %1953 = vmatprep.mubr.bf16.mxu0 0
      %1954 = vmatmul.mubr.bf16.gmra.mrb[0].mxu0 %v1837
      %v1955 = vpop.f32.mrb[0].mxu0
      %v1956 = vadd.f32 0.0, %v1955
      %v1957 = vpop.f32.mrb[0].mxu0
      %v1958 = vpop.f32.mrb[0].mxu0
      %v1959 = vadd.f32 0.0, %v1958
      %v1960 = vpop.f32.mrb[0].mxu0
      %1961 = vmatprep.mubr.bf16.mxu0 0
      %1962 = vmatmul.mubr.bf16.gmra.mrb[0].mxu0 %v1839
      %v1963 = vpop.f32.mrb[0].mxu0
      %v1964 = vadd.f32 0.0, %v1963
      %v1965 = vpop.f32.mrb[0].mxu0
      %v1966 = vpop.f32.mrb[0].mxu0
      %v1967 = vadd.f32 0.0, %v1966
      %v1968 = vpop.f32.mrb[0].mxu0
      %1969 = vmatprep.mubr.bf16.mxu0 0
      %1970 = vmatmul.mubr.bf16.gmra.mrb[0].mxu0 %v1841
      %v1971 = vpop.f32.mrb[0].mxu0
      %v1972 = vadd.f32 0.0, %v1971
      %v1973 = vpop.f32.mrb[0].mxu0
      %v1974 = vpop.f32.mrb[0].mxu0
      %v1975 = vadd.f32 0.0, %v1974
      %v1976 = vpop.f32.mrb[0].mxu0
      %1977 = vmatprep.mubr.bf16.mxu0 0
      %1978 = vmatmul.mubr.bf16.gmra.mrb[0].mxu0 %v1843
      %v1979 = vpop.f32.mrb[0].mxu0
      %v1980 = vadd.f32 0.0, %v1979
      %v1981 = vpop.f32.mrb[0].mxu0
      %v1982 = vpop.f32.mrb[0].mxu0
      %v1983 = vadd.f32 0.0, %v1982
      %v1984 = vpop.f32.mrb[0].mxu0
      %1985 = vmatprep.mubr.bf16.mxu0 0
      %1986 = vmatmul.mubr.bf16.gmra.mrb[0].mxu0 %v1845
      %v1987 = vpop.f32.mrb[0].mxu0
      %v1988 = vadd.f32 0.0, %v1987
      %v1989 = vpop.f32.mrb[0].mxu0
      %v1990 = vpop.f32.mrb[0].mxu0
      %v1991 = vadd.f32 0.0, %v1990
      %v1992 = vpop.f32.mrb[0].mxu0
      %1993 = vmatprep.mubr.bf16.mxu0 0
      %1994 = vmatmul.mubr.bf16.gmra.mrb[0].mxu0 %v1847
      %v1995 = vpop.f32.mrb[0].mxu0
      %v1996 = vadd.f32 0.0, %v1995
      %v1997 = vpop.f32.mrb[0].mxu0
      %v1998 = vpop.f32.mrb[0].mxu0
      %v1999 = vadd.f32 0.0, %v1998
      %v2000 = vpop.f32.mrb[0].mxu0
      %2001 = vmatprep.mubr.bf16.mxu0 0
      %2002 = vmatmul.mubr.bf16.gmra.mrb[0].mxu0 %v1849
      %v2003 = vpop.f32.mrb[0].mxu0
      %v2004 = vadd.f32 0.0, %v2003
      %v2005 = vpop.f32.mrb[0].mxu0
      %v2006 = vpop.f32.mrb[0].mxu0
      %v2007 = vadd.f32 0.0, %v2006
      %v2008 = vpop.f32.mrb[0].mxu0
      %2009 = vmatprep.mubr.bf16.mxu0 0
      %2010 = vmatmul.mubr.bf16.gmra.mrb[0].mxu0 %v1851
      %v2011 = vpop.f32.mrb[0].mxu0
      %v2012 = vadd.f32 0.0, %v2011
      %v2013 = vpop.f32.mrb[0].mxu0
      %v2014 = vpop.f32.mrb[0].mxu0
      %v2015 = vadd.f32 0.0, %v2014
      %v2016 = vpop.f32.mrb[0].mxu0
      %2017 = vmatprep.mubr.bf16.mxu0 0
      %2018 = vmatmul.mubr.bf16.gmra.mrb[0].mxu0 %v1853
      %v2019 = vpop.f32.mrb[0].mxu0
      %v2020 = vadd.f32 0.0, %v2019
      %v2021 = vpop.f32.mrb[0].mxu0
      %v2022 = vpop.f32.mrb[0].mxu0
      %v2023 = vadd.f32 0.0, %v2022
      %v2024 = vpop.f32.mrb[0].mxu0
      %2025 = vmatprep.mubr.bf16.mxu0 0
      %2026 = vmatmul.mubr.bf16.gmra.mrb[0].mxu0 %v1855
      %v2027 = vpop.f32.mrb[0].mxu0
      %v2028 = vadd.f32 0.0, %v2027
      %v2029 = vpop.f32.mrb[0].mxu0
      %v2030 = vpop.f32.mrb[0].mxu0
      %v2031 = vadd.f32 0.0, %v2030
      %v2032 = vpop.f32.mrb[0].mxu0
      %2033 = vmatprep.mubr.bf16.mxu0 0
      %2034 = vmatmul.mubr.bf16.gmra.mrb[0].mxu0 %v1857
      %v2035 = vpop.f32.mrb[0].mxu0
      %v2036 = vadd.f32 0.0, %v2035
      %v2037 = vpop.f32.mrb[0].mxu0
      %v2038 = vpop.f32.mrb[0].mxu0
      %v2039 = vadd.f32 0.0, %v2038
      %v2040 = vpop.f32.mrb[0].mxu0
      %2041 = vmatprep.mubr.bf16.mxu0 0
      %2042 = vmatmul.mubr.bf16.gmra.mrb[0].mxu0 %v1859
      %v2043 = vpop.f32.mrb[0].mxu0
      %v2044 = vadd.f32 0.0, %v2043
      %v2045 = vpop.f32.mrb[0].mxu0
      %v2046 = vpop.f32.mrb[0].mxu0
      %v2047 = vadd.f32 0.0, %v2046
      %v2048 = vpop.f32.mrb[0].mxu0
      %2049 = vmatprep.mubr.bf16.mxu0 0
      %2050 = vmatmul.mubr.bf16.gmra.mrb[0].mxu0 %v1858
      %v2051 = vpop.f32.mrb[0].mxu0
      %v2052 = vadd.f32 0.0, %v2051
      %v2053 = vpop.f32.mrb[0].mxu0
      %v2054 = vpop.f32.mrb[0].mxu0
      %v2055 = vpop.f32.mrb[0].mxu0
      %2056 = vdwg.mxu0
      %v2057 = vadd.f32 %v1792, %v1956
      %v2058 = vadd.f32 %v1793, %v1959
      %v2059 = vadd.f32 %v1794, %v1964
      %v2060 = vadd.f32 %v1795, %v1967
      %v2061 = vadd.f32 %v1796, %v1972
      %v2062 = vadd.f32 %v1797, %v1975
      %v2063 = vadd.f32 %v1798, %v1980
      %v2064 = vadd.f32 %v1799, %v1983
      %v2065 = vadd.f32 %v1800, %v1988
      %v2066 = vadd.f32 %v1801, %v1991
      %v2067 = vadd.f32 %v1802, %v1996
      %v2068 = vadd.f32 %v1803, %v1999
      %v2069 = vadd.f32 %v1804, %v2004
      %v2070 = vadd.f32 %v1805, %v2007
      %v2071 = vadd.f32 %v1806, %v2012
      %v2072 = vadd.f32 %v1807, %v2015
      %v2073 = vadd.f32 %v1808, %v2020
      %v2074 = vadd.f32 %v1809, %v2023
      %v2075 = vadd.f32 %v1810, %v2028
      %v2076 = vadd.f32 %v1811, %v2031
      %v2077 = vadd.f32 %v1812, %v2036
      %v2078 = vadd.f32 %v1813, %v2039
      %v2079 = vadd.f32 %v1814, %v2044
      %v2080 = vadd.f32 %v1815, %v2047
      %v2081 = vadd.f32 %v1816, %v2052
      %s2082 = scalar_lea.vmem %s1, 384
      %v2083 = vld [vmem:[%s2082] sm:$0xf]
      %v2084 = vld [vmem:[%s2082 + $0x4] sm:$0xf]
      %v2085 = vld [vmem:[%s2082 + $0x8] sm:$0xf]
      %v2086 = vld [vmem:[%s2082 + $0xc] sm:$0xf]
      %v2087 = vld [vmem:[%s2082 + $0x10] sm:$0xf]
      %v2088 = vld [vmem:[%s2082 + $0x14] sm:$0xf]
      %v2089 = vld [vmem:[%s2082 + $0x18] sm:$0xf]
      %v2090 = vld [vmem:[%s2082 + $0x1c] sm:$0xf]
      %v2091 = vld [vmem:[%s2082 + $0x20] sm:$0xf]
      %v2092 = vld [vmem:[%s2082 + $0x24] sm:$0xf]
      %v2093 = vld [vmem:[%s2082 + $0x28] sm:$0xf]
      %v2094 = vld [vmem:[%s2082 + $0x2c] sm:$0xf]
      %v2095 = vld [vmem:[%s2082 + $0x30] sm:$0xf]
      %v2096 = vld [vmem:[%s2082 + $0x34] sm:$0xf]
      %v2097 = vld [vmem:[%s2082 + $0x38] sm:$0xf]
      %v2098 = vld [vmem:[%s2082 + $0x3c] sm:$0xf]
      %vm2100 = vcmask 1043456
      %v2101 = vrot.slane %v446, 4
      %v2102 = vrot.slane %v447, 4
      %v2103 = vsel %vm2100, %v2101, %v2102
      %v2104 = vrot.slane %v448, 4
      %v2105 = vsel %vm2100, %v2102, %v2104
      %v2106 = vrot.slane %v449, 4
      %v2107 = vsel %vm2100, %v2104, %v2106
      %v2108 = vrot.slane %v450, 4
      %v2109 = vsel %vm2100, %v2106, %v2108
      %v2110 = vrot.slane %v451, 4
      %v2111 = vsel %vm2100, %v2108, %v2110
      %v2112 = vrot.slane %v452, 4
      %v2113 = vsel %vm2100, %v2110, %v2112
      %v2114 = vrot.slane %v453, 4
      %v2115 = vsel %vm2100, %v2112, %v2114
      %v2116 = vrot.slane %v454, 4
      %v2117 = vsel %vm2100, %v2114, %v2116
      %v2118 = vrot.slane %v455, 4
      %v2119 = vsel %vm2100, %v2116, %v2118
      %v2120 = vrot.slane %v456, 4
      %v2121 = vsel %vm2100, %v2118, %v2120
      %v2122 = vrot.slane %v457, 4
      %v2123 = vsel %vm2100, %v2120, %v2122
      %v2124 = vrot.slane %v458, 4
      %v2125 = vsel %vm2100, %v2122, %v2124
      %v2155 = vunpack.c.l.b16 %v2083
      %v2156 = vunpack.c.l.b16 %v2084
      %v2157 = vunpack.c.l.b16 %v2085
      %v2158 = vunpack.c.l.b16 %v2086
      %v2159 = vunpack.c.l.b16 %v2087
      %v2160 = vunpack.c.l.b16 %v2088
      %v2161 = vunpack.c.l.b16 %v2089
      %v2162 = vunpack.c.l.b16 %v2090
      %v2163 = vunpack.c.l.b16 %v2091
      %v2164 = vunpack.c.l.b16 %v2092
      %v2165 = vunpack.c.l.b16 %v2093
      %v2166 = vunpack.c.l.b16 %v2094
      %v2167 = vunpack.c.l.b16 %v2095
      %v2168 = vunpack.c.l.b16 %v2096
      %v2169 = vunpack.c.l.b16 %v2097
      %v2170 = vunpack.c.l.b16 %v2098
      %v2171 = vpack.c.b16 %v2156, %v2155
      %v2172 = vpack.c.b16 %v2158, %v2157
      %v2173 = vpack.c.b16 %v2160, %v2159
      %v2174 = vpack.c.b16 %v2162, %v2161
      %v2175 = vpack.c.b16 %v2164, %v2163
      %v2176 = vpack.c.b16 %v2166, %v2165
      %v2177 = vpack.c.b16 %v2168, %v2167
      %v2178 = vpack.c.b16 %v2170, %v2169
      %2187 = vmatprep.subr.bf16.mxu0 0
      %2188 = vmatpush1.bf16.msra.mxu0 %v2171
      %2189 = vmatprep.subr.bf16.mxu0 0
      %2190 = vmatpush1.bf16.msra.mxu0 %v2172
      %2191 = vmatprep.subr.bf16.mxu0 0
      %2192 = vmatpush1.bf16.msra.mxu0 %v2173
      %2193 = vmatprep.subr.bf16.mxu0 0
      %2194 = vmatpush1.bf16.msra.mxu0 %v2174
      %2195 = vmatprep.subr.bf16.mxu0 0
      %2196 = vmatpush1.bf16.msra.mxu0 %v2175
      %2197 = vmatprep.subr.bf16.mxu0 0
      %2198 = vmatpush1.bf16.msra.mxu0 %v2176
      %2199 = vmatprep.subr.bf16.mxu0 0
      %2200 = vmatpush1.bf16.msra.mxu0 %v2177
      %2201 = vmatprep.subr.bf16.mxu0 0
      %2202 = vmatpush1.bf16.msra.mxu0 %v2178
      %2203 = vmatprep.subr.bf16.mxu0 0
      %2204 = vmatpush1.bf16.msra.mxu0 0
      %2205 = vmatprep.subr.bf16.mxu0 0
      %2206 = vmatpush1.bf16.msra.mxu0 0
      %2207 = vmatprep.subr.bf16.mxu0 0
      %2208 = vmatpush1.bf16.msra.mxu0 0
      %2209 = vmatprep.subr.bf16.mxu0 0
      %2210 = vmatpush1.bf16.msra.mxu0 0
      %2211 = vmatprep.subr.bf16.mxu0 0
      %2212 = vmatpush1.bf16.msra.mxu0 0
      %2213 = vmatprep.subr.bf16.mxu0 0
      %2214 = vmatpush1.bf16.msra.mxu0 0
      %2215 = vmatprep.subr.bf16.mxu0 0
      %2216 = vmatpush1.bf16.msra.mxu0 0
      %2217 = vmatprep.subr.bf16.mxu0 0
      %2218 = vmatpush1.bf16.msra.mxu0 0
      %2219 = vmatprep.mubr.bf16.mxu0 0
      %2220 = vmatmul.mubr.bf16.gmra.mrb[0].mxu0 %v2103
      %v2221 = vpop.f32.mrb[0].mxu0
      %v2222 = vadd.f32 0.0, %v2221
      %v2223 = vpop.f32.mrb[0].mxu0
      %v2224 = vpop.f32.mrb[0].mxu0
      %v2225 = vadd.f32 0.0, %v2224
      %v2226 = vpop.f32.mrb[0].mxu0
      %2227 = vmatprep.mubr.bf16.mxu0 0
      %2228 = vmatmul.mubr.bf16.gmra.mrb[0].mxu0 %v2105
      %v2229 = vpop.f32.mrb[0].mxu0
      %v2230 = vadd.f32 0.0, %v2229
      %v2231 = vpop.f32.mrb[0].mxu0
      %v2232 = vpop.f32.mrb[0].mxu0
      %v2233 = vadd.f32 0.0, %v2232
      %v2234 = vpop.f32.mrb[0].mxu0
      %2235 = vmatprep.mubr.bf16.mxu0 0
      %2236 = vmatmul.mubr.bf16.gmra.mrb[0].mxu0 %v2107
      %v2237 = vpop.f32.mrb[0].mxu0
      %v2238 = vadd.f32 0.0, %v2237
      %v2239 = vpop.f32.mrb[0].mxu0
      %v2240 = vpop.f32.mrb[0].mxu0
      %v2241 = vadd.f32 0.0, %v2240
      %v2242 = vpop.f32.mrb[0].mxu0
      %2243 = vmatprep.mubr.bf16.mxu0 0
      %2244 = vmatmul.mubr.bf16.gmra.mrb[0].mxu0 %v2109
      %v2245 = vpop.f32.mrb[0].mxu0
      %v2246 = vadd.f32 0.0, %v2245
      %v2247 = vpop.f32.mrb[0].mxu0
      %v2248 = vpop.f32.mrb[0].mxu0
      %v2249 = vadd.f32 0.0, %v2248
      %v2250 = vpop.f32.mrb[0].mxu0
      %2251 = vmatprep.mubr.bf16.mxu0 0
      %2252 = vmatmul.mubr.bf16.gmra.mrb[0].mxu0 %v2111
      %v2253 = vpop.f32.mrb[0].mxu0
      %v2254 = vadd.f32 0.0, %v2253
      %v2255 = vpop.f32.mrb[0].mxu0
      %v2256 = vpop.f32.mrb[0].mxu0
      %v2257 = vadd.f32 0.0, %v2256
      %v2258 = vpop.f32.mrb[0].mxu0
      %2259 = vmatprep.mubr.bf16.mxu0 0
      %2260 = vmatmul.mubr.bf16.gmra.mrb[0].mxu0 %v2113
      %v2261 = vpop.f32.mrb[0].mxu0
      %v2262 = vadd.f32 0.0, %v2261
      %v2263 = vpop.f32.mrb[0].mxu0
      %v2264 = vpop.f32.mrb[0].mxu0
      %v2265 = vadd.f32 0.0, %v2264
      %v2266 = vpop.f32.mrb[0].mxu0
      %2267 = vmatprep.mubr.bf16.mxu0 0
      %2268 = vmatmul.mubr.bf16.gmra.mrb[0].mxu0 %v2115
      %v2269 = vpop.f32.mrb[0].mxu0
      %v2270 = vadd.f32 0.0, %v2269
      %v2271 = vpop.f32.mrb[0].mxu0
      %v2272 = vpop.f32.mrb[0].mxu0
      %v2273 = vadd.f32 0.0, %v2272
      %v2274 = vpop.f32.mrb[0].mxu0
      %2275 = vmatprep.mubr.bf16.mxu0 0
      %2276 = vmatmul.mubr.bf16.gmra.mrb[0].mxu0 %v2117
      %v2277 = vpop.f32.mrb[0].mxu0
      %v2278 = vadd.f32 0.0, %v2277
      %v2279 = vpop.f32.mrb[0].mxu0
      %v2280 = vpop.f32.mrb[0].mxu0
      %v2281 = vadd.f32 0.0, %v2280
      %v2282 = vpop.f32.mrb[0].mxu0
      %2283 = vmatprep.mubr.bf16.mxu0 0
      %2284 = vmatmul.mubr.bf16.gmra.mrb[0].mxu0 %v2119
      %v2285 = vpop.f32.mrb[0].mxu0
      %v2286 = vadd.f32 0.0, %v2285
      %v2287 = vpop.f32.mrb[0].mxu0
      %v2288 = vpop.f32.mrb[0].mxu0
      %v2289 = vadd.f32 0.0, %v2288
      %v2290 = vpop.f32.mrb[0].mxu0
      %2291 = vmatprep.mubr.bf16.mxu0 0
      %2292 = vmatmul.mubr.bf16.gmra.mrb[0].mxu0 %v2121
      %v2293 = vpop.f32.mrb[0].mxu0
      %v2294 = vadd.f32 0.0, %v2293
      %v2295 = vpop.f32.mrb[0].mxu0
      %v2296 = vpop.f32.mrb[0].mxu0
      %v2297 = vadd.f32 0.0, %v2296
      %v2298 = vpop.f32.mrb[0].mxu0
      %2299 = vmatprep.mubr.bf16.mxu0 0
      %2300 = vmatmul.mubr.bf16.gmra.mrb[0].mxu0 %v2123
      %v2301 = vpop.f32.mrb[0].mxu0
      %v2302 = vadd.f32 0.0, %v2301
      %v2303 = vpop.f32.mrb[0].mxu0
      %v2304 = vpop.f32.mrb[0].mxu0
      %v2305 = vadd.f32 0.0, %v2304
      %v2306 = vpop.f32.mrb[0].mxu0
      %2307 = vmatprep.mubr.bf16.mxu0 0
      %2308 = vmatmul.mubr.bf16.gmra.mrb[0].mxu0 %v2125
      %v2309 = vpop.f32.mrb[0].mxu0
      %v2310 = vadd.f32 0.0, %v2309
      %v2311 = vpop.f32.mrb[0].mxu0
      %v2312 = vpop.f32.mrb[0].mxu0
      %v2313 = vadd.f32 0.0, %v2312
      %v2314 = vpop.f32.mrb[0].mxu0
      %2315 = vmatprep.mubr.bf16.mxu0 0
      %2316 = vmatmul.mubr.bf16.gmra.mrb[0].mxu0 %v2124
      %v2317 = vpop.f32.mrb[0].mxu0
      %v2318 = vadd.f32 0.0, %v2317
      %v2319 = vpop.f32.mrb[0].mxu0
      %v2320 = vpop.f32.mrb[0].mxu0
      %v2321 = vpop.f32.mrb[0].mxu0
      %2322 = vdwg.mxu0
      %v2323 = vadd.f32 %v2057, %v2222
      %v2324 = vadd.f32 %v2058, %v2225
      %v2325 = vadd.f32 %v2059, %v2230
      %v2326 = vadd.f32 %v2060, %v2233
      %v2327 = vadd.f32 %v2061, %v2238
      %v2328 = vadd.f32 %v2062, %v2241
      %v2329 = vadd.f32 %v2063, %v2246
      %v2330 = vadd.f32 %v2064, %v2249
      %v2331 = vadd.f32 %v2065, %v2254
      %v2332 = vadd.f32 %v2066, %v2257
      %v2333 = vadd.f32 %v2067, %v2262
      %v2334 = vadd.f32 %v2068, %v2265
      %v2335 = vadd.f32 %v2069, %v2270
      %v2336 = vadd.f32 %v2070, %v2273
      %v2337 = vadd.f32 %v2071, %v2278
      %v2338 = vadd.f32 %v2072, %v2281
      %v2339 = vadd.f32 %v2073, %v2286
      %v2340 = vadd.f32 %v2074, %v2289
      %v2341 = vadd.f32 %v2075, %v2294
      %v2342 = vadd.f32 %v2076, %v2297
      %v2343 = vadd.f32 %v2077, %v2302
      %v2344 = vadd.f32 %v2078, %v2305
      %v2345 = vadd.f32 %v2079, %v2310
      %v2346 = vadd.f32 %v2080, %v2313
      %v2347 = vadd.f32 %v2081, %v2318
      %s2348 = scalar_lea.vmem %s1, 448
      %v2349 = vld [vmem:[%s2348] sm:$0xf]
      %v2350 = vld [vmem:[%s2348 + $0x4] sm:$0xf]
      %v2351 = vld [vmem:[%s2348 + $0x8] sm:$0xf]
      %v2352 = vld [vmem:[%s2348 + $0xc] sm:$0xf]
      %v2353 = vld [vmem:[%s2348 + $0x10] sm:$0xf]
      %v2354 = vld [vmem:[%s2348 + $0x14] sm:$0xf]
      %v2355 = vld [vmem:[%s2348 + $0x18] sm:$0xf]
      %v2356 = vld [vmem:[%s2348 + $0x1c] sm:$0xf]
      %v2357 = vld [vmem:[%s2348 + $0x20] sm:$0xf]
      %v2358 = vld [vmem:[%s2348 + $0x24] sm:$0xf]
      %v2359 = vld [vmem:[%s2348 + $0x28] sm:$0xf]
      %v2360 = vld [vmem:[%s2348 + $0x2c] sm:$0xf]
      %v2361 = vld [vmem:[%s2348 + $0x30] sm:$0xf]
      %v2362 = vld [vmem:[%s2348 + $0x34] sm:$0xf]
      %v2363 = vld [vmem:[%s2348 + $0x38] sm:$0xf]
      %v2364 = vld [vmem:[%s2348 + $0x3c] sm:$0xf]
      %vm2365 = vsmask.f32 3328
      %v2366 = vrot.slane %v513, 4
      %v2367 = vrot.slane %v509, 5
      %v2368 = vor.u32 %v2366, %v2367
      %v2369 = vrot.slane %v521, 4
      %v2370 = vrot.slane %v517, 5
      %v2371 = vor.u32 %v2369, %v2370
      %v2372 = vsel %vm2365, %v2368, %v2371
      %v2373 = vrot.slane %v529, 4
      %v2374 = vrot.slane %v525, 5
      %v2375 = vor.u32 %v2373, %v2374
      %v2376 = vsel %vm2365, %v2371, %v2375
      %v2377 = vrot.slane %v537, 4
      %v2378 = vrot.slane %v533, 5
      %v2379 = vor.u32 %v2377, %v2378
      %v2380 = vsel %vm2365, %v2375, %v2379
      %v2381 = vrot.slane %v545, 4
      %v2382 = vrot.slane %v541, 5
      %v2383 = vor.u32 %v2381, %v2382
      %v2384 = vsel %vm2365, %v2379, %v2383
      %v2385 = vrot.slane %v553, 4
      %v2386 = vrot.slane %v549, 5
      %v2387 = vor.u32 %v2385, %v2386
      %v2388 = vsel %vm2365, %v2383, %v2387
      %v2389 = vrot.slane %v561, 4
      %v2390 = vrot.slane %v557, 5
      %v2391 = vor.u32 %v2389, %v2390
      %v2392 = vsel %vm2365, %v2387, %v2391
      %v2393 = vrot.slane %v569, 4
      %v2394 = vrot.slane %v565, 5
      %v2395 = vor.u32 %v2393, %v2394
      %v2396 = vsel %vm2365, %v2391, %v2395
      %v2397 = vrot.slane %v577, 4
      %v2398 = vrot.slane %v573, 5
      %v2399 = vor.u32 %v2397, %v2398
      %v2400 = vsel %vm2365, %v2395, %v2399
      %v2401 = vrot.slane %v585, 4
      %v2402 = vrot.slane %v581, 5
      %v2403 = vor.u32 %v2401, %v2402
      %v2404 = vsel %vm2365, %v2399, %v2403
      %v2405 = vrot.slane %v593, 4
      %v2406 = vrot.slane %v589, 5
      %v2407 = vor.u32 %v2405, %v2406
      %v2408 = vsel %vm2365, %v2403, %v2407
      %v2409 = vrot.slane %v1587, 4
      %v2410 = vrot.slane %v1590, 5
      %v2411 = vor.u32 %v2409, %v2410
      %v2412 = vsel %vm2365, %v2407, %v2411
      %v2414 = vshrl.u32 %v458, 16
      %v2416 = vrot.slane %v2414, 4
      %v2417 = vshll.u32 %v458, 16
      %v2419 = vrot.slane %v2417, 5
      %v2420 = vor.u32 %v2416, %v2419
      %v2421 = vsel %vm2365, %v2411, %v2420
      %v2451 = vunpack.c.l.b16 %v2349
      %v2452 = vunpack.c.l.b16 %v2350
      %v2453 = vunpack.c.l.b16 %v2351
      %v2454 = vunpack.c.l.b16 %v2352
      %v2455 = vunpack.c.l.b16 %v2353
      %v2456 = vunpack.c.l.b16 %v2354
      %v2457 = vunpack.c.l.b16 %v2355
      %v2458 = vunpack.c.l.b16 %v2356
      %v2459 = vunpack.c.l.b16 %v2357
      %v2460 = vunpack.c.l.b16 %v2358
      %v2461 = vunpack.c.l.b16 %v2359
      %v2462 = vunpack.c.l.b16 %v2360
      %v2463 = vunpack.c.l.b16 %v2361
      %v2464 = vunpack.c.l.b16 %v2362
      %v2465 = vunpack.c.l.b16 %v2363
      %v2466 = vunpack.c.l.b16 %v2364
      %v2467 = vpack.c.b16 %v2452, %v2451
      %v2468 = vpack.c.b16 %v2454, %v2453
      %v2469 = vpack.c.b16 %v2456, %v2455
      %v2470 = vpack.c.b16 %v2458, %v2457
      %v2471 = vpack.c.b16 %v2460, %v2459
      %v2472 = vpack.c.b16 %v2462, %v2461
      %v2473 = vpack.c.b16 %v2464, %v2463
      %v2474 = vpack.c.b16 %v2466, %v2465
      %2483 = vmatprep.subr.bf16.mxu0 0
      %2484 = vmatpush1.bf16.msra.mxu0 %v2467
      %2485 = vmatprep.subr.bf16.mxu0 0
      %2486 = vmatpush1.bf16.msra.mxu0 %v2468
      %2487 = vmatprep.subr.bf16.mxu0 0
      %2488 = vmatpush1.bf16.msra.mxu0 %v2469
      %2489 = vmatprep.subr.bf16.mxu0 0
      %2490 = vmatpush1.bf16.msra.mxu0 %v2470
      %2491 = vmatprep.subr.bf16.mxu0 0
      %2492 = vmatpush1.bf16.msra.mxu0 %v2471
      %2493 = vmatprep.subr.bf16.mxu0 0
      %2494 = vmatpush1.bf16.msra.mxu0 %v2472
      %2495 = vmatprep.subr.bf16.mxu0 0
      %2496 = vmatpush1.bf16.msra.mxu0 %v2473
      %2497 = vmatprep.subr.bf16.mxu0 0
      %2498 = vmatpush1.bf16.msra.mxu0 %v2474
      %2499 = vmatprep.subr.bf16.mxu0 0
      %2500 = vmatpush1.bf16.msra.mxu0 0
      %2501 = vmatprep.subr.bf16.mxu0 0
      %2502 = vmatpush1.bf16.msra.mxu0 0
      %2503 = vmatprep.subr.bf16.mxu0 0
      %2504 = vmatpush1.bf16.msra.mxu0 0
      %2505 = vmatprep.subr.bf16.mxu0 0
      %2506 = vmatpush1.bf16.msra.mxu0 0
      %2507 = vmatprep.subr.bf16.mxu0 0
      %2508 = vmatpush1.bf16.msra.mxu0 0
      %2509 = vmatprep.subr.bf16.mxu0 0
      %2510 = vmatpush1.bf16.msra.mxu0 0
      %2511 = vmatprep.subr.bf16.mxu0 0
      %2512 = vmatpush1.bf16.msra.mxu0 0
      %2513 = vmatprep.subr.bf16.mxu0 0
      %2514 = vmatpush1.bf16.msra.mxu0 0
      %2515 = vmatprep.mubr.bf16.mxu0 0
      %2516 = vmatmul.mubr.bf16.gmra.mrb[0].mxu0 %v2372
      %v2517 = vpop.f32.mrb[0].mxu0
      %v2518 = vadd.f32 0.0, %v2517
      %v2519 = vpop.f32.mrb[0].mxu0
      %v2520 = vpop.f32.mrb[0].mxu0
      %v2521 = vadd.f32 0.0, %v2520
      %v2522 = vpop.f32.mrb[0].mxu0
      %2523 = vmatprep.mubr.bf16.mxu0 0
      %2524 = vmatmul.mubr.bf16.gmra.mrb[0].mxu0 %v2376
      %v2525 = vpop.f32.mrb[0].mxu0
      %v2526 = vadd.f32 0.0, %v2525
      %v2527 = vpop.f32.mrb[0].mxu0
      %v2528 = vpop.f32.mrb[0].mxu0
      %v2529 = vadd.f32 0.0, %v2528
      %v2530 = vpop.f32.mrb[0].mxu0
      %2531 = vmatprep.mubr.bf16.mxu0 0
      %2532 = vmatmul.mubr.bf16.gmra.mrb[0].mxu0 %v2380
      %v2533 = vpop.f32.mrb[0].mxu0
      %v2534 = vadd.f32 0.0, %v2533
      %v2535 = vpop.f32.mrb[0].mxu0
      %v2536 = vpop.f32.mrb[0].mxu0
      %v2537 = vadd.f32 0.0, %v2536
      %v2538 = vpop.f32.mrb[0].mxu0
      %2539 = vmatprep.mubr.bf16.mxu0 0
      %2540 = vmatmul.mubr.bf16.gmra.mrb[0].mxu0 %v2384
      %v2541 = vpop.f32.mrb[0].mxu0
      %v2542 = vadd.f32 0.0, %v2541
      %v2543 = vpop.f32.mrb[0].mxu0
      %v2544 = vpop.f32.mrb[0].mxu0
      %v2545 = vadd.f32 0.0, %v2544
      %v2546 = vpop.f32.mrb[0].mxu0
      %2547 = vmatprep.mubr.bf16.mxu0 0
      %2548 = vmatmul.mubr.bf16.gmra.mrb[0].mxu0 %v2388
      %v2549 = vpop.f32.mrb[0].mxu0
      %v2550 = vadd.f32 0.0, %v2549
      %v2551 = vpop.f32.mrb[0].mxu0
      %v2552 = vpop.f32.mrb[0].mxu0
      %v2553 = vadd.f32 0.0, %v2552
      %v2554 = vpop.f32.mrb[0].mxu0
      %2555 = vmatprep.mubr.bf16.mxu0 0
      %2556 = vmatmul.mubr.bf16.gmra.mrb[0].mxu0 %v2392
      %v2557 = vpop.f32.mrb[0].mxu0
      %v2558 = vadd.f32 0.0, %v2557
      %v2559 = vpop.f32.mrb[0].mxu0
      %v2560 = vpop.f32.mrb[0].mxu0
      %v2561 = vadd.f32 0.0, %v2560
      %v2562 = vpop.f32.mrb[0].mxu0
      %2563 = vmatprep.mubr.bf16.mxu0 0
      %2564 = vmatmul.mubr.bf16.gmra.mrb[0].mxu0 %v2396
      %v2565 = vpop.f32.mrb[0].mxu0
      %v2566 = vadd.f32 0.0, %v2565
      %v2567 = vpop.f32.mrb[0].mxu0
      %v2568 = vpop.f32.mrb[0].mxu0
      %v2569 = vadd.f32 0.0, %v2568
      %v2570 = vpop.f32.mrb[0].mxu0
      %2571 = vmatprep.mubr.bf16.mxu0 0
      %2572 = vmatmul.mubr.bf16.gmra.mrb[0].mxu0 %v2400
      %v2573 = vpop.f32.mrb[0].mxu0
      %v2574 = vadd.f32 0.0, %v2573
      %v2575 = vpop.f32.mrb[0].mxu0
      %v2576 = vpop.f32.mrb[0].mxu0
      %v2577 = vadd.f32 0.0, %v2576
      %v2578 = vpop.f32.mrb[0].mxu0
      %2579 = vmatprep.mubr.bf16.mxu0 0
      %2580 = vmatmul.mubr.bf16.gmra.mrb[0].mxu0 %v2404
      %v2581 = vpop.f32.mrb[0].mxu0
      %v2582 = vadd.f32 0.0, %v2581
      %v2583 = vpop.f32.mrb[0].mxu0
      %v2584 = vpop.f32.mrb[0].mxu0
      %v2585 = vadd.f32 0.0, %v2584
      %v2586 = vpop.f32.mrb[0].mxu0
      %2587 = vmatprep.mubr.bf16.mxu0 0
      %2588 = vmatmul.mubr.bf16.gmra.mrb[0].mxu0 %v2408
      %v2589 = vpop.f32.mrb[0].mxu0
      %v2590 = vadd.f32 0.0, %v2589
      %v2591 = vpop.f32.mrb[0].mxu0
      %v2592 = vpop.f32.mrb[0].mxu0
      %v2593 = vadd.f32 0.0, %v2592
      %v2594 = vpop.f32.mrb[0].mxu0
      %2595 = vmatprep.mubr.bf16.mxu0 0
      %2596 = vmatmul.mubr.bf16.gmra.mrb[0].mxu0 %v2412
      %v2597 = vpop.f32.mrb[0].mxu0
      %v2598 = vadd.f32 0.0, %v2597
      %v2599 = vpop.f32.mrb[0].mxu0
      %v2600 = vpop.f32.mrb[0].mxu0
      %v2601 = vadd.f32 0.0, %v2600
      %v2602 = vpop.f32.mrb[0].mxu0
      %2603 = vmatprep.mubr.bf16.mxu0 0
      %2604 = vmatmul.mubr.bf16.gmra.mrb[0].mxu0 %v2421
      %v2605 = vpop.f32.mrb[0].mxu0
      %v2606 = vadd.f32 0.0, %v2605
      %v2607 = vpop.f32.mrb[0].mxu0
      %v2608 = vpop.f32.mrb[0].mxu0
      %v2609 = vadd.f32 0.0, %v2608
      %v2610 = vpop.f32.mrb[0].mxu0
      %2611 = vmatprep.mubr.bf16.mxu0 0
      %2612 = vmatmul.mubr.bf16.gmra.mrb[0].mxu0 %v2420
      %v2613 = vpop.f32.mrb[0].mxu0
      %v2614 = vadd.f32 0.0, %v2613
      %v2615 = vpop.f32.mrb[0].mxu0
      %v2616 = vpop.f32.mrb[0].mxu0
      %v2617 = vpop.f32.mrb[0].mxu0
      %2618 = vdwg.mxu0
      %v2619 = vadd.f32 %v2323, %v2518
      %v2620 = vadd.f32 %v2324, %v2521
      %v2621 = vadd.f32 %v2325, %v2526
      %v2622 = vadd.f32 %v2326, %v2529
      %v2623 = vadd.f32 %v2327, %v2534
      %v2624 = vadd.f32 %v2328, %v2537
      %v2625 = vadd.f32 %v2329, %v2542
      %v2626 = vadd.f32 %v2330, %v2545
      %v2627 = vadd.f32 %v2331, %v2550
      %v2628 = vadd.f32 %v2332, %v2553
      %v2629 = vadd.f32 %v2333, %v2558
      %v2630 = vadd.f32 %v2334, %v2561
      %v2631 = vadd.f32 %v2335, %v2566
      %v2632 = vadd.f32 %v2336, %v2569
      %v2633 = vadd.f32 %v2337, %v2574
      %v2634 = vadd.f32 %v2338, %v2577
      %v2635 = vadd.f32 %v2339, %v2582
      %v2636 = vadd.f32 %v2340, %v2585
      %v2637 = vadd.f32 %v2341, %v2590
      %v2638 = vadd.f32 %v2342, %v2593
      %v2639 = vadd.f32 %v2343, %v2598
      %v2640 = vadd.f32 %v2344, %v2601
      %v2641 = vadd.f32 %v2345, %v2606
      %v2642 = vadd.f32 %v2346, %v2609
      %v2643 = vadd.f32 %v2347, %v2614
      %s2644 = scalar_lea.vmem %s1, 512
      %v2645 = vld [vmem:[%s2644] sm:$0xf]
      %v2646 = vld [vmem:[%s2644 + $0x4] sm:$0xf]
      %v2647 = vld [vmem:[%s2644 + $0x8] sm:$0xf]
      %v2648 = vld [vmem:[%s2644 + $0xc] sm:$0xf]
      %v2649 = vld [vmem:[%s2644 + $0x10] sm:$0xf]
      %v2650 = vld [vmem:[%s2644 + $0x14] sm:$0xf]
      %v2651 = vld [vmem:[%s2644 + $0x18] sm:$0xf]
      %v2652 = vld [vmem:[%s2644 + $0x1c] sm:$0xf]
      %v2653 = vld [vmem:[%s2644 + $0x20] sm:$0xf]
      %v2654 = vld [vmem:[%s2644 + $0x24] sm:$0xf]
      %v2655 = vld [vmem:[%s2644 + $0x28] sm:$0xf]
      %v2656 = vld [vmem:[%s2644 + $0x2c] sm:$0xf]
      %v2657 = vld [vmem:[%s2644 + $0x30] sm:$0xf]
      %v2658 = vld [vmem:[%s2644 + $0x34] sm:$0xf]
      %v2659 = vld [vmem:[%s2644 + $0x38] sm:$0xf]
      %v2660 = vld [vmem:[%s2644 + $0x3c] sm:$0xf]
      %vm2661 = vcmask 1042432
      %v2662 = vrot.slane %v446, 5
      %v2663 = vrot.slane %v447, 5
      %v2664 = vsel %vm2661, %v2662, %v2663
      %v2665 = vrot.slane %v448, 5
      %v2666 = vsel %vm2661, %v2663, %v2665
      %v2667 = vrot.slane %v449, 5
      %v2668 = vsel %vm2661, %v2665, %v2667
      %v2669 = vrot.slane %v450, 5
      %v2670 = vsel %vm2661, %v2667, %v2669
      %v2671 = vrot.slane %v451, 5
      %v2672 = vsel %vm2661, %v2669, %v2671
      %v2673 = vrot.slane %v452, 5
      %v2674 = vsel %vm2661, %v2671, %v2673
      %v2675 = vrot.slane %v453, 5
      %v2676 = vsel %vm2661, %v2673, %v2675
      %v2677 = vrot.slane %v454, 5
      %v2678 = vsel %vm2661, %v2675, %v2677
      %v2679 = vrot.slane %v455, 5
      %v2680 = vsel %vm2661, %v2677, %v2679
      %v2681 = vrot.slane %v456, 5
      %v2682 = vsel %vm2661, %v2679, %v2681
      %v2683 = vrot.slane %v457, 5
      %v2684 = vsel %vm2661, %v2681, %v2683
      %v2685 = vrot.slane %v458, 5
      %v2686 = vsel %vm2661, %v2683, %v2685
      %v2716 = vunpack.c.l.b16 %v2645
      %v2717 = vunpack.c.l.b16 %v2646
      %v2718 = vunpack.c.l.b16 %v2647
      %v2719 = vunpack.c.l.b16 %v2648
      %v2720 = vunpack.c.l.b16 %v2649
      %v2721 = vunpack.c.l.b16 %v2650
      %v2722 = vunpack.c.l.b16 %v2651
      %v2723 = vunpack.c.l.b16 %v2652
      %v2724 = vunpack.c.l.b16 %v2653
      %v2725 = vunpack.c.l.b16 %v2654
      %v2726 = vunpack.c.l.b16 %v2655
      %v2727 = vunpack.c.l.b16 %v2656
      %v2728 = vunpack.c.l.b16 %v2657
      %v2729 = vunpack.c.l.b16 %v2658
      %v2730 = vunpack.c.l.b16 %v2659
      %v2731 = vunpack.c.l.b16 %v2660
      %v2732 = vpack.c.b16 %v2717, %v2716
      %v2733 = vpack.c.b16 %v2719, %v2718
      %v2734 = vpack.c.b16 %v2721, %v2720
      %v2735 = vpack.c.b16 %v2723, %v2722
      %v2736 = vpack.c.b16 %v2725, %v2724
      %v2737 = vpack.c.b16 %v2727, %v2726
      %v2738 = vpack.c.b16 %v2729, %v2728
      %v2739 = vpack.c.b16 %v2731, %v2730
      %2748 = vmatprep.subr.bf16.mxu0 0
      %2749 = vmatpush1.bf16.msra.mxu0 %v2732
      %2750 = vmatprep.subr.bf16.mxu0 0
      %2751 = vmatpush1.bf16.msra.mxu0 %v2733
      %2752 = vmatprep.subr.bf16.mxu0 0
      %2753 = vmatpush1.bf16.msra.mxu0 %v2734
      %2754 = vmatprep.subr.bf16.mxu0 0
      %2755 = vmatpush1.bf16.msra.mxu0 %v2735
      %2756 = vmatprep.subr.bf16.mxu0 0
      %2757 = vmatpush1.bf16.msra.mxu0 %v2736
      %2758 = vmatprep.subr.bf16.mxu0 0
      %2759 = vmatpush1.bf16.msra.mxu0 %v2737
      %2760 = vmatprep.subr.bf16.mxu0 0
      %2761 = vmatpush1.bf16.msra.mxu0 %v2738
      %2762 = vmatprep.subr.bf16.mxu0 0
      %2763 = vmatpush1.bf16.msra.mxu0 %v2739
      %2764 = vmatprep.subr.bf16.mxu0 0
      %2765 = vmatpush1.bf16.msra.mxu0 0
      %2766 = vmatprep.subr.bf16.mxu0 0
      %2767 = vmatpush1.bf16.msra.mxu0 0
      %2768 = vmatprep.subr.bf16.mxu0 0
      %2769 = vmatpush1.bf16.msra.mxu0 0
      %2770 = vmatprep.subr.bf16.mxu0 0
      %2771 = vmatpush1.bf16.msra.mxu0 0
      %2772 = vmatprep.subr.bf16.mxu0 0
      %2773 = vmatpush1.bf16.msra.mxu0 0
      %2774 = vmatprep.subr.bf16.mxu0 0
      %2775 = vmatpush1.bf16.msra.mxu0 0
      %2776 = vmatprep.subr.bf16.mxu0 0
      %2777 = vmatpush1.bf16.msra.mxu0 0
      %2778 = vmatprep.subr.bf16.mxu0 0
      %2779 = vmatpush1.bf16.msra.mxu0 0
      %2780 = vmatprep.mubr.bf16.mxu0 0
      %2781 = vmatmul.mubr.bf16.gmra.mrb[0].mxu0 %v2664
      %v2782 = vpop.f32.mrb[0].mxu0
      %v2783 = vadd.f32 0.0, %v2782
      %v2784 = vpop.f32.mrb[0].mxu0
      %v2785 = vpop.f32.mrb[0].mxu0
      %v2786 = vadd.f32 0.0, %v2785
      %v2787 = vpop.f32.mrb[0].mxu0
      %2788 = vmatprep.mubr.bf16.mxu0 0
      %2789 = vmatmul.mubr.bf16.gmra.mrb[0].mxu0 %v2666
      %v2790 = vpop.f32.mrb[0].mxu0
      %v2791 = vadd.f32 0.0, %v2790
      %v2792 = vpop.f32.mrb[0].mxu0
      %v2793 = vpop.f32.mrb[0].mxu0
      %v2794 = vadd.f32 0.0, %v2793
      %v2795 = vpop.f32.mrb[0].mxu0
      %2796 = vmatprep.mubr.bf16.mxu0 0
      %2797 = vmatmul.mubr.bf16.gmra.mrb[0].mxu0 %v2668
      %v2798 = vpop.f32.mrb[0].mxu0
      %v2799 = vadd.f32 0.0, %v2798
      %v2800 = vpop.f32.mrb[0].mxu0
      %v2801 = vpop.f32.mrb[0].mxu0
      %v2802 = vadd.f32 0.0, %v2801
      %v2803 = vpop.f32.mrb[0].mxu0
      %2804 = vmatprep.mubr.bf16.mxu0 0
      %2805 = vmatmul.mubr.bf16.gmra.mrb[0].mxu0 %v2670
      %v2806 = vpop.f32.mrb[0].mxu0
      %v2807 = vadd.f32 0.0, %v2806
      %v2808 = vpop.f32.mrb[0].mxu0
      %v2809 = vpop.f32.mrb[0].mxu0
      %v2810 = vadd.f32 0.0, %v2809
      %v2811 = vpop.f32.mrb[0].mxu0
      %2812 = vmatprep.mubr.bf16.mxu0 0
      %2813 = vmatmul.mubr.bf16.gmra.mrb[0].mxu0 %v2672
      %v2814 = vpop.f32.mrb[0].mxu0
      %v2815 = vadd.f32 0.0, %v2814
      %v2816 = vpop.f32.mrb[0].mxu0
      %v2817 = vpop.f32.mrb[0].mxu0
      %v2818 = vadd.f32 0.0, %v2817
      %v2819 = vpop.f32.mrb[0].mxu0
      %2820 = vmatprep.mubr.bf16.mxu0 0
      %2821 = vmatmul.mubr.bf16.gmra.mrb[0].mxu0 %v2674
      %v2822 = vpop.f32.mrb[0].mxu0
      %v2823 = vadd.f32 0.0, %v2822
      %v2824 = vpop.f32.mrb[0].mxu0
      %v2825 = vpop.f32.mrb[0].mxu0
      %v2826 = vadd.f32 0.0, %v2825
      %v2827 = vpop.f32.mrb[0].mxu0
      %2828 = vmatprep.mubr.bf16.mxu0 0
      %2829 = vmatmul.mubr.bf16.gmra.mrb[0].mxu0 %v2676
      %v2830 = vpop.f32.mrb[0].mxu0
      %v2831 = vadd.f32 0.0, %v2830
      %v2832 = vpop.f32.mrb[0].mxu0
      %v2833 = vpop.f32.mrb[0].mxu0
      %v2834 = vadd.f32 0.0, %v2833
      %v2835 = vpop.f32.mrb[0].mxu0
      %2836 = vmatprep.mubr.bf16.mxu0 0
      %2837 = vmatmul.mubr.bf16.gmra.mrb[0].mxu0 %v2678
      %v2838 = vpop.f32.mrb[0].mxu0
      %v2839 = vadd.f32 0.0, %v2838
      %v2840 = vpop.f32.mrb[0].mxu0
      %v2841 = vpop.f32.mrb[0].mxu0
      %v2842 = vadd.f32 0.0, %v2841
      %v2843 = vpop.f32.mrb[0].mxu0
      %2844 = vmatprep.mubr.bf16.mxu0 0
      %2845 = vmatmul.mubr.bf16.gmra.mrb[0].mxu0 %v2680
      %v2846 = vpop.f32.mrb[0].mxu0
      %v2847 = vadd.f32 0.0, %v2846
      %v2848 = vpop.f32.mrb[0].mxu0
      %v2849 = vpop.f32.mrb[0].mxu0
      %v2850 = vadd.f32 0.0, %v2849
      %v2851 = vpop.f32.mrb[0].mxu0
      %2852 = vmatprep.mubr.bf16.mxu0 0
      %2853 = vmatmul.mubr.bf16.gmra.mrb[0].mxu0 %v2682
      %v2854 = vpop.f32.mrb[0].mxu0
      %v2855 = vadd.f32 0.0, %v2854
      %v2856 = vpop.f32.mrb[0].mxu0
      %v2857 = vpop.f32.mrb[0].mxu0
      %v2858 = vadd.f32 0.0, %v2857
      %v2859 = vpop.f32.mrb[0].mxu0
      %2860 = vmatprep.mubr.bf16.mxu0 0
      %2861 = vmatmul.mubr.bf16.gmra.mrb[0].mxu0 %v2684
      %v2862 = vpop.f32.mrb[0].mxu0
      %v2863 = vadd.f32 0.0, %v2862
      %v2864 = vpop.f32.mrb[0].mxu0
      %v2865 = vpop.f32.mrb[0].mxu0
      %v2866 = vadd.f32 0.0, %v2865
      %v2867 = vpop.f32.mrb[0].mxu0
      %2868 = vmatprep.mubr.bf16.mxu0 0
      %2869 = vmatmul.mubr.bf16.gmra.mrb[0].mxu0 %v2686
      %v2870 = vpop.f32.mrb[0].mxu0
      %v2871 = vadd.f32 0.0, %v2870
      %v2872 = vpop.f32.mrb[0].mxu0
      %v2873 = vpop.f32.mrb[0].mxu0
      %v2874 = vadd.f32 0.0, %v2873
      %v2875 = vpop.f32.mrb[0].mxu0
      %2876 = vmatprep.mubr.bf16.mxu0 0
      %2877 = vmatmul.mubr.bf16.gmra.mrb[0].mxu0 %v2685
      %v2878 = vpop.f32.mrb[0].mxu0
      %v2879 = vadd.f32 0.0, %v2878
      %v2880 = vpop.f32.mrb[0].mxu0
      %v2881 = vpop.f32.mrb[0].mxu0
      %v2882 = vpop.f32.mrb[0].mxu0
      %2883 = vdwg.mxu0
      %v2884 = vadd.f32 %v2619, %v2783
      %v2885 = vadd.f32 %v2620, %v2786
      %v2886 = vadd.f32 %v2621, %v2791
      %v2887 = vadd.f32 %v2622, %v2794
      %v2888 = vadd.f32 %v2623, %v2799
      %v2889 = vadd.f32 %v2624, %v2802
      %v2890 = vadd.f32 %v2625, %v2807
      %v2891 = vadd.f32 %v2626, %v2810
      %v2892 = vadd.f32 %v2627, %v2815
      %v2893 = vadd.f32 %v2628, %v2818
      %v2894 = vadd.f32 %v2629, %v2823
      %v2895 = vadd.f32 %v2630, %v2826
      %v2896 = vadd.f32 %v2631, %v2831
      %v2897 = vadd.f32 %v2632, %v2834
      %v2898 = vadd.f32 %v2633, %v2839
      %v2899 = vadd.f32 %v2634, %v2842
      %v2900 = vadd.f32 %v2635, %v2847
      %v2901 = vadd.f32 %v2636, %v2850
      %v2902 = vadd.f32 %v2637, %v2855
      %v2903 = vadd.f32 %v2638, %v2858
      %v2904 = vadd.f32 %v2639, %v2863
      %v2905 = vadd.f32 %v2640, %v2866
      %v2906 = vadd.f32 %v2641, %v2871
      %v2907 = vadd.f32 %v2642, %v2874
      %v2908 = vadd.f32 %v2643, %v2879
      %v2909 = vld [vmem:[%s2] sm:$0x1]
      %v2911 = vlaneseq
      %v2912 = vshrl.u32 %v2911, 7
      %v2913 = vsub.s32 0, %v2912
      %v2914 = vrot.slane %v2909, %v2913
      %v2916 = vadd.f32 %v2884, %v2914
      %v2917 = vadd.f32 %v2885, %v2914
      %v2918 = vadd.f32 %v2886, %v2914
      %v2919 = vadd.f32 %v2887, %v2914
      %v2920 = vadd.f32 %v2888, %v2914
      %v2921 = vadd.f32 %v2889, %v2914
      %v2922 = vadd.f32 %v2890, %v2914
      %v2923 = vadd.f32 %v2891, %v2914
      %v2924 = vadd.f32 %v2892, %v2914
      %v2925 = vadd.f32 %v2893, %v2914
      %v2926 = vadd.f32 %v2894, %v2914
      %v2927 = vadd.f32 %v2895, %v2914
      %v2928 = vadd.f32 %v2896, %v2914
      %v2929 = vadd.f32 %v2897, %v2914
      %v2930 = vadd.f32 %v2898, %v2914
      %v2931 = vadd.f32 %v2899, %v2914
      %v2932 = vadd.f32 %v2900, %v2914
      %v2933 = vadd.f32 %v2901, %v2914
      %v2934 = vadd.f32 %v2902, %v2914
      %v2935 = vadd.f32 %v2903, %v2914
      %v2936 = vadd.f32 %v2904, %v2914
      %v2937 = vadd.f32 %v2905, %v2914
      %v2938 = vadd.f32 %v2906, %v2914
      %v2939 = vadd.f32 %v2907, %v2914
      %v2940 = vadd.f32 %v2908, %v2914
      %v2941 = vmax.f32 %v2916, 0.0
      %v2942 = vmax.f32 %v2917, 0.0
      %v2943 = vmax.f32 %v2918, 0.0
      %v2944 = vmax.f32 %v2919, 0.0
      %v2945 = vmax.f32 %v2920, 0.0
      %v2946 = vmax.f32 %v2921, 0.0
      %v2947 = vmax.f32 %v2922, 0.0
      %v2948 = vmax.f32 %v2923, 0.0
      %v2949 = vmax.f32 %v2924, 0.0
      %v2950 = vmax.f32 %v2925, 0.0
      %v2951 = vmax.f32 %v2926, 0.0
      %v2952 = vmax.f32 %v2927, 0.0
      %v2953 = vmax.f32 %v2928, 0.0
      %v2954 = vmax.f32 %v2929, 0.0
      %v2955 = vmax.f32 %v2930, 0.0
      %v2956 = vmax.f32 %v2931, 0.0
      %v2957 = vmax.f32 %v2932, 0.0
      %v2958 = vmax.f32 %v2933, 0.0
      %v2959 = vmax.f32 %v2934, 0.0
      %v2960 = vmax.f32 %v2935, 0.0
      %v2961 = vmax.f32 %v2936, 0.0
      %v2962 = vmax.f32 %v2937, 0.0
      %v2963 = vmax.f32 %v2938, 0.0
      %v2964 = vmax.f32 %v2939, 0.0
      %v2965 = vmax.f32 %v2940, 0.0
      %v2966 = vld [vmem:[%s239] sm:$0xff]
      %v2967 = vld [vmem:[%s239 + $0x8] sm:$0xff]
      %v2968 = vld [vmem:[%s239 + $0x10] sm:$0xff]
      %v2969 = vld [vmem:[%s239 + $0x18] sm:$0xff]
      %v2970 = vld [vmem:[%s239 + $0x20] sm:$0xff]
      %v2971 = vld [vmem:[%s239 + $0x28] sm:$0xff]
      %v2972 = vld [vmem:[%s239 + $0x30] sm:$0xff]
      %v2973 = vld [vmem:[%s239 + $0x38] sm:$0xff]
      %v2974 = vld [vmem:[%s239 + $0x40] sm:$0xff]
      %v2975 = vld [vmem:[%s239 + $0x48] sm:$0xff]
      %v2976 = vld [vmem:[%s239 + $0x50] sm:$0xff]
      %v2977 = vld [vmem:[%s239 + $0x58] sm:$0xff]
      %v2978 = vld [vmem:[%s239 + $0x60] sm:$0xff]
      %v2979 = vld [vmem:[%s239 + $0x68] sm:$0xff]
      %v2980 = vld [vmem:[%s239 + $0x70] sm:$0xff]
      %v2981 = vld [vmem:[%s239 + $0x78] sm:$0xff]
      %v2982 = vld [vmem:[%s239 + $0x80] sm:$0xff]
      %v2983 = vld [vmem:[%s239 + $0x88] sm:$0xff]
      %v2984 = vld [vmem:[%s239 + $0x90] sm:$0xff]
      %v2985 = vld [vmem:[%s239 + $0x98] sm:$0xff]
      %v2986 = vld [vmem:[%s239 + $0xa0] sm:$0xff]
      %v2987 = vld [vmem:[%s239 + $0xa8] sm:$0xff]
      %v2988 = vld [vmem:[%s239 + $0xb0] sm:$0xff]
      %v2989 = vld [vmem:[%s239 + $0xb8] sm:$0xff]
      %v2990 = vld [vmem:[%s239 + $0xc0] sm:$0x3f]
      %2992 = vset.pattern.permute.xlu0 0
      %2993 = vperm.xlu0 %2992, %v2966
      %v2994 = vpop.permute.xlu0 %2993
      %2997 = vset.pattern.permute.xlu0 0
      %2998 = vperm.xlu0 %2997, %v2967
      %v2999 = vpop.permute.xlu0 %2998
      %3002 = vset.pattern.permute.xlu0 0
      %3003 = vperm.xlu0 %3002, %v2968
      %v3004 = vpop.permute.xlu0 %3003
      %3007 = vset.pattern.permute.xlu0 0
      %3008 = vperm.xlu0 %3007, %v2969
      %v3009 = vpop.permute.xlu0 %3008
      %3012 = vset.pattern.permute.xlu0 0
      %3013 = vperm.xlu0 %3012, %v2970
      %v3014 = vpop.permute.xlu0 %3013
      %3017 = vset.pattern.permute.xlu0 0
      %3018 = vperm.xlu0 %3017, %v2971
      %v3019 = vpop.permute.xlu0 %3018
      %3022 = vset.pattern.permute.xlu0 0
      %3023 = vperm.xlu0 %3022, %v2972
      %v3024 = vpop.permute.xlu0 %3023
      %3027 = vset.pattern.permute.xlu0 0
      %3028 = vperm.xlu0 %3027, %v2973
      %v3029 = vpop.permute.xlu0 %3028
      %3032 = vset.pattern.permute.xlu0 0
      %3033 = vperm.xlu0 %3032, %v2974
      %v3034 = vpop.permute.xlu0 %3033
      %3037 = vset.pattern.permute.xlu0 0
      %3038 = vperm.xlu0 %3037, %v2975
      %v3039 = vpop.permute.xlu0 %3038
      %3042 = vset.pattern.permute.xlu0 0
      %3043 = vperm.xlu0 %3042, %v2976
      %v3044 = vpop.permute.xlu0 %3043
      %3047 = vset.pattern.permute.xlu0 0
      %3048 = vperm.xlu0 %3047, %v2977
      %v3049 = vpop.permute.xlu0 %3048
      %3052 = vset.pattern.permute.xlu0 0
      %3053 = vperm.xlu0 %3052, %v2978
      %v3054 = vpop.permute.xlu0 %3053
      %3057 = vset.pattern.permute.xlu0 0
      %3058 = vperm.xlu0 %3057, %v2979
      %v3059 = vpop.permute.xlu0 %3058
      %3062 = vset.pattern.permute.xlu0 0
      %3063 = vperm.xlu0 %3062, %v2980
      %v3064 = vpop.permute.xlu0 %3063
      %3067 = vset.pattern.permute.xlu0 0
      %3068 = vperm.xlu0 %3067, %v2981
      %v3069 = vpop.permute.xlu0 %3068
      %3072 = vset.pattern.permute.xlu0 0
      %3073 = vperm.xlu0 %3072, %v2982
      %v3074 = vpop.permute.xlu0 %3073
      %3077 = vset.pattern.permute.xlu0 0
      %3078 = vperm.xlu0 %3077, %v2983
      %v3079 = vpop.permute.xlu0 %3078
      %3082 = vset.pattern.permute.xlu0 0
      %3083 = vperm.xlu0 %3082, %v2984
      %v3084 = vpop.permute.xlu0 %3083
      %3087 = vset.pattern.permute.xlu0 0
      %3088 = vperm.xlu0 %3087, %v2985
      %v3089 = vpop.permute.xlu0 %3088
      %3092 = vset.pattern.permute.xlu0 0
      %3093 = vperm.xlu0 %3092, %v2986
      %v3094 = vpop.permute.xlu0 %3093
      %3097 = vset.pattern.permute.xlu0 0
      %3098 = vperm.xlu0 %3097, %v2987
      %v3099 = vpop.permute.xlu0 %3098
      %3102 = vset.pattern.permute.xlu0 0
      %3103 = vperm.xlu0 %3102, %v2988
      %v3104 = vpop.permute.xlu0 %3103
      %3107 = vset.pattern.permute.xlu0 0
      %3108 = vperm.xlu0 %3107, %v2989
      %v3109 = vpop.permute.xlu0 %3108
      %3112 = vset.pattern.permute.xlu0 0
      %3113 = vperm.xlu0 %3112, %v2990
      %v3114 = vpop.permute.xlu0 %3113
      %v3116 = vmul.f32 %v2941, %v2994
      %v3117 = vmul.f32 %v2942, %v2999
      %v3118 = vmul.f32 %v2943, %v3004
      %v3119 = vmul.f32 %v2944, %v3009
      %v3120 = vmul.f32 %v2945, %v3014
      %v3121 = vmul.f32 %v2946, %v3019
      %v3122 = vmul.f32 %v2947, %v3024
      %v3123 = vmul.f32 %v2948, %v3029
      %v3124 = vmul.f32 %v2949, %v3034
      %v3125 = vmul.f32 %v2950, %v3039
      %v3126 = vmul.f32 %v2951, %v3044
      %v3127 = vmul.f32 %v2952, %v3049
      %v3128 = vmul.f32 %v2953, %v3054
      %v3129 = vmul.f32 %v2954, %v3059
      %v3130 = vmul.f32 %v2955, %v3064
      %v3131 = vmul.f32 %v2956, %v3069
      %v3132 = vmul.f32 %v2957, %v3074
      %v3133 = vmul.f32 %v2958, %v3079
      %v3134 = vmul.f32 %v2959, %v3084
      %v3135 = vmul.f32 %v2960, %v3089
      %v3136 = vmul.f32 %v2961, %v3094
      %v3137 = vmul.f32 %v2962, %v3099
      %v3138 = vmul.f32 %v2963, %v3104
      %v3139 = vmul.f32 %v2964, %v3109
      %v3140 = vmul.f32 %v2965, %v3114
      %v3141 = vpack.c.bf16 %v3117, %v3116
      %v3142 = vpack.c.bf16 %v3119, %v3118
      %v3143 = vpack.c.bf16 %v3121, %v3120
      %v3144 = vpack.c.bf16 %v3123, %v3122
      %v3145 = vpack.c.bf16 %v3125, %v3124
      %v3146 = vpack.c.bf16 %v3127, %v3126
      %v3147 = vpack.c.bf16 %v3129, %v3128
      %v3148 = vpack.c.bf16 %v3131, %v3130
      %v3149 = vpack.c.bf16 %v3133, %v3132
      %v3150 = vpack.c.bf16 %v3135, %v3134
      %v3151 = vpack.c.bf16 %v3137, %v3136
      %v3152 = vpack.c.bf16 %v3139, %v3138
      %v3153 = vpack.c.bf16 %v3140, %v3140
      %v3154 = vld [vmem:[%s3] sm:$0xf]
      %v3155 = vld [vmem:[%s3 + $0x4] sm:$0xf]
      %v3156 = vld [vmem:[%s3 + $0x8] sm:$0xf]
      %v3157 = vld [vmem:[%s3 + $0xc] sm:$0xf]
      %v3158 = vld [vmem:[%s3 + $0x10] sm:$0xf]
      %v3159 = vld [vmem:[%s3 + $0x14] sm:$0xf]
      %v3160 = vld [vmem:[%s3 + $0x18] sm:$0xf]
      %v3161 = vld [vmem:[%s3 + $0x1c] sm:$0xf]
      %v3162 = vld [vmem:[%s3 + $0x20] sm:$0xf]
      %v3163 = vld [vmem:[%s3 + $0x24] sm:$0xf]
      %v3164 = vld [vmem:[%s3 + $0x28] sm:$0xf]
      %v3165 = vld [vmem:[%s3 + $0x2c] sm:$0xf]
      %v3166 = vld [vmem:[%s3 + $0x30] sm:$0xf]
      %v3167 = vld [vmem:[%s3 + $0x34] sm:$0xf]
      %v3168 = vld [vmem:[%s3 + $0x38] sm:$0xf]
      %v3169 = vld [vmem:[%s3 + $0x3c] sm:$0xf]
      %s3170 = scalar_lea.vmem %s3, 64
      %v3171 = vld [vmem:[%s3170] sm:$0xf]
      %v3172 = vld [vmem:[%s3170 + $0x4] sm:$0xf]
      %v3173 = vld [vmem:[%s3170 + $0x8] sm:$0xf]
      %v3174 = vld [vmem:[%s3170 + $0xc] sm:$0xf]
      %v3175 = vld [vmem:[%s3170 + $0x10] sm:$0xf]
      %v3176 = vld [vmem:[%s3170 + $0x14] sm:$0xf]
      %v3177 = vld [vmem:[%s3170 + $0x18] sm:$0xf]
      %v3178 = vld [vmem:[%s3170 + $0x1c] sm:$0xf]
      %v3179 = vld [vmem:[%s3170 + $0x20] sm:$0xf]
      %v3180 = vld [vmem:[%s3170 + $0x24] sm:$0xf]
      %v3181 = vld [vmem:[%s3170 + $0x28] sm:$0xf]
      %v3182 = vld [vmem:[%s3170 + $0x2c] sm:$0xf]
      %v3183 = vld [vmem:[%s3170 + $0x30] sm:$0xf]
      %v3184 = vld [vmem:[%s3170 + $0x34] sm:$0xf]
      %v3185 = vld [vmem:[%s3170 + $0x38] sm:$0xf]
      %v3186 = vld [vmem:[%s3170 + $0x3c] sm:$0xf]
      %v3188 = vshrl.u32 %v3141, 16
      %v3190 = vshll.u32 %v3141, 16
      %v3192 = vrot.slane %v3190, 1
      %v3193 = vor.u32 %v3188, %v3192
      %v3195 = vshll.u32 %v3142, 16
      %v3197 = vrot.slane %v3195, 1
      %v3198 = vsel %vm492, %v3193, %v3197
      %v3199 = vshrl.u32 %v3142, 16
      %v3201 = vor.u32 %v3199, %v3197
      %v3203 = vshll.u32 %v3143, 16
      %v3205 = vrot.slane %v3203, 1
      %v3206 = vsel %vm492, %v3201, %v3205
      %v3207 = vshrl.u32 %v3143, 16
      %v3209 = vor.u32 %v3207, %v3205
      %v3211 = vshll.u32 %v3144, 16
      %v3213 = vrot.slane %v3211, 1
      %v3214 = vsel %vm492, %v3209, %v3213
      %v3215 = vshrl.u32 %v3144, 16
      %v3217 = vor.u32 %v3215, %v3213
      %v3219 = vshll.u32 %v3145, 16
      %v3221 = vrot.slane %v3219, 1
      %v3222 = vsel %vm492, %v3217, %v3221
      %v3223 = vshrl.u32 %v3145, 16
      %v3225 = vor.u32 %v3223, %v3221
      %v3227 = vshll.u32 %v3146, 16
      %v3229 = vrot.slane %v3227, 1
      %v3230 = vsel %vm492, %v3225, %v3229
      %v3231 = vshrl.u32 %v3146, 16
      %v3233 = vor.u32 %v3231, %v3229
      %v3235 = vshll.u32 %v3147, 16
      %v3237 = vrot.slane %v3235, 1
      %v3238 = vsel %vm492, %v3233, %v3237
      %v3239 = vshrl.u32 %v3147, 16
      %v3241 = vor.u32 %v3239, %v3237
      %v3243 = vshll.u32 %v3148, 16
      %v3245 = vrot.slane %v3243, 1
      %v3246 = vsel %vm492, %v3241, %v3245
      %v3247 = vshrl.u32 %v3148, 16
      %v3249 = vor.u32 %v3247, %v3245
      %v3251 = vshll.u32 %v3149, 16
      %v3253 = vrot.slane %v3251, 1
      %v3254 = vsel %vm492, %v3249, %v3253
      %v3255 = vshrl.u32 %v3149, 16
      %v3257 = vor.u32 %v3255, %v3253
      %v3259 = vshll.u32 %v3150, 16
      %v3261 = vrot.slane %v3259, 1
      %v3262 = vsel %vm492, %v3257, %v3261
      %v3263 = vshrl.u32 %v3150, 16
      %v3265 = vor.u32 %v3263, %v3261
      %v3292 = vunpack.c.l.b16 %v3171
      %v3293 = vunpack.c.l.b16 %v3172
      %v3294 = vunpack.c.l.b16 %v3173
      %v3295 = vunpack.c.l.b16 %v3174
      %v3296 = vunpack.c.l.b16 %v3175
      %v3297 = vunpack.c.l.b16 %v3176
      %v3298 = vunpack.c.l.b16 %v3177
      %v3299 = vunpack.c.l.b16 %v3178
      %v3300 = vunpack.c.l.b16 %v3179
      %v3301 = vunpack.c.l.b16 %v3180
      %v3302 = vunpack.c.l.b16 %v3181
      %v3303 = vunpack.c.l.b16 %v3182
      %v3304 = vunpack.c.l.b16 %v3183
      %v3305 = vunpack.c.l.b16 %v3184
      %v3306 = vunpack.c.l.b16 %v3185
      %v3307 = vunpack.c.l.b16 %v3186
      %v3308 = vpack.c.b16 %v3293, %v3292
      %v3309 = vpack.c.b16 %v3295, %v3294
      %v3310 = vpack.c.b16 %v3297, %v3296
      %v3311 = vpack.c.b16 %v3299, %v3298
      %v3312 = vpack.c.b16 %v3301, %v3300
      %v3313 = vpack.c.b16 %v3303, %v3302
      %v3314 = vpack.c.b16 %v3305, %v3304
      %v3315 = vpack.c.b16 %v3307, %v3306
      %3324 = vmatprep.subr.bf16.mxu0 0
      %3325 = vmatpush1.bf16.msra.mxu0 %v3308
      %3326 = vmatprep.subr.bf16.mxu0 0
      %3327 = vmatpush1.bf16.msra.mxu0 %v3309
      %3328 = vmatprep.subr.bf16.mxu0 0
      %3329 = vmatpush1.bf16.msra.mxu0 %v3310
      %3330 = vmatprep.subr.bf16.mxu0 0
      %3331 = vmatpush1.bf16.msra.mxu0 %v3311
      %3332 = vmatprep.subr.bf16.mxu0 0
      %3333 = vmatpush1.bf16.msra.mxu0 %v3312
      %3334 = vmatprep.subr.bf16.mxu0 0
      %3335 = vmatpush1.bf16.msra.mxu0 %v3313
      %3336 = vmatprep.subr.bf16.mxu0 0
      %3337 = vmatpush1.bf16.msra.mxu0 %v3314
      %3338 = vmatprep.subr.bf16.mxu0 0
      %3339 = vmatpush1.bf16.msra.mxu0 %v3315
      %3340 = vmatprep.subr.bf16.mxu0 0
      %3341 = vmatpush1.bf16.msra.mxu0 0
      %3342 = vmatprep.subr.bf16.mxu0 0
      %3343 = vmatpush1.bf16.msra.mxu0 0
      %3344 = vmatprep.subr.bf16.mxu0 0
      %3345 = vmatpush1.bf16.msra.mxu0 0
      %3346 = vmatprep.subr.bf16.mxu0 0
      %3347 = vmatpush1.bf16.msra.mxu0 0
      %3348 = vmatprep.subr.bf16.mxu0 0
      %3349 = vmatpush1.bf16.msra.mxu0 0
      %3350 = vmatprep.subr.bf16.mxu0 0
      %3351 = vmatpush1.bf16.msra.mxu0 0
      %3352 = vmatprep.subr.bf16.mxu0 0
      %3353 = vmatpush1.bf16.msra.mxu0 0
      %3354 = vmatprep.subr.bf16.mxu0 0
      %3355 = vmatpush1.bf16.msra.mxu0 0
      %3356 = vmatprep.mubr.bf16.mxu0 0
      %3357 = vmatmul.mubr.bf16.gmra.mrb[0].mxu0 %v3198
      %v3358 = vpop.f32.mrb[0].mxu0
      %v3359 = vadd.f32 0.0, %v3358
      %v3360 = vpop.f32.mrb[0].mxu0
      %v3361 = vpop.f32.mrb[0].mxu0
      %v3362 = vadd.f32 0.0, %v3361
      %v3363 = vpop.f32.mrb[0].mxu0
      %3364 = vmatprep.mubr.bf16.mxu0 0
      %3365 = vmatmul.mubr.bf16.gmra.mrb[0].mxu0 %v3206
      %v3366 = vpop.f32.mrb[0].mxu0
      %v3367 = vadd.f32 0.0, %v3366
      %v3368 = vpop.f32.mrb[0].mxu0
      %v3369 = vpop.f32.mrb[0].mxu0
      %v3370 = vadd.f32 0.0, %v3369
      %v3371 = vpop.f32.mrb[0].mxu0
      %3372 = vmatprep.mubr.bf16.mxu0 0
      %3373 = vmatmul.mubr.bf16.gmra.mrb[0].mxu0 %v3214
      %v3374 = vpop.f32.mrb[0].mxu0
      %v3375 = vadd.f32 0.0, %v3374
      %v3376 = vpop.f32.mrb[0].mxu0
      %v3377 = vpop.f32.mrb[0].mxu0
      %v3378 = vadd.f32 0.0, %v3377
      %v3379 = vpop.f32.mrb[0].mxu0
      %3380 = vmatprep.mubr.bf16.mxu0 0
      %3381 = vmatmul.mubr.bf16.gmra.mrb[0].mxu0 %v3222
      %v3382 = vpop.f32.mrb[0].mxu0
      %v3383 = vadd.f32 0.0, %v3382
      %v3384 = vpop.f32.mrb[0].mxu0
      %v3385 = vpop.f32.mrb[0].mxu0
      %v3386 = vadd.f32 0.0, %v3385
      %v3387 = vpop.f32.mrb[0].mxu0
      %3388 = vmatprep.mubr.bf16.mxu0 0
      %3389 = vmatmul.mubr.bf16.gmra.mrb[0].mxu0 %v3230
      %v3390 = vpop.f32.mrb[0].mxu0
      %v3391 = vadd.f32 0.0, %v3390
      %v3392 = vpop.f32.mrb[0].mxu0
      %v3393 = vpop.f32.mrb[0].mxu0
      %v3394 = vadd.f32 0.0, %v3393
      %v3395 = vpop.f32.mrb[0].mxu0
      %3396 = vmatprep.mubr.bf16.mxu0 0
      %3397 = vmatmul.mubr.bf16.gmra.mrb[0].mxu0 %v3238
      %v3398 = vpop.f32.mrb[0].mxu0
      %v3399 = vadd.f32 0.0, %v3398
      %v3400 = vpop.f32.mrb[0].mxu0
      %v3401 = vpop.f32.mrb[0].mxu0
      %v3402 = vadd.f32 0.0, %v3401
      %v3403 = vpop.f32.mrb[0].mxu0
      %3404 = vmatprep.mubr.bf16.mxu0 0
      %3405 = vmatmul.mubr.bf16.gmra.mrb[0].mxu0 %v3246
      %v3406 = vpop.f32.mrb[0].mxu0
      %v3407 = vadd.f32 0.0, %v3406
      %v3408 = vpop.f32.mrb[0].mxu0
      %v3409 = vpop.f32.mrb[0].mxu0
      %v3410 = vadd.f32 0.0, %v3409
      %v3411 = vpop.f32.mrb[0].mxu0
      %3412 = vmatprep.mubr.bf16.mxu0 0
      %3413 = vmatmul.mubr.bf16.gmra.mrb[0].mxu0 %v3254
      %v3414 = vpop.f32.mrb[0].mxu0
      %v3415 = vadd.f32 0.0, %v3414
      %v3416 = vpop.f32.mrb[0].mxu0
      %v3417 = vpop.f32.mrb[0].mxu0
      %v3418 = vadd.f32 0.0, %v3417
      %v3419 = vpop.f32.mrb[0].mxu0
      %3420 = vmatprep.mubr.bf16.mxu0 0
      %3421 = vmatmul.mubr.bf16.gmra.mrb[0].mxu0 %v3262
      %v3422 = vpop.f32.mrb[0].mxu0
      %v3423 = vadd.f32 0.0, %v3422
      %v3424 = vpop.f32.mrb[0].mxu0
      %v3425 = vpop.f32.mrb[0].mxu0
      %v3426 = vadd.f32 0.0, %v3425
      %v3427 = vpop.f32.mrb[0].mxu0
      %3428 = vmatprep.mubr.bf16.mxu0 0
      %3429 = vmatmul.mubr.bf16.gmra.mrb[0].mxu0 %v3265
      %v3430 = vpop.f32.mrb[0].mxu0
      %v3431 = vadd.f32 0.0, %v3430
      %v3432 = vpop.f32.mrb[0].mxu0
      %v3433 = vpop.f32.mrb[0].mxu0
      %v3434 = vadd.f32 0.0, %v3433
      %v3435 = vpop.f32.mrb[0].mxu0
      %3436 = vdwg.mxu0
      %v3453 = vunpack.c.l.b16 %v3154
      %v3454 = vunpack.c.l.b16 %v3155
      %v3455 = vunpack.c.l.b16 %v3156
      %v3456 = vunpack.c.l.b16 %v3157
      %v3457 = vunpack.c.l.b16 %v3158
      %v3458 = vunpack.c.l.b16 %v3159
      %v3459 = vunpack.c.l.b16 %v3160
      %v3460 = vunpack.c.l.b16 %v3161
      %v3461 = vunpack.c.l.b16 %v3162
      %v3462 = vunpack.c.l.b16 %v3163
      %v3463 = vunpack.c.l.b16 %v3164
      %v3464 = vunpack.c.l.b16 %v3165
      %v3465 = vunpack.c.l.b16 %v3166
      %v3466 = vunpack.c.l.b16 %v3167
      %v3467 = vunpack.c.l.b16 %v3168
      %v3468 = vunpack.c.l.b16 %v3169
      %v3469 = vpack.c.b16 %v3454, %v3453
      %v3470 = vpack.c.b16 %v3456, %v3455
      %v3471 = vpack.c.b16 %v3458, %v3457
      %v3472 = vpack.c.b16 %v3460, %v3459
      %v3473 = vpack.c.b16 %v3462, %v3461
      %v3474 = vpack.c.b16 %v3464, %v3463
      %v3475 = vpack.c.b16 %v3466, %v3465
      %v3476 = vpack.c.b16 %v3468, %v3467
      %3485 = vmatprep.subr.bf16.mxu0 0
      %3486 = vmatpush1.bf16.msra.mxu0 %v3469
      %3487 = vmatprep.subr.bf16.mxu0 0
      %3488 = vmatpush1.bf16.msra.mxu0 %v3470
      %3489 = vmatprep.subr.bf16.mxu0 0
      %3490 = vmatpush1.bf16.msra.mxu0 %v3471
      %3491 = vmatprep.subr.bf16.mxu0 0
      %3492 = vmatpush1.bf16.msra.mxu0 %v3472
      %3493 = vmatprep.subr.bf16.mxu0 0
      %3494 = vmatpush1.bf16.msra.mxu0 %v3473
      %3495 = vmatprep.subr.bf16.mxu0 0
      %3496 = vmatpush1.bf16.msra.mxu0 %v3474
      %3497 = vmatprep.subr.bf16.mxu0 0
      %3498 = vmatpush1.bf16.msra.mxu0 %v3475
      %3499 = vmatprep.subr.bf16.mxu0 0
      %3500 = vmatpush1.bf16.msra.mxu0 %v3476
      %3501 = vmatprep.subr.bf16.mxu0 0
      %3502 = vmatpush1.bf16.msra.mxu0 0
      %3503 = vmatprep.subr.bf16.mxu0 0
      %3504 = vmatpush1.bf16.msra.mxu0 0
      %3505 = vmatprep.subr.bf16.mxu0 0
      %3506 = vmatpush1.bf16.msra.mxu0 0
      %3507 = vmatprep.subr.bf16.mxu0 0
      %3508 = vmatpush1.bf16.msra.mxu0 0
      %3509 = vmatprep.subr.bf16.mxu0 0
      %3510 = vmatpush1.bf16.msra.mxu0 0
      %3511 = vmatprep.subr.bf16.mxu0 0
      %3512 = vmatpush1.bf16.msra.mxu0 0
      %3513 = vmatprep.subr.bf16.mxu0 0
      %3514 = vmatpush1.bf16.msra.mxu0 0
      %3515 = vmatprep.subr.bf16.mxu0 0
      %3516 = vmatpush1.bf16.msra.mxu0 0
      %3517 = vmatprep.mubr.bf16.mxu0 0
      %3518 = vmatmul.mubr.bf16.gmra.mrb[0].mxu0 %v3141
      %v3519 = vpop.f32.mrb[0].mxu0
      %v3520 = vadd.f32 %v3359, %v3519
      %v3521 = vpop.f32.mrb[0].mxu0
      %v3522 = vpop.f32.mrb[0].mxu0
      %v3523 = vadd.f32 %v3362, %v3522
      %v3524 = vpop.f32.mrb[0].mxu0
      %3525 = vmatprep.mubr.bf16.mxu0 0
      %3526 = vmatmul.mubr.bf16.gmra.mrb[0].mxu0 %v3142
      %v3527 = vpop.f32.mrb[0].mxu0
      %v3528 = vadd.f32 %v3367, %v3527
      %v3529 = vpop.f32.mrb[0].mxu0
      %v3530 = vpop.f32.mrb[0].mxu0
      %v3531 = vadd.f32 %v3370, %v3530
      %v3532 = vpop.f32.mrb[0].mxu0
      %3533 = vmatprep.mubr.bf16.mxu0 0
      %3534 = vmatmul.mubr.bf16.gmra.mrb[0].mxu0 %v3143
      %v3535 = vpop.f32.mrb[0].mxu0
      %v3536 = vadd.f32 %v3375, %v3535
      %v3537 = vpop.f32.mrb[0].mxu0
      %v3538 = vpop.f32.mrb[0].mxu0
      %v3539 = vadd.f32 %v3378, %v3538
      %v3540 = vpop.f32.mrb[0].mxu0
      %3541 = vmatprep.mubr.bf16.mxu0 0
      %3542 = vmatmul.mubr.bf16.gmra.mrb[0].mxu0 %v3144
      %v3543 = vpop.f32.mrb[0].mxu0
      %v3544 = vadd.f32 %v3383, %v3543
      %v3545 = vpop.f32.mrb[0].mxu0
      %v3546 = vpop.f32.mrb[0].mxu0
      %v3547 = vadd.f32 %v3386, %v3546
      %v3548 = vpop.f32.mrb[0].mxu0
      %3549 = vmatprep.mubr.bf16.mxu0 0
      %3550 = vmatmul.mubr.bf16.gmra.mrb[0].mxu0 %v3145
      %v3551 = vpop.f32.mrb[0].mxu0
      %v3552 = vadd.f32 %v3391, %v3551
      %v3553 = vpop.f32.mrb[0].mxu0
      %v3554 = vpop.f32.mrb[0].mxu0
      %v3555 = vadd.f32 %v3394, %v3554
      %v3556 = vpop.f32.mrb[0].mxu0
      %3557 = vmatprep.mubr.bf16.mxu0 0
      %3558 = vmatmul.mubr.bf16.gmra.mrb[0].mxu0 %v3146
      %v3559 = vpop.f32.mrb[0].mxu0
      %v3560 = vadd.f32 %v3399, %v3559
      %v3561 = vpop.f32.mrb[0].mxu0
      %v3562 = vpop.f32.mrb[0].mxu0
      %v3563 = vadd.f32 %v3402, %v3562
      %v3564 = vpop.f32.mrb[0].mxu0
      %3565 = vmatprep.mubr.bf16.mxu0 0
      %3566 = vmatmul.mubr.bf16.gmra.mrb[0].mxu0 %v3147
      %v3567 = vpop.f32.mrb[0].mxu0
      %v3568 = vadd.f32 %v3407, %v3567
      %v3569 = vpop.f32.mrb[0].mxu0
      %v3570 = vpop.f32.mrb[0].mxu0
      %v3571 = vadd.f32 %v3410, %v3570
      %v3572 = vpop.f32.mrb[0].mxu0
      %3573 = vmatprep.mubr.bf16.mxu0 0
      %3574 = vmatmul.mubr.bf16.gmra.mrb[0].mxu0 %v3148
      %v3575 = vpop.f32.mrb[0].mxu0
      %v3576 = vadd.f32 %v3415, %v3575
      %v3577 = vpop.f32.mrb[0].mxu0
      %v3578 = vpop.f32.mrb[0].mxu0
      %v3579 = vadd.f32 %v3418, %v3578
      %v3580 = vpop.f32.mrb[0].mxu0
      %3581 = vmatprep.mubr.bf16.mxu0 0
      %3582 = vmatmul.mubr.bf16.gmra.mrb[0].mxu0 %v3149
      %v3583 = vpop.f32.mrb[0].mxu0
      %v3584 = vadd.f32 %v3423, %v3583
      %v3585 = vpop.f32.mrb[0].mxu0
      %v3586 = vpop.f32.mrb[0].mxu0
      %v3587 = vadd.f32 %v3426, %v3586
      %v3588 = vpop.f32.mrb[0].mxu0
      %3589 = vmatprep.mubr.bf16.mxu0 0
      %3590 = vmatmul.mubr.bf16.gmra.mrb[0].mxu0 %v3150
      %v3591 = vpop.f32.mrb[0].mxu0
      %v3592 = vadd.f32 %v3431, %v3591
      %v3593 = vpop.f32.mrb[0].mxu0
      %v3594 = vpop.f32.mrb[0].mxu0
      %v3595 = vadd.f32 %v3434, %v3594
      %v3596 = vpop.f32.mrb[0].mxu0
      %3597 = vdwg.mxu0
      %s3598 = scalar_lea.vmem %s3, 128
      %v3599 = vld [vmem:[%s3598] sm:$0xf]
      %v3600 = vld [vmem:[%s3598 + $0x4] sm:$0xf]
      %v3601 = vld [vmem:[%s3598 + $0x8] sm:$0xf]
      %v3602 = vld [vmem:[%s3598 + $0xc] sm:$0xf]
      %v3603 = vld [vmem:[%s3598 + $0x10] sm:$0xf]
      %v3604 = vld [vmem:[%s3598 + $0x14] sm:$0xf]
      %v3605 = vld [vmem:[%s3598 + $0x18] sm:$0xf]
      %v3606 = vld [vmem:[%s3598 + $0x1c] sm:$0xf]
      %v3607 = vld [vmem:[%s3598 + $0x20] sm:$0xf]
      %v3608 = vld [vmem:[%s3598 + $0x24] sm:$0xf]
      %v3609 = vld [vmem:[%s3598 + $0x28] sm:$0xf]
      %v3610 = vld [vmem:[%s3598 + $0x2c] sm:$0xf]
      %v3611 = vld [vmem:[%s3598 + $0x30] sm:$0xf]
      %v3612 = vld [vmem:[%s3598 + $0x34] sm:$0xf]
      %v3613 = vld [vmem:[%s3598 + $0x38] sm:$0xf]
      %v3614 = vld [vmem:[%s3598 + $0x3c] sm:$0xf]
      %v3625 = vrot.slane %v3141, 1
      %v3626 = vrot.slane %v3142, 1
      %v3627 = vsel %vm1007, %v3625, %v3626
      %v3628 = vrot.slane %v3143, 1
      %v3629 = vsel %vm1007, %v3626, %v3628
      %v3630 = vrot.slane %v3144, 1
      %v3631 = vsel %vm1007, %v3628, %v3630
      %v3632 = vrot.slane %v3145, 1
      %v3633 = vsel %vm1007, %v3630, %v3632
      %v3634 = vrot.slane %v3146, 1
      %v3635 = vsel %vm1007, %v3632, %v3634
      %v3636 = vrot.slane %v3147, 1
      %v3637 = vsel %vm1007, %v3634, %v3636
      %v3638 = vrot.slane %v3148, 1
      %v3639 = vsel %vm1007, %v3636, %v3638
      %v3640 = vrot.slane %v3149, 1
      %v3641 = vsel %vm1007, %v3638, %v3640
      %v3642 = vrot.slane %v3150, 1
      %v3643 = vsel %vm1007, %v3640, %v3642
      %v3670 = vunpack.c.l.b16 %v3599
      %v3671 = vunpack.c.l.b16 %v3600
      %v3672 = vunpack.c.l.b16 %v3601
      %v3673 = vunpack.c.l.b16 %v3602
      %v3674 = vunpack.c.l.b16 %v3603
      %v3675 = vunpack.c.l.b16 %v3604
      %v3676 = vunpack.c.l.b16 %v3605
      %v3677 = vunpack.c.l.b16 %v3606
      %v3678 = vunpack.c.l.b16 %v3607
      %v3679 = vunpack.c.l.b16 %v3608
      %v3680 = vunpack.c.l.b16 %v3609
      %v3681 = vunpack.c.l.b16 %v3610
      %v3682 = vunpack.c.l.b16 %v3611
      %v3683 = vunpack.c.l.b16 %v3612
      %v3684 = vunpack.c.l.b16 %v3613
      %v3685 = vunpack.c.l.b16 %v3614
      %v3686 = vpack.c.b16 %v3671, %v3670
      %v3687 = vpack.c.b16 %v3673, %v3672
      %v3688 = vpack.c.b16 %v3675, %v3674
      %v3689 = vpack.c.b16 %v3677, %v3676
      %v3690 = vpack.c.b16 %v3679, %v3678
      %v3691 = vpack.c.b16 %v3681, %v3680
      %v3692 = vpack.c.b16 %v3683, %v3682
      %v3693 = vpack.c.b16 %v3685, %v3684
      %3702 = vmatprep.subr.bf16.mxu0 0
      %3703 = vmatpush1.bf16.msra.mxu0 %v3686
      %3704 = vmatprep.subr.bf16.mxu0 0
      %3705 = vmatpush1.bf16.msra.mxu0 %v3687
      %3706 = vmatprep.subr.bf16.mxu0 0
      %3707 = vmatpush1.bf16.msra.mxu0 %v3688
      %3708 = vmatprep.subr.bf16.mxu0 0
      %3709 = vmatpush1.bf16.msra.mxu0 %v3689
      %3710 = vmatprep.subr.bf16.mxu0 0
      %3711 = vmatpush1.bf16.msra.mxu0 %v3690
      %3712 = vmatprep.subr.bf16.mxu0 0
      %3713 = vmatpush1.bf16.msra.mxu0 %v3691
      %3714 = vmatprep.subr.bf16.mxu0 0
      %3715 = vmatpush1.bf16.msra.mxu0 %v3692
      %3716 = vmatprep.subr.bf16.mxu0 0
      %3717 = vmatpush1.bf16.msra.mxu0 %v3693
      %3718 = vmatprep.subr.bf16.mxu0 0
      %3719 = vmatpush1.bf16.msra.mxu0 0
      %3720 = vmatprep.subr.bf16.mxu0 0
      %3721 = vmatpush1.bf16.msra.mxu0 0
      %3722 = vmatprep.subr.bf16.mxu0 0
      %3723 = vmatpush1.bf16.msra.mxu0 0
      %3724 = vmatprep.subr.bf16.mxu0 0
      %3725 = vmatpush1.bf16.msra.mxu0 0
      %3726 = vmatprep.subr.bf16.mxu0 0
      %3727 = vmatpush1.bf16.msra.mxu0 0
      %3728 = vmatprep.subr.bf16.mxu0 0
      %3729 = vmatpush1.bf16.msra.mxu0 0
      %3730 = vmatprep.subr.bf16.mxu0 0
      %3731 = vmatpush1.bf16.msra.mxu0 0
      %3732 = vmatprep.subr.bf16.mxu0 0
      %3733 = vmatpush1.bf16.msra.mxu0 0
      %3734 = vmatprep.mubr.bf16.mxu0 0
      %3735 = vmatmul.mubr.bf16.gmra.mrb[0].mxu0 %v3627
      %v3736 = vpop.f32.mrb[0].mxu0
      %v3737 = vadd.f32 0.0, %v3736
      %v3738 = vpop.f32.mrb[0].mxu0
      %v3739 = vpop.f32.mrb[0].mxu0
      %v3740 = vadd.f32 0.0, %v3739
      %v3741 = vpop.f32.mrb[0].mxu0
      %3742 = vmatprep.mubr.bf16.mxu0 0
      %3743 = vmatmul.mubr.bf16.gmra.mrb[0].mxu0 %v3629
      %v3744 = vpop.f32.mrb[0].mxu0
      %v3745 = vadd.f32 0.0, %v3744
      %v3746 = vpop.f32.mrb[0].mxu0
      %v3747 = vpop.f32.mrb[0].mxu0
      %v3748 = vadd.f32 0.0, %v3747
      %v3749 = vpop.f32.mrb[0].mxu0
      %3750 = vmatprep.mubr.bf16.mxu0 0
      %3751 = vmatmul.mubr.bf16.gmra.mrb[0].mxu0 %v3631
      %v3752 = vpop.f32.mrb[0].mxu0
      %v3753 = vadd.f32 0.0, %v3752
      %v3754 = vpop.f32.mrb[0].mxu0
      %v3755 = vpop.f32.mrb[0].mxu0
      %v3756 = vadd.f32 0.0, %v3755
      %v3757 = vpop.f32.mrb[0].mxu0
      %3758 = vmatprep.mubr.bf16.mxu0 0
      %3759 = vmatmul.mubr.bf16.gmra.mrb[0].mxu0 %v3633
      %v3760 = vpop.f32.mrb[0].mxu0
      %v3761 = vadd.f32 0.0, %v3760
      %v3762 = vpop.f32.mrb[0].mxu0
      %v3763 = vpop.f32.mrb[0].mxu0
      %v3764 = vadd.f32 0.0, %v3763
      %v3765 = vpop.f32.mrb[0].mxu0
      %3766 = vmatprep.mubr.bf16.mxu0 0
      %3767 = vmatmul.mubr.bf16.gmra.mrb[0].mxu0 %v3635
      %v3768 = vpop.f32.mrb[0].mxu0
      %v3769 = vadd.f32 0.0, %v3768
      %v3770 = vpop.f32.mrb[0].mxu0
      %v3771 = vpop.f32.mrb[0].mxu0
      %v3772 = vadd.f32 0.0, %v3771
      %v3773 = vpop.f32.mrb[0].mxu0
      %3774 = vmatprep.mubr.bf16.mxu0 0
      %3775 = vmatmul.mubr.bf16.gmra.mrb[0].mxu0 %v3637
      %v3776 = vpop.f32.mrb[0].mxu0
      %v3777 = vadd.f32 0.0, %v3776
      %v3778 = vpop.f32.mrb[0].mxu0
      %v3779 = vpop.f32.mrb[0].mxu0
      %v3780 = vadd.f32 0.0, %v3779
      %v3781 = vpop.f32.mrb[0].mxu0
      %3782 = vmatprep.mubr.bf16.mxu0 0
      %3783 = vmatmul.mubr.bf16.gmra.mrb[0].mxu0 %v3639
      %v3784 = vpop.f32.mrb[0].mxu0
      %v3785 = vadd.f32 0.0, %v3784
      %v3786 = vpop.f32.mrb[0].mxu0
      %v3787 = vpop.f32.mrb[0].mxu0
      %v3788 = vadd.f32 0.0, %v3787
      %v3789 = vpop.f32.mrb[0].mxu0
      %3790 = vmatprep.mubr.bf16.mxu0 0
      %3791 = vmatmul.mubr.bf16.gmra.mrb[0].mxu0 %v3641
      %v3792 = vpop.f32.mrb[0].mxu0
      %v3793 = vadd.f32 0.0, %v3792
      %v3794 = vpop.f32.mrb[0].mxu0
      %v3795 = vpop.f32.mrb[0].mxu0
      %v3796 = vadd.f32 0.0, %v3795
      %v3797 = vpop.f32.mrb[0].mxu0
      %3798 = vmatprep.mubr.bf16.mxu0 0
      %3799 = vmatmul.mubr.bf16.gmra.mrb[0].mxu0 %v3643
      %v3800 = vpop.f32.mrb[0].mxu0
      %v3801 = vadd.f32 0.0, %v3800
      %v3802 = vpop.f32.mrb[0].mxu0
      %v3803 = vpop.f32.mrb[0].mxu0
      %v3804 = vadd.f32 0.0, %v3803
      %v3805 = vpop.f32.mrb[0].mxu0
      %3806 = vmatprep.mubr.bf16.mxu0 0
      %3807 = vmatmul.mubr.bf16.gmra.mrb[0].mxu0 %v3642
      %v3808 = vpop.f32.mrb[0].mxu0
      %v3809 = vadd.f32 0.0, %v3808
      %v3810 = vpop.f32.mrb[0].mxu0
      %v3811 = vpop.f32.mrb[0].mxu0
      %v3812 = vadd.f32 0.0, %v3811
      %v3813 = vpop.f32.mrb[0].mxu0
      %3814 = vdwg.mxu0
      %v3815 = vadd.f32 %v3520, %v3737
      %v3816 = vadd.f32 %v3523, %v3740
      %v3817 = vadd.f32 %v3528, %v3745
      %v3818 = vadd.f32 %v3531, %v3748
      %v3819 = vadd.f32 %v3536, %v3753
      %v3820 = vadd.f32 %v3539, %v3756
      %v3821 = vadd.f32 %v3544, %v3761
      %v3822 = vadd.f32 %v3547, %v3764
      %v3823 = vadd.f32 %v3552, %v3769
      %v3824 = vadd.f32 %v3555, %v3772
      %v3825 = vadd.f32 %v3560, %v3777
      %v3826 = vadd.f32 %v3563, %v3780
      %v3827 = vadd.f32 %v3568, %v3785
      %v3828 = vadd.f32 %v3571, %v3788
      %v3829 = vadd.f32 %v3576, %v3793
      %v3830 = vadd.f32 %v3579, %v3796
      %v3831 = vadd.f32 %v3584, %v3801
      %v3832 = vadd.f32 %v3587, %v3804
      %v3833 = vadd.f32 %v3592, %v3809
      %v3834 = vadd.f32 %v3595, %v3812
      %s3835 = scalar_lea.vmem %s3, 192
      %v3836 = vld [vmem:[%s3835] sm:$0xf]
      %v3837 = vld [vmem:[%s3835 + $0x4] sm:$0xf]
      %v3838 = vld [vmem:[%s3835 + $0x8] sm:$0xf]
      %v3839 = vld [vmem:[%s3835 + $0xc] sm:$0xf]
      %v3840 = vld [vmem:[%s3835 + $0x10] sm:$0xf]
      %v3841 = vld [vmem:[%s3835 + $0x14] sm:$0xf]
      %v3842 = vld [vmem:[%s3835 + $0x18] sm:$0xf]
      %v3843 = vld [vmem:[%s3835 + $0x1c] sm:$0xf]
      %v3844 = vld [vmem:[%s3835 + $0x20] sm:$0xf]
      %v3845 = vld [vmem:[%s3835 + $0x24] sm:$0xf]
      %v3846 = vld [vmem:[%s3835 + $0x28] sm:$0xf]
      %v3847 = vld [vmem:[%s3835 + $0x2c] sm:$0xf]
      %v3848 = vld [vmem:[%s3835 + $0x30] sm:$0xf]
      %v3849 = vld [vmem:[%s3835 + $0x34] sm:$0xf]
      %v3850 = vld [vmem:[%s3835 + $0x38] sm:$0xf]
      %v3851 = vld [vmem:[%s3835 + $0x3c] sm:$0xf]
      %v3853 = vrot.slane %v3142, 2
      %v3854 = vrot.slane %v3143, 2
      %v3855 = vsel %vm1273, %v3853, %v3854
      %v3856 = vrot.slane %v3144, 2
      %v3857 = vsel %vm1273, %v3854, %v3856
      %v3858 = vrot.slane %v3145, 2
      %v3859 = vsel %vm1273, %v3856, %v3858
      %v3860 = vrot.slane %v3146, 2
      %v3861 = vsel %vm1273, %v3858, %v3860
      %v3862 = vrot.slane %v3147, 2
      %v3863 = vsel %vm1273, %v3860, %v3862
      %v3864 = vrot.slane %v3148, 2
      %v3865 = vsel %vm1273, %v3862, %v3864
      %v3866 = vrot.slane %v3149, 2
      %v3867 = vsel %vm1273, %v3864, %v3866
      %v3868 = vrot.slane %v3150, 2
      %v3869 = vsel %vm1273, %v3866, %v3868
      %v3870 = vrot.slane %v3151, 2
      %v3871 = vsel %vm1273, %v3868, %v3870
      %v3898 = vunpack.c.l.b16 %v3836
      %v3899 = vunpack.c.l.b16 %v3837
      %v3900 = vunpack.c.l.b16 %v3838
      %v3901 = vunpack.c.l.b16 %v3839
      %v3902 = vunpack.c.l.b16 %v3840
      %v3903 = vunpack.c.l.b16 %v3841
      %v3904 = vunpack.c.l.b16 %v3842
      %v3905 = vunpack.c.l.b16 %v3843
      %v3906 = vunpack.c.l.b16 %v3844
      %v3907 = vunpack.c.l.b16 %v3845
      %v3908 = vunpack.c.l.b16 %v3846
      %v3909 = vunpack.c.l.b16 %v3847
      %v3910 = vunpack.c.l.b16 %v3848
      %v3911 = vunpack.c.l.b16 %v3849
      %v3912 = vunpack.c.l.b16 %v3850
      %v3913 = vunpack.c.l.b16 %v3851
      %v3914 = vpack.c.b16 %v3899, %v3898
      %v3915 = vpack.c.b16 %v3901, %v3900
      %v3916 = vpack.c.b16 %v3903, %v3902
      %v3917 = vpack.c.b16 %v3905, %v3904
      %v3918 = vpack.c.b16 %v3907, %v3906
      %v3919 = vpack.c.b16 %v3909, %v3908
      %v3920 = vpack.c.b16 %v3911, %v3910
      %v3921 = vpack.c.b16 %v3913, %v3912
      %3930 = vmatprep.subr.bf16.mxu0 0
      %3931 = vmatpush1.bf16.msra.mxu0 %v3914
      %3932 = vmatprep.subr.bf16.mxu0 0
      %3933 = vmatpush1.bf16.msra.mxu0 %v3915
      %3934 = vmatprep.subr.bf16.mxu0 0
      %3935 = vmatpush1.bf16.msra.mxu0 %v3916
      %3936 = vmatprep.subr.bf16.mxu0 0
      %3937 = vmatpush1.bf16.msra.mxu0 %v3917
      %3938 = vmatprep.subr.bf16.mxu0 0
      %3939 = vmatpush1.bf16.msra.mxu0 %v3918
      %3940 = vmatprep.subr.bf16.mxu0 0
      %3941 = vmatpush1.bf16.msra.mxu0 %v3919
      %3942 = vmatprep.subr.bf16.mxu0 0
      %3943 = vmatpush1.bf16.msra.mxu0 %v3920
      %3944 = vmatprep.subr.bf16.mxu0 0
      %3945 = vmatpush1.bf16.msra.mxu0 %v3921
      %3946 = vmatprep.subr.bf16.mxu0 0
      %3947 = vmatpush1.bf16.msra.mxu0 0
      %3948 = vmatprep.subr.bf16.mxu0 0
      %3949 = vmatpush1.bf16.msra.mxu0 0
      %3950 = vmatprep.subr.bf16.mxu0 0
      %3951 = vmatpush1.bf16.msra.mxu0 0
      %3952 = vmatprep.subr.bf16.mxu0 0
      %3953 = vmatpush1.bf16.msra.mxu0 0
      %3954 = vmatprep.subr.bf16.mxu0 0
      %3955 = vmatpush1.bf16.msra.mxu0 0
      %3956 = vmatprep.subr.bf16.mxu0 0
      %3957 = vmatpush1.bf16.msra.mxu0 0
      %3958 = vmatprep.subr.bf16.mxu0 0
      %3959 = vmatpush1.bf16.msra.mxu0 0
      %3960 = vmatprep.subr.bf16.mxu0 0
      %3961 = vmatpush1.bf16.msra.mxu0 0
      %3962 = vmatprep.mubr.bf16.mxu0 0
      %3963 = vmatmul.mubr.bf16.gmra.mrb[0].mxu0 %v3855
      %v3964 = vpop.f32.mrb[0].mxu0
      %v3965 = vadd.f32 0.0, %v3964
      %v3966 = vpop.f32.mrb[0].mxu0
      %v3967 = vpop.f32.mrb[0].mxu0
      %v3968 = vadd.f32 0.0, %v3967
      %v3969 = vpop.f32.mrb[0].mxu0
      %3970 = vmatprep.mubr.bf16.mxu0 0
      %3971 = vmatmul.mubr.bf16.gmra.mrb[0].mxu0 %v3857
      %v3972 = vpop.f32.mrb[0].mxu0
      %v3973 = vadd.f32 0.0, %v3972
      %v3974 = vpop.f32.mrb[0].mxu0
      %v3975 = vpop.f32.mrb[0].mxu0
      %v3976 = vadd.f32 0.0, %v3975
      %v3977 = vpop.f32.mrb[0].mxu0
      %3978 = vmatprep.mubr.bf16.mxu0 0
      %3979 = vmatmul.mubr.bf16.gmra.mrb[0].mxu0 %v3859
      %v3980 = vpop.f32.mrb[0].mxu0
      %v3981 = vadd.f32 0.0, %v3980
      %v3982 = vpop.f32.mrb[0].mxu0
      %v3983 = vpop.f32.mrb[0].mxu0
      %v3984 = vadd.f32 0.0, %v3983
      %v3985 = vpop.f32.mrb[0].mxu0
      %3986 = vmatprep.mubr.bf16.mxu0 0
      %3987 = vmatmul.mubr.bf16.gmra.mrb[0].mxu0 %v3861
      %v3988 = vpop.f32.mrb[0].mxu0
      %v3989 = vadd.f32 0.0, %v3988
      %v3990 = vpop.f32.mrb[0].mxu0
      %v3991 = vpop.f32.mrb[0].mxu0
      %v3992 = vadd.f32 0.0, %v3991
      %v3993 = vpop.f32.mrb[0].mxu0
      %3994 = vmatprep.mubr.bf16.mxu0 0
      %3995 = vmatmul.mubr.bf16.gmra.mrb[0].mxu0 %v3863
      %v3996 = vpop.f32.mrb[0].mxu0
      %v3997 = vadd.f32 0.0, %v3996
      %v3998 = vpop.f32.mrb[0].mxu0
      %v3999 = vpop.f32.mrb[0].mxu0
      %v4000 = vadd.f32 0.0, %v3999
      %v4001 = vpop.f32.mrb[0].mxu0
      %4002 = vmatprep.mubr.bf16.mxu0 0
      %4003 = vmatmul.mubr.bf16.gmra.mrb[0].mxu0 %v3865
      %v4004 = vpop.f32.mrb[0].mxu0
      %v4005 = vadd.f32 0.0, %v4004
      %v4006 = vpop.f32.mrb[0].mxu0
      %v4007 = vpop.f32.mrb[0].mxu0
      %v4008 = vadd.f32 0.0, %v4007
      %v4009 = vpop.f32.mrb[0].mxu0
      %4010 = vmatprep.mubr.bf16.mxu0 0
      %4011 = vmatmul.mubr.bf16.gmra.mrb[0].mxu0 %v3867
      %v4012 = vpop.f32.mrb[0].mxu0
      %v4013 = vadd.f32 0.0, %v4012
      %v4014 = vpop.f32.mrb[0].mxu0
      %v4015 = vpop.f32.mrb[0].mxu0
      %v4016 = vadd.f32 0.0, %v4015
      %v4017 = vpop.f32.mrb[0].mxu0
      %4018 = vmatprep.mubr.bf16.mxu0 0
      %4019 = vmatmul.mubr.bf16.gmra.mrb[0].mxu0 %v3869
      %v4020 = vpop.f32.mrb[0].mxu0
      %v4021 = vadd.f32 0.0, %v4020
      %v4022 = vpop.f32.mrb[0].mxu0
      %v4023 = vpop.f32.mrb[0].mxu0
      %v4024 = vadd.f32 0.0, %v4023
      %v4025 = vpop.f32.mrb[0].mxu0
      %4026 = vmatprep.mubr.bf16.mxu0 0
      %4027 = vmatmul.mubr.bf16.gmra.mrb[0].mxu0 %v3871
      %v4028 = vpop.f32.mrb[0].mxu0
      %v4029 = vadd.f32 0.0, %v4028
      %v4030 = vpop.f32.mrb[0].mxu0
      %v4031 = vpop.f32.mrb[0].mxu0
      %v4032 = vadd.f32 0.0, %v4031
      %v4033 = vpop.f32.mrb[0].mxu0
      %4034 = vmatprep.mubr.bf16.mxu0 0
      %4035 = vmatmul.mubr.bf16.gmra.mrb[0].mxu0 %v3870
      %v4036 = vpop.f32.mrb[0].mxu0
      %v4037 = vadd.f32 0.0, %v4036
      %v4038 = vpop.f32.mrb[0].mxu0
      %v4039 = vpop.f32.mrb[0].mxu0
      %v4040 = vadd.f32 0.0, %v4039
      %v4041 = vpop.f32.mrb[0].mxu0
      %4042 = vdwg.mxu0
      %v4043 = vadd.f32 %v3815, %v3965
      %v4044 = vadd.f32 %v3816, %v3968
      %v4045 = vadd.f32 %v3817, %v3973
      %v4046 = vadd.f32 %v3818, %v3976
      %v4047 = vadd.f32 %v3819, %v3981
      %v4048 = vadd.f32 %v3820, %v3984
      %v4049 = vadd.f32 %v3821, %v3989
      %v4050 = vadd.f32 %v3822, %v3992
      %v4051 = vadd.f32 %v3823, %v3997
      %v4052 = vadd.f32 %v3824, %v4000
      %v4053 = vadd.f32 %v3825, %v4005
      %v4054 = vadd.f32 %v3826, %v4008
      %v4055 = vadd.f32 %v3827, %v4013
      %v4056 = vadd.f32 %v3828, %v4016
      %v4057 = vadd.f32 %v3829, %v4021
      %v4058 = vadd.f32 %v3830, %v4024
      %v4059 = vadd.f32 %v3831, %v4029
      %v4060 = vadd.f32 %v3832, %v4032
      %v4061 = vadd.f32 %v3833, %v4037
      %v4062 = vadd.f32 %v3834, %v4040
      %s4063 = scalar_lea.vmem %s3, 256
      %v4064 = vld [vmem:[%s4063] sm:$0xf]
      %v4065 = vld [vmem:[%s4063 + $0x4] sm:$0xf]
      %v4066 = vld [vmem:[%s4063 + $0x8] sm:$0xf]
      %v4067 = vld [vmem:[%s4063 + $0xc] sm:$0xf]
      %v4068 = vld [vmem:[%s4063 + $0x10] sm:$0xf]
      %v4069 = vld [vmem:[%s4063 + $0x14] sm:$0xf]
      %v4070 = vld [vmem:[%s4063 + $0x18] sm:$0xf]
      %v4071 = vld [vmem:[%s4063 + $0x1c] sm:$0xf]
      %v4072 = vld [vmem:[%s4063 + $0x20] sm:$0xf]
      %v4073 = vld [vmem:[%s4063 + $0x24] sm:$0xf]
      %v4074 = vld [vmem:[%s4063 + $0x28] sm:$0xf]
      %v4075 = vld [vmem:[%s4063 + $0x2c] sm:$0xf]
      %v4076 = vld [vmem:[%s4063 + $0x30] sm:$0xf]
      %v4077 = vld [vmem:[%s4063 + $0x34] sm:$0xf]
      %v4078 = vld [vmem:[%s4063 + $0x38] sm:$0xf]
      %v4079 = vld [vmem:[%s4063 + $0x3c] sm:$0xf]
      %v4080 = vrot.slane %v3199, 2
      %v4081 = vrot.slane %v3195, 3
      %v4082 = vor.u32 %v4080, %v4081
      %v4083 = vrot.slane %v3207, 2
      %v4084 = vrot.slane %v3203, 3
      %v4085 = vor.u32 %v4083, %v4084
      %v4086 = vsel %vm1538, %v4082, %v4085
      %v4087 = vrot.slane %v3215, 2
      %v4088 = vrot.slane %v3211, 3
      %v4089 = vor.u32 %v4087, %v4088
      %v4090 = vsel %vm1538, %v4085, %v4089
      %v4091 = vrot.slane %v3223, 2
      %v4092 = vrot.slane %v3219, 3
      %v4093 = vor.u32 %v4091, %v4092
      %v4094 = vsel %vm1538, %v4089, %v4093
      %v4095 = vrot.slane %v3231, 2
      %v4096 = vrot.slane %v3227, 3
      %v4097 = vor.u32 %v4095, %v4096
      %v4098 = vsel %vm1538, %v4093, %v4097
      %v4099 = vrot.slane %v3239, 2
      %v4100 = vrot.slane %v3235, 3
      %v4101 = vor.u32 %v4099, %v4100
      %v4102 = vsel %vm1538, %v4097, %v4101
      %v4103 = vrot.slane %v3247, 2
      %v4104 = vrot.slane %v3243, 3
      %v4105 = vor.u32 %v4103, %v4104
      %v4106 = vsel %vm1538, %v4101, %v4105
      %v4107 = vrot.slane %v3255, 2
      %v4108 = vrot.slane %v3251, 3
      %v4109 = vor.u32 %v4107, %v4108
      %v4110 = vsel %vm1538, %v4105, %v4109
      %v4111 = vrot.slane %v3263, 2
      %v4112 = vrot.slane %v3259, 3
      %v4113 = vor.u32 %v4111, %v4112
      %v4114 = vsel %vm1538, %v4109, %v4113
      %v4116 = vshrl.u32 %v3151, 16
      %v4118 = vrot.slane %v4116, 2
      %v4119 = vshll.u32 %v3151, 16
      %v4121 = vrot.slane %v4119, 3
      %v4122 = vor.u32 %v4118, %v4121
      %v4123 = vsel %vm1538, %v4113, %v4122
      %v4125 = vshll.u32 %v3152, 16
      %v4127 = vrot.slane %v4125, 3
      %v4128 = vsel %vm1538, %v4122, %v4127
      %v4155 = vunpack.c.l.b16 %v4064
      %v4156 = vunpack.c.l.b16 %v4065
      %v4157 = vunpack.c.l.b16 %v4066
      %v4158 = vunpack.c.l.b16 %v4067
      %v4159 = vunpack.c.l.b16 %v4068
      %v4160 = vunpack.c.l.b16 %v4069
      %v4161 = vunpack.c.l.b16 %v4070
      %v4162 = vunpack.c.l.b16 %v4071
      %v4163 = vunpack.c.l.b16 %v4072
      %v4164 = vunpack.c.l.b16 %v4073
      %v4165 = vunpack.c.l.b16 %v4074
      %v4166 = vunpack.c.l.b16 %v4075
      %v4167 = vunpack.c.l.b16 %v4076
      %v4168 = vunpack.c.l.b16 %v4077
      %v4169 = vunpack.c.l.b16 %v4078
      %v4170 = vunpack.c.l.b16 %v4079
      %v4171 = vpack.c.b16 %v4156, %v4155
      %v4172 = vpack.c.b16 %v4158, %v4157
      %v4173 = vpack.c.b16 %v4160, %v4159
      %v4174 = vpack.c.b16 %v4162, %v4161
      %v4175 = vpack.c.b16 %v4164, %v4163
      %v4176 = vpack.c.b16 %v4166, %v4165
      %v4177 = vpack.c.b16 %v4168, %v4167
      %v4178 = vpack.c.b16 %v4170, %v4169
      %4187 = vmatprep.subr.bf16.mxu0 0
      %4188 = vmatpush1.bf16.msra.mxu0 %v4171
      %4189 = vmatprep.subr.bf16.mxu0 0
      %4190 = vmatpush1.bf16.msra.mxu0 %v4172
      %4191 = vmatprep.subr.bf16.mxu0 0
      %4192 = vmatpush1.bf16.msra.mxu0 %v4173
      %4193 = vmatprep.subr.bf16.mxu0 0
      %4194 = vmatpush1.bf16.msra.mxu0 %v4174
      %4195 = vmatprep.subr.bf16.mxu0 0
      %4196 = vmatpush1.bf16.msra.mxu0 %v4175
      %4197 = vmatprep.subr.bf16.mxu0 0
      %4198 = vmatpush1.bf16.msra.mxu0 %v4176
      %4199 = vmatprep.subr.bf16.mxu0 0
      %4200 = vmatpush1.bf16.msra.mxu0 %v4177
      %4201 = vmatprep.subr.bf16.mxu0 0
      %4202 = vmatpush1.bf16.msra.mxu0 %v4178
      %4203 = vmatprep.subr.bf16.mxu0 0
      %4204 = vmatpush1.bf16.msra.mxu0 0
      %4205 = vmatprep.subr.bf16.mxu0 0
      %4206 = vmatpush1.bf16.msra.mxu0 0
      %4207 = vmatprep.subr.bf16.mxu0 0
      %4208 = vmatpush1.bf16.msra.mxu0 0
      %4209 = vmatprep.subr.bf16.mxu0 0
      %4210 = vmatpush1.bf16.msra.mxu0 0
      %4211 = vmatprep.subr.bf16.mxu0 0
      %4212 = vmatpush1.bf16.msra.mxu0 0
      %4213 = vmatprep.subr.bf16.mxu0 0
      %4214 = vmatpush1.bf16.msra.mxu0 0
      %4215 = vmatprep.subr.bf16.mxu0 0
      %4216 = vmatpush1.bf16.msra.mxu0 0
      %4217 = vmatprep.subr.bf16.mxu0 0
      %4218 = vmatpush1.bf16.msra.mxu0 0
      %4219 = vmatprep.mubr.bf16.mxu0 0
      %4220 = vmatmul.mubr.bf16.gmra.mrb[0].mxu0 %v4086
      %v4221 = vpop.f32.mrb[0].mxu0
      %v4222 = vadd.f32 0.0, %v4221
      %v4223 = vpop.f32.mrb[0].mxu0
      %v4224 = vpop.f32.mrb[0].mxu0
      %v4225 = vadd.f32 0.0, %v4224
      %v4226 = vpop.f32.mrb[0].mxu0
      %4227 = vmatprep.mubr.bf16.mxu0 0
      %4228 = vmatmul.mubr.bf16.gmra.mrb[0].mxu0 %v4090
      %v4229 = vpop.f32.mrb[0].mxu0
      %v4230 = vadd.f32 0.0, %v4229
      %v4231 = vpop.f32.mrb[0].mxu0
      %v4232 = vpop.f32.mrb[0].mxu0
      %v4233 = vadd.f32 0.0, %v4232
      %v4234 = vpop.f32.mrb[0].mxu0
      %4235 = vmatprep.mubr.bf16.mxu0 0
      %4236 = vmatmul.mubr.bf16.gmra.mrb[0].mxu0 %v4094
      %v4237 = vpop.f32.mrb[0].mxu0
      %v4238 = vadd.f32 0.0, %v4237
      %v4239 = vpop.f32.mrb[0].mxu0
      %v4240 = vpop.f32.mrb[0].mxu0
      %v4241 = vadd.f32 0.0, %v4240
      %v4242 = vpop.f32.mrb[0].mxu0
      %4243 = vmatprep.mubr.bf16.mxu0 0
      %4244 = vmatmul.mubr.bf16.gmra.mrb[0].mxu0 %v4098
      %v4245 = vpop.f32.mrb[0].mxu0
      %v4246 = vadd.f32 0.0, %v4245
      %v4247 = vpop.f32.mrb[0].mxu0
      %v4248 = vpop.f32.mrb[0].mxu0
      %v4249 = vadd.f32 0.0, %v4248
      %v4250 = vpop.f32.mrb[0].mxu0
      %4251 = vmatprep.mubr.bf16.mxu0 0
      %4252 = vmatmul.mubr.bf16.gmra.mrb[0].mxu0 %v4102
      %v4253 = vpop.f32.mrb[0].mxu0
      %v4254 = vadd.f32 0.0, %v4253
      %v4255 = vpop.f32.mrb[0].mxu0
      %v4256 = vpop.f32.mrb[0].mxu0
      %v4257 = vadd.f32 0.0, %v4256
      %v4258 = vpop.f32.mrb[0].mxu0
      %4259 = vmatprep.mubr.bf16.mxu0 0
      %4260 = vmatmul.mubr.bf16.gmra.mrb[0].mxu0 %v4106
      %v4261 = vpop.f32.mrb[0].mxu0
      %v4262 = vadd.f32 0.0, %v4261
      %v4263 = vpop.f32.mrb[0].mxu0
      %v4264 = vpop.f32.mrb[0].mxu0
      %v4265 = vadd.f32 0.0, %v4264
      %v4266 = vpop.f32.mrb[0].mxu0
      %4267 = vmatprep.mubr.bf16.mxu0 0
      %4268 = vmatmul.mubr.bf16.gmra.mrb[0].mxu0 %v4110
      %v4269 = vpop.f32.mrb[0].mxu0
      %v4270 = vadd.f32 0.0, %v4269
      %v4271 = vpop.f32.mrb[0].mxu0
      %v4272 = vpop.f32.mrb[0].mxu0
      %v4273 = vadd.f32 0.0, %v4272
      %v4274 = vpop.f32.mrb[0].mxu0
      %4275 = vmatprep.mubr.bf16.mxu0 0
      %4276 = vmatmul.mubr.bf16.gmra.mrb[0].mxu0 %v4114
      %v4277 = vpop.f32.mrb[0].mxu0
      %v4278 = vadd.f32 0.0, %v4277
      %v4279 = vpop.f32.mrb[0].mxu0
      %v4280 = vpop.f32.mrb[0].mxu0
      %v4281 = vadd.f32 0.0, %v4280
      %v4282 = vpop.f32.mrb[0].mxu0
      %4283 = vmatprep.mubr.bf16.mxu0 0
      %4284 = vmatmul.mubr.bf16.gmra.mrb[0].mxu0 %v4123
      %v4285 = vpop.f32.mrb[0].mxu0
      %v4286 = vadd.f32 0.0, %v4285
      %v4287 = vpop.f32.mrb[0].mxu0
      %v4288 = vpop.f32.mrb[0].mxu0
      %v4289 = vadd.f32 0.0, %v4288
      %v4290 = vpop.f32.mrb[0].mxu0
      %4291 = vmatprep.mubr.bf16.mxu0 0
      %4292 = vmatmul.mubr.bf16.gmra.mrb[0].mxu0 %v4128
      %v4293 = vpop.f32.mrb[0].mxu0
      %v4294 = vadd.f32 0.0, %v4293
      %v4295 = vpop.f32.mrb[0].mxu0
      %v4296 = vpop.f32.mrb[0].mxu0
      %v4297 = vadd.f32 0.0, %v4296
      %v4298 = vpop.f32.mrb[0].mxu0
      %4299 = vdwg.mxu0
      %v4300 = vadd.f32 %v4043, %v4222
      %v4301 = vadd.f32 %v4044, %v4225
      %v4302 = vadd.f32 %v4045, %v4230
      %v4303 = vadd.f32 %v4046, %v4233
      %v4304 = vadd.f32 %v4047, %v4238
      %v4305 = vadd.f32 %v4048, %v4241
      %v4306 = vadd.f32 %v4049, %v4246
      %v4307 = vadd.f32 %v4050, %v4249
      %v4308 = vadd.f32 %v4051, %v4254
      %v4309 = vadd.f32 %v4052, %v4257
      %v4310 = vadd.f32 %v4053, %v4262
      %v4311 = vadd.f32 %v4054, %v4265
      %v4312 = vadd.f32 %v4055, %v4270
      %v4313 = vadd.f32 %v4056, %v4273
      %v4314 = vadd.f32 %v4057, %v4278
      %v4315 = vadd.f32 %v4058, %v4281
      %v4316 = vadd.f32 %v4059, %v4286
      %v4317 = vadd.f32 %v4060, %v4289
      %v4318 = vadd.f32 %v4061, %v4294
      %v4319 = vadd.f32 %v4062, %v4297
      %s4320 = scalar_lea.vmem %s3, 320
      %v4321 = vld [vmem:[%s4320] sm:$0xf]
      %v4322 = vld [vmem:[%s4320 + $0x4] sm:$0xf]
      %v4323 = vld [vmem:[%s4320 + $0x8] sm:$0xf]
      %v4324 = vld [vmem:[%s4320 + $0xc] sm:$0xf]
      %v4325 = vld [vmem:[%s4320 + $0x10] sm:$0xf]
      %v4326 = vld [vmem:[%s4320 + $0x14] sm:$0xf]
      %v4327 = vld [vmem:[%s4320 + $0x18] sm:$0xf]
      %v4328 = vld [vmem:[%s4320 + $0x1c] sm:$0xf]
      %v4329 = vld [vmem:[%s4320 + $0x20] sm:$0xf]
      %v4330 = vld [vmem:[%s4320 + $0x24] sm:$0xf]
      %v4331 = vld [vmem:[%s4320 + $0x28] sm:$0xf]
      %v4332 = vld [vmem:[%s4320 + $0x2c] sm:$0xf]
      %v4333 = vld [vmem:[%s4320 + $0x30] sm:$0xf]
      %v4334 = vld [vmem:[%s4320 + $0x34] sm:$0xf]
      %v4335 = vld [vmem:[%s4320 + $0x38] sm:$0xf]
      %v4336 = vld [vmem:[%s4320 + $0x3c] sm:$0xf]
      %v4338 = vrot.slane %v3142, 3
      %v4339 = vrot.slane %v3143, 3
      %v4340 = vsel %vm1834, %v4338, %v4339
      %v4341 = vrot.slane %v3144, 3
      %v4342 = vsel %vm1834, %v4339, %v4341
      %v4343 = vrot.slane %v3145, 3
      %v4344 = vsel %vm1834, %v4341, %v4343
      %v4345 = vrot.slane %v3146, 3
      %v4346 = vsel %vm1834, %v4343, %v4345
      %v4347 = vrot.slane %v3147, 3
      %v4348 = vsel %vm1834, %v4345, %v4347
      %v4349 = vrot.slane %v3148, 3
      %v4350 = vsel %vm1834, %v4347, %v4349
      %v4351 = vrot.slane %v3149, 3
      %v4352 = vsel %vm1834, %v4349, %v4351
      %v4353 = vrot.slane %v3150, 3
      %v4354 = vsel %vm1834, %v4351, %v4353
      %v4355 = vrot.slane %v3151, 3
      %v4356 = vsel %vm1834, %v4353, %v4355
      %v4357 = vrot.slane %v3152, 3
      %v4358 = vsel %vm1834, %v4355, %v4357
      %v4385 = vunpack.c.l.b16 %v4321
      %v4386 = vunpack.c.l.b16 %v4322
      %v4387 = vunpack.c.l.b16 %v4323
      %v4388 = vunpack.c.l.b16 %v4324
      %v4389 = vunpack.c.l.b16 %v4325
      %v4390 = vunpack.c.l.b16 %v4326
      %v4391 = vunpack.c.l.b16 %v4327
      %v4392 = vunpack.c.l.b16 %v4328
      %v4393 = vunpack.c.l.b16 %v4329
      %v4394 = vunpack.c.l.b16 %v4330
      %v4395 = vunpack.c.l.b16 %v4331
      %v4396 = vunpack.c.l.b16 %v4332
      %v4397 = vunpack.c.l.b16 %v4333
      %v4398 = vunpack.c.l.b16 %v4334
      %v4399 = vunpack.c.l.b16 %v4335
      %v4400 = vunpack.c.l.b16 %v4336
      %v4401 = vpack.c.b16 %v4386, %v4385
      %v4402 = vpack.c.b16 %v4388, %v4387
      %v4403 = vpack.c.b16 %v4390, %v4389
      %v4404 = vpack.c.b16 %v4392, %v4391
      %v4405 = vpack.c.b16 %v4394, %v4393
      %v4406 = vpack.c.b16 %v4396, %v4395
      %v4407 = vpack.c.b16 %v4398, %v4397
      %v4408 = vpack.c.b16 %v4400, %v4399
      %4417 = vmatprep.subr.bf16.mxu0 0
      %4418 = vmatpush1.bf16.msra.mxu0 %v4401
      %4419 = vmatprep.subr.bf16.mxu0 0
      %4420 = vmatpush1.bf16.msra.mxu0 %v4402
      %4421 = vmatprep.subr.bf16.mxu0 0
      %4422 = vmatpush1.bf16.msra.mxu0 %v4403
      %4423 = vmatprep.subr.bf16.mxu0 0
      %4424 = vmatpush1.bf16.msra.mxu0 %v4404
      %4425 = vmatprep.subr.bf16.mxu0 0
      %4426 = vmatpush1.bf16.msra.mxu0 %v4405
      %4427 = vmatprep.subr.bf16.mxu0 0
      %4428 = vmatpush1.bf16.msra.mxu0 %v4406
      %4429 = vmatprep.subr.bf16.mxu0 0
      %4430 = vmatpush1.bf16.msra.mxu0 %v4407
      %4431 = vmatprep.subr.bf16.mxu0 0
      %4432 = vmatpush1.bf16.msra.mxu0 %v4408
      %4433 = vmatprep.subr.bf16.mxu0 0
      %4434 = vmatpush1.bf16.msra.mxu0 0
      %4435 = vmatprep.subr.bf16.mxu0 0
      %4436 = vmatpush1.bf16.msra.mxu0 0
      %4437 = vmatprep.subr.bf16.mxu0 0
      %4438 = vmatpush1.bf16.msra.mxu0 0
      %4439 = vmatprep.subr.bf16.mxu0 0
      %4440 = vmatpush1.bf16.msra.mxu0 0
      %4441 = vmatprep.subr.bf16.mxu0 0
      %4442 = vmatpush1.bf16.msra.mxu0 0
      %4443 = vmatprep.subr.bf16.mxu0 0
      %4444 = vmatpush1.bf16.msra.mxu0 0
      %4445 = vmatprep.subr.bf16.mxu0 0
      %4446 = vmatpush1.bf16.msra.mxu0 0
      %4447 = vmatprep.subr.bf16.mxu0 0
      %4448 = vmatpush1.bf16.msra.mxu0 0
      %4449 = vmatprep.mubr.bf16.mxu0 0
      %4450 = vmatmul.mubr.bf16.gmra.mrb[0].mxu0 %v4340
      %v4451 = vpop.f32.mrb[0].mxu0
      %v4452 = vadd.f32 0.0, %v4451
      %v4453 = vpop.f32.mrb[0].mxu0
      %v4454 = vpop.f32.mrb[0].mxu0
      %v4455 = vadd.f32 0.0, %v4454
      %v4456 = vpop.f32.mrb[0].mxu0
      %4457 = vmatprep.mubr.bf16.mxu0 0
      %4458 = vmatmul.mubr.bf16.gmra.mrb[0].mxu0 %v4342
      %v4459 = vpop.f32.mrb[0].mxu0
      %v4460 = vadd.f32 0.0, %v4459
      %v4461 = vpop.f32.mrb[0].mxu0
      %v4462 = vpop.f32.mrb[0].mxu0
      %v4463 = vadd.f32 0.0, %v4462
      %v4464 = vpop.f32.mrb[0].mxu0
      %4465 = vmatprep.mubr.bf16.mxu0 0
      %4466 = vmatmul.mubr.bf16.gmra.mrb[0].mxu0 %v4344
      %v4467 = vpop.f32.mrb[0].mxu0
      %v4468 = vadd.f32 0.0, %v4467
      %v4469 = vpop.f32.mrb[0].mxu0
      %v4470 = vpop.f32.mrb[0].mxu0
      %v4471 = vadd.f32 0.0, %v4470
      %v4472 = vpop.f32.mrb[0].mxu0
      %4473 = vmatprep.mubr.bf16.mxu0 0
      %4474 = vmatmul.mubr.bf16.gmra.mrb[0].mxu0 %v4346
      %v4475 = vpop.f32.mrb[0].mxu0
      %v4476 = vadd.f32 0.0, %v4475
      %v4477 = vpop.f32.mrb[0].mxu0
      %v4478 = vpop.f32.mrb[0].mxu0
      %v4479 = vadd.f32 0.0, %v4478
      %v4480 = vpop.f32.mrb[0].mxu0
      %4481 = vmatprep.mubr.bf16.mxu0 0
      %4482 = vmatmul.mubr.bf16.gmra.mrb[0].mxu0 %v4348
      %v4483 = vpop.f32.mrb[0].mxu0
      %v4484 = vadd.f32 0.0, %v4483
      %v4485 = vpop.f32.mrb[0].mxu0
      %v4486 = vpop.f32.mrb[0].mxu0
      %v4487 = vadd.f32 0.0, %v4486
      %v4488 = vpop.f32.mrb[0].mxu0
      %4489 = vmatprep.mubr.bf16.mxu0 0
      %4490 = vmatmul.mubr.bf16.gmra.mrb[0].mxu0 %v4350
      %v4491 = vpop.f32.mrb[0].mxu0
      %v4492 = vadd.f32 0.0, %v4491
      %v4493 = vpop.f32.mrb[0].mxu0
      %v4494 = vpop.f32.mrb[0].mxu0
      %v4495 = vadd.f32 0.0, %v4494
      %v4496 = vpop.f32.mrb[0].mxu0
      %4497 = vmatprep.mubr.bf16.mxu0 0
      %4498 = vmatmul.mubr.bf16.gmra.mrb[0].mxu0 %v4352
      %v4499 = vpop.f32.mrb[0].mxu0
      %v4500 = vadd.f32 0.0, %v4499
      %v4501 = vpop.f32.mrb[0].mxu0
      %v4502 = vpop.f32.mrb[0].mxu0
      %v4503 = vadd.f32 0.0, %v4502
      %v4504 = vpop.f32.mrb[0].mxu0
      %4505 = vmatprep.mubr.bf16.mxu0 0
      %4506 = vmatmul.mubr.bf16.gmra.mrb[0].mxu0 %v4354
      %v4507 = vpop.f32.mrb[0].mxu0
      %v4508 = vadd.f32 0.0, %v4507
      %v4509 = vpop.f32.mrb[0].mxu0
      %v4510 = vpop.f32.mrb[0].mxu0
      %v4511 = vadd.f32 0.0, %v4510
      %v4512 = vpop.f32.mrb[0].mxu0
      %4513 = vmatprep.mubr.bf16.mxu0 0
      %4514 = vmatmul.mubr.bf16.gmra.mrb[0].mxu0 %v4356
      %v4515 = vpop.f32.mrb[0].mxu0
      %v4516 = vadd.f32 0.0, %v4515
      %v4517 = vpop.f32.mrb[0].mxu0
      %v4518 = vpop.f32.mrb[0].mxu0
      %v4519 = vadd.f32 0.0, %v4518
      %v4520 = vpop.f32.mrb[0].mxu0
      %4521 = vmatprep.mubr.bf16.mxu0 0
      %4522 = vmatmul.mubr.bf16.gmra.mrb[0].mxu0 %v4358
      %v4523 = vpop.f32.mrb[0].mxu0
      %v4524 = vadd.f32 0.0, %v4523
      %v4525 = vpop.f32.mrb[0].mxu0
      %v4526 = vpop.f32.mrb[0].mxu0
      %v4527 = vadd.f32 0.0, %v4526
      %v4528 = vpop.f32.mrb[0].mxu0
      %4529 = vdwg.mxu0
      %v4530 = vadd.f32 %v4300, %v4452
      %v4531 = vadd.f32 %v4301, %v4455
      %v4532 = vadd.f32 %v4302, %v4460
      %v4533 = vadd.f32 %v4303, %v4463
      %v4534 = vadd.f32 %v4304, %v4468
      %v4535 = vadd.f32 %v4305, %v4471
      %v4536 = vadd.f32 %v4306, %v4476
      %v4537 = vadd.f32 %v4307, %v4479
      %v4538 = vadd.f32 %v4308, %v4484
      %v4539 = vadd.f32 %v4309, %v4487
      %v4540 = vadd.f32 %v4310, %v4492
      %v4541 = vadd.f32 %v4311, %v4495
      %v4542 = vadd.f32 %v4312, %v4500
      %v4543 = vadd.f32 %v4313, %v4503
      %v4544 = vadd.f32 %v4314, %v4508
      %v4545 = vadd.f32 %v4315, %v4511
      %v4546 = vadd.f32 %v4316, %v4516
      %v4547 = vadd.f32 %v4317, %v4519
      %v4548 = vadd.f32 %v4318, %v4524
      %v4549 = vadd.f32 %v4319, %v4527
      %s4550 = scalar_lea.vmem %s3, 384
      %v4551 = vld [vmem:[%s4550] sm:$0xf]
      %v4552 = vld [vmem:[%s4550 + $0x4] sm:$0xf]
      %v4553 = vld [vmem:[%s4550 + $0x8] sm:$0xf]
      %v4554 = vld [vmem:[%s4550 + $0xc] sm:$0xf]
      %v4555 = vld [vmem:[%s4550 + $0x10] sm:$0xf]
      %v4556 = vld [vmem:[%s4550 + $0x14] sm:$0xf]
      %v4557 = vld [vmem:[%s4550 + $0x18] sm:$0xf]
      %v4558 = vld [vmem:[%s4550 + $0x1c] sm:$0xf]
      %v4559 = vld [vmem:[%s4550 + $0x20] sm:$0xf]
      %v4560 = vld [vmem:[%s4550 + $0x24] sm:$0xf]
      %v4561 = vld [vmem:[%s4550 + $0x28] sm:$0xf]
      %v4562 = vld [vmem:[%s4550 + $0x2c] sm:$0xf]
      %v4563 = vld [vmem:[%s4550 + $0x30] sm:$0xf]
      %v4564 = vld [vmem:[%s4550 + $0x34] sm:$0xf]
      %v4565 = vld [vmem:[%s4550 + $0x38] sm:$0xf]
      %v4566 = vld [vmem:[%s4550 + $0x3c] sm:$0xf]
      %v4568 = vrot.slane %v3143, 4
      %v4569 = vrot.slane %v3144, 4
      %v4570 = vsel %vm2100, %v4568, %v4569
      %v4571 = vrot.slane %v3145, 4
      %v4572 = vsel %vm2100, %v4569, %v4571
      %v4573 = vrot.slane %v3146, 4
      %v4574 = vsel %vm2100, %v4571, %v4573
      %v4575 = vrot.slane %v3147, 4
      %v4576 = vsel %vm2100, %v4573, %v4575
      %v4577 = vrot.slane %v3148, 4
      %v4578 = vsel %vm2100, %v4575, %v4577
      %v4579 = vrot.slane %v3149, 4
      %v4580 = vsel %vm2100, %v4577, %v4579
      %v4581 = vrot.slane %v3150, 4
      %v4582 = vsel %vm2100, %v4579, %v4581
      %v4583 = vrot.slane %v3151, 4
      %v4584 = vsel %vm2100, %v4581, %v4583
      %v4585 = vrot.slane %v3152, 4
      %v4586 = vsel %vm2100, %v4583, %v4585
      %v4587 = vrot.slane %v3153, 4
      %v4588 = vsel %vm2100, %v4585, %v4587
      %v4615 = vunpack.c.l.b16 %v4551
      %v4616 = vunpack.c.l.b16 %v4552
      %v4617 = vunpack.c.l.b16 %v4553
      %v4618 = vunpack.c.l.b16 %v4554
      %v4619 = vunpack.c.l.b16 %v4555
      %v4620 = vunpack.c.l.b16 %v4556
      %v4621 = vunpack.c.l.b16 %v4557
      %v4622 = vunpack.c.l.b16 %v4558
      %v4623 = vunpack.c.l.b16 %v4559
      %v4624 = vunpack.c.l.b16 %v4560
      %v4625 = vunpack.c.l.b16 %v4561
      %v4626 = vunpack.c.l.b16 %v4562
      %v4627 = vunpack.c.l.b16 %v4563
      %v4628 = vunpack.c.l.b16 %v4564
      %v4629 = vunpack.c.l.b16 %v4565
      %v4630 = vunpack.c.l.b16 %v4566
      %v4631 = vpack.c.b16 %v4616, %v4615
      %v4632 = vpack.c.b16 %v4618, %v4617
      %v4633 = vpack.c.b16 %v4620, %v4619
      %v4634 = vpack.c.b16 %v4622, %v4621
      %v4635 = vpack.c.b16 %v4624, %v4623
      %v4636 = vpack.c.b16 %v4626, %v4625
      %v4637 = vpack.c.b16 %v4628, %v4627
      %v4638 = vpack.c.b16 %v4630, %v4629
      %4647 = vmatprep.subr.bf16.mxu0 0
      %4648 = vmatpush1.bf16.msra.mxu0 %v4631
      %4649 = vmatprep.subr.bf16.mxu0 0
      %4650 = vmatpush1.bf16.msra.mxu0 %v4632
      %4651 = vmatprep.subr.bf16.mxu0 0
      %4652 = vmatpush1.bf16.msra.mxu0 %v4633
      %4653 = vmatprep.subr.bf16.mxu0 0
      %4654 = vmatpush1.bf16.msra.mxu0 %v4634
      %4655 = vmatprep.subr.bf16.mxu0 0
      %4656 = vmatpush1.bf16.msra.mxu0 %v4635
      %4657 = vmatprep.subr.bf16.mxu0 0
      %4658 = vmatpush1.bf16.msra.mxu0 %v4636
      %4659 = vmatprep.subr.bf16.mxu0 0
      %4660 = vmatpush1.bf16.msra.mxu0 %v4637
      %4661 = vmatprep.subr.bf16.mxu0 0
      %4662 = vmatpush1.bf16.msra.mxu0 %v4638
      %4663 = vmatprep.subr.bf16.mxu0 0
      %4664 = vmatpush1.bf16.msra.mxu0 0
      %4665 = vmatprep.subr.bf16.mxu0 0
      %4666 = vmatpush1.bf16.msra.mxu0 0
      %4667 = vmatprep.subr.bf16.mxu0 0
      %4668 = vmatpush1.bf16.msra.mxu0 0
      %4669 = vmatprep.subr.bf16.mxu0 0
      %4670 = vmatpush1.bf16.msra.mxu0 0
      %4671 = vmatprep.subr.bf16.mxu0 0
      %4672 = vmatpush1.bf16.msra.mxu0 0
      %4673 = vmatprep.subr.bf16.mxu0 0
      %4674 = vmatpush1.bf16.msra.mxu0 0
      %4675 = vmatprep.subr.bf16.mxu0 0
      %4676 = vmatpush1.bf16.msra.mxu0 0
      %4677 = vmatprep.subr.bf16.mxu0 0
      %4678 = vmatpush1.bf16.msra.mxu0 0
      %4679 = vmatprep.mubr.bf16.mxu0 0
      %4680 = vmatmul.mubr.bf16.gmra.mrb[0].mxu0 %v4570
      %v4681 = vpop.f32.mrb[0].mxu0
      %v4682 = vadd.f32 0.0, %v4681
      %v4683 = vpop.f32.mrb[0].mxu0
      %v4684 = vpop.f32.mrb[0].mxu0
      %v4685 = vadd.f32 0.0, %v4684
      %v4686 = vpop.f32.mrb[0].mxu0
      %4687 = vmatprep.mubr.bf16.mxu0 0
      %4688 = vmatmul.mubr.bf16.gmra.mrb[0].mxu0 %v4572
      %v4689 = vpop.f32.mrb[0].mxu0
      %v4690 = vadd.f32 0.0, %v4689
      %v4691 = vpop.f32.mrb[0].mxu0
      %v4692 = vpop.f32.mrb[0].mxu0
      %v4693 = vadd.f32 0.0, %v4692
      %v4694 = vpop.f32.mrb[0].mxu0
      %4695 = vmatprep.mubr.bf16.mxu0 0
      %4696 = vmatmul.mubr.bf16.gmra.mrb[0].mxu0 %v4574
      %v4697 = vpop.f32.mrb[0].mxu0
      %v4698 = vadd.f32 0.0, %v4697
      %v4699 = vpop.f32.mrb[0].mxu0
      %v4700 = vpop.f32.mrb[0].mxu0
      %v4701 = vadd.f32 0.0, %v4700
      %v4702 = vpop.f32.mrb[0].mxu0
      %4703 = vmatprep.mubr.bf16.mxu0 0
      %4704 = vmatmul.mubr.bf16.gmra.mrb[0].mxu0 %v4576
      %v4705 = vpop.f32.mrb[0].mxu0
      %v4706 = vadd.f32 0.0, %v4705
      %v4707 = vpop.f32.mrb[0].mxu0
      %v4708 = vpop.f32.mrb[0].mxu0
      %v4709 = vadd.f32 0.0, %v4708
      %v4710 = vpop.f32.mrb[0].mxu0
      %4711 = vmatprep.mubr.bf16.mxu0 0
      %4712 = vmatmul.mubr.bf16.gmra.mrb[0].mxu0 %v4578
      %v4713 = vpop.f32.mrb[0].mxu0
      %v4714 = vadd.f32 0.0, %v4713
      %v4715 = vpop.f32.mrb[0].mxu0
      %v4716 = vpop.f32.mrb[0].mxu0
      %v4717 = vadd.f32 0.0, %v4716
      %v4718 = vpop.f32.mrb[0].mxu0
      %4719 = vmatprep.mubr.bf16.mxu0 0
      %4720 = vmatmul.mubr.bf16.gmra.mrb[0].mxu0 %v4580
      %v4721 = vpop.f32.mrb[0].mxu0
      %v4722 = vadd.f32 0.0, %v4721
      %v4723 = vpop.f32.mrb[0].mxu0
      %v4724 = vpop.f32.mrb[0].mxu0
      %v4725 = vadd.f32 0.0, %v4724
      %v4726 = vpop.f32.mrb[0].mxu0
      %4727 = vmatprep.mubr.bf16.mxu0 0
      %4728 = vmatmul.mubr.bf16.gmra.mrb[0].mxu0 %v4582
      %v4729 = vpop.f32.mrb[0].mxu0
      %v4730 = vadd.f32 0.0, %v4729
      %v4731 = vpop.f32.mrb[0].mxu0
      %v4732 = vpop.f32.mrb[0].mxu0
      %v4733 = vadd.f32 0.0, %v4732
      %v4734 = vpop.f32.mrb[0].mxu0
      %4735 = vmatprep.mubr.bf16.mxu0 0
      %4736 = vmatmul.mubr.bf16.gmra.mrb[0].mxu0 %v4584
      %v4737 = vpop.f32.mrb[0].mxu0
      %v4738 = vadd.f32 0.0, %v4737
      %v4739 = vpop.f32.mrb[0].mxu0
      %v4740 = vpop.f32.mrb[0].mxu0
      %v4741 = vadd.f32 0.0, %v4740
      %v4742 = vpop.f32.mrb[0].mxu0
      %4743 = vmatprep.mubr.bf16.mxu0 0
      %4744 = vmatmul.mubr.bf16.gmra.mrb[0].mxu0 %v4586
      %v4745 = vpop.f32.mrb[0].mxu0
      %v4746 = vadd.f32 0.0, %v4745
      %v4747 = vpop.f32.mrb[0].mxu0
      %v4748 = vpop.f32.mrb[0].mxu0
      %v4749 = vadd.f32 0.0, %v4748
      %v4750 = vpop.f32.mrb[0].mxu0
      %4751 = vmatprep.mubr.bf16.mxu0 0
      %4752 = vmatmul.mubr.bf16.gmra.mrb[0].mxu0 %v4588
      %v4753 = vpop.f32.mrb[0].mxu0
      %v4754 = vadd.f32 0.0, %v4753
      %v4755 = vpop.f32.mrb[0].mxu0
      %v4756 = vpop.f32.mrb[0].mxu0
      %v4757 = vadd.f32 0.0, %v4756
      %v4758 = vpop.f32.mrb[0].mxu0
      %4759 = vdwg.mxu0
      %v4760 = vadd.f32 %v4530, %v4682
      %v4761 = vadd.f32 %v4531, %v4685
      %v4762 = vadd.f32 %v4532, %v4690
      %v4763 = vadd.f32 %v4533, %v4693
      %v4764 = vadd.f32 %v4534, %v4698
      %v4765 = vadd.f32 %v4535, %v4701
      %v4766 = vadd.f32 %v4536, %v4706
      %v4767 = vadd.f32 %v4537, %v4709
      %v4768 = vadd.f32 %v4538, %v4714
      %v4769 = vadd.f32 %v4539, %v4717
      %v4770 = vadd.f32 %v4540, %v4722
      %v4771 = vadd.f32 %v4541, %v4725
      %v4772 = vadd.f32 %v4542, %v4730
      %v4773 = vadd.f32 %v4543, %v4733
      %v4774 = vadd.f32 %v4544, %v4738
      %v4775 = vadd.f32 %v4545, %v4741
      %v4776 = vadd.f32 %v4546, %v4746
      %v4777 = vadd.f32 %v4547, %v4749
      %v4778 = vadd.f32 %v4548, %v4754
      %v4779 = vadd.f32 %v4549, %v4757
      %s4780 = scalar_lea.vmem %s3, 448
      %v4781 = vld [vmem:[%s4780] sm:$0xf]
      %v4782 = vld [vmem:[%s4780 + $0x4] sm:$0xf]
      %v4783 = vld [vmem:[%s4780 + $0x8] sm:$0xf]
      %v4784 = vld [vmem:[%s4780 + $0xc] sm:$0xf]
      %v4785 = vld [vmem:[%s4780 + $0x10] sm:$0xf]
      %v4786 = vld [vmem:[%s4780 + $0x14] sm:$0xf]
      %v4787 = vld [vmem:[%s4780 + $0x18] sm:$0xf]
      %v4788 = vld [vmem:[%s4780 + $0x1c] sm:$0xf]
      %v4789 = vld [vmem:[%s4780 + $0x20] sm:$0xf]
      %v4790 = vld [vmem:[%s4780 + $0x24] sm:$0xf]
      %v4791 = vld [vmem:[%s4780 + $0x28] sm:$0xf]
      %v4792 = vld [vmem:[%s4780 + $0x2c] sm:$0xf]
      %v4793 = vld [vmem:[%s4780 + $0x30] sm:$0xf]
      %v4794 = vld [vmem:[%s4780 + $0x34] sm:$0xf]
      %v4795 = vld [vmem:[%s4780 + $0x38] sm:$0xf]
      %v4796 = vld [vmem:[%s4780 + $0x3c] sm:$0xf]
      %v4797 = vrot.slane %v3207, 4
      %v4798 = vrot.slane %v3203, 5
      %v4799 = vor.u32 %v4797, %v4798
      %v4800 = vrot.slane %v3215, 4
      %v4801 = vrot.slane %v3211, 5
      %v4802 = vor.u32 %v4800, %v4801
      %v4803 = vsel %vm2365, %v4799, %v4802
      %v4804 = vrot.slane %v3223, 4
      %v4805 = vrot.slane %v3219, 5
      %v4806 = vor.u32 %v4804, %v4805
      %v4807 = vsel %vm2365, %v4802, %v4806
      %v4808 = vrot.slane %v3231, 4
      %v4809 = vrot.slane %v3227, 5
      %v4810 = vor.u32 %v4808, %v4809
      %v4811 = vsel %vm2365, %v4806, %v4810
      %v4812 = vrot.slane %v3239, 4
      %v4813 = vrot.slane %v3235, 5
      %v4814 = vor.u32 %v4812, %v4813
      %v4815 = vsel %vm2365, %v4810, %v4814
      %v4816 = vrot.slane %v3247, 4
      %v4817 = vrot.slane %v3243, 5
      %v4818 = vor.u32 %v4816, %v4817
      %v4819 = vsel %vm2365, %v4814, %v4818
      %v4820 = vrot.slane %v3255, 4
      %v4821 = vrot.slane %v3251, 5
      %v4822 = vor.u32 %v4820, %v4821
      %v4823 = vsel %vm2365, %v4818, %v4822
      %v4824 = vrot.slane %v3263, 4
      %v4825 = vrot.slane %v3259, 5
      %v4826 = vor.u32 %v4824, %v4825
      %v4827 = vsel %vm2365, %v4822, %v4826
      %v4828 = vrot.slane %v4116, 4
      %v4829 = vrot.slane %v4119, 5
      %v4830 = vor.u32 %v4828, %v4829
      %v4831 = vsel %vm2365, %v4826, %v4830
      %v4832 = vshrl.u32 %v3152, 16
      %v4834 = vrot.slane %v4832, 4
      %v4835 = vrot.slane %v4125, 5
      %v4836 = vor.u32 %v4834, %v4835
      %v4837 = vsel %vm2365, %v4830, %v4836
      %v4839 = vshrl.u32 %v3153, 16
      %v4841 = vrot.slane %v4839, 4
      %v4842 = vshll.u32 %v3153, 16
      %v4844 = vrot.slane %v4842, 5
      %v4845 = vor.u32 %v4841, %v4844
      %v4846 = vsel %vm2365, %v4836, %v4845
      %v4873 = vunpack.c.l.b16 %v4781
      %v4874 = vunpack.c.l.b16 %v4782
      %v4875 = vunpack.c.l.b16 %v4783
      %v4876 = vunpack.c.l.b16 %v4784
      %v4877 = vunpack.c.l.b16 %v4785
      %v4878 = vunpack.c.l.b16 %v4786
      %v4879 = vunpack.c.l.b16 %v4787
      %v4880 = vunpack.c.l.b16 %v4788
      %v4881 = vunpack.c.l.b16 %v4789
      %v4882 = vunpack.c.l.b16 %v4790
      %v4883 = vunpack.c.l.b16 %v4791
      %v4884 = vunpack.c.l.b16 %v4792
      %v4885 = vunpack.c.l.b16 %v4793
      %v4886 = vunpack.c.l.b16 %v4794
      %v4887 = vunpack.c.l.b16 %v4795
      %v4888 = vunpack.c.l.b16 %v4796
      %v4889 = vpack.c.b16 %v4874, %v4873
      %v4890 = vpack.c.b16 %v4876, %v4875
      %v4891 = vpack.c.b16 %v4878, %v4877
      %v4892 = vpack.c.b16 %v4880, %v4879
      %v4893 = vpack.c.b16 %v4882, %v4881
      %v4894 = vpack.c.b16 %v4884, %v4883
      %v4895 = vpack.c.b16 %v4886, %v4885
      %v4896 = vpack.c.b16 %v4888, %v4887
      %4905 = vmatprep.subr.bf16.mxu0 0
      %4906 = vmatpush1.bf16.msra.mxu0 %v4889
      %4907 = vmatprep.subr.bf16.mxu0 0
      %4908 = vmatpush1.bf16.msra.mxu0 %v4890
      %4909 = vmatprep.subr.bf16.mxu0 0
      %4910 = vmatpush1.bf16.msra.mxu0 %v4891
      %4911 = vmatprep.subr.bf16.mxu0 0
      %4912 = vmatpush1.bf16.msra.mxu0 %v4892
      %4913 = vmatprep.subr.bf16.mxu0 0
      %4914 = vmatpush1.bf16.msra.mxu0 %v4893
      %4915 = vmatprep.subr.bf16.mxu0 0
      %4916 = vmatpush1.bf16.msra.mxu0 %v4894
      %4917 = vmatprep.subr.bf16.mxu0 0
      %4918 = vmatpush1.bf16.msra.mxu0 %v4895
      %4919 = vmatprep.subr.bf16.mxu0 0
      %4920 = vmatpush1.bf16.msra.mxu0 %v4896
      %4921 = vmatprep.subr.bf16.mxu0 0
      %4922 = vmatpush1.bf16.msra.mxu0 0
      %4923 = vmatprep.subr.bf16.mxu0 0
      %4924 = vmatpush1.bf16.msra.mxu0 0
      %4925 = vmatprep.subr.bf16.mxu0 0
      %4926 = vmatpush1.bf16.msra.mxu0 0
      %4927 = vmatprep.subr.bf16.mxu0 0
      %4928 = vmatpush1.bf16.msra.mxu0 0
      %4929 = vmatprep.subr.bf16.mxu0 0
      %4930 = vmatpush1.bf16.msra.mxu0 0
      %4931 = vmatprep.subr.bf16.mxu0 0
      %4932 = vmatpush1.bf16.msra.mxu0 0
      %4933 = vmatprep.subr.bf16.mxu0 0
      %4934 = vmatpush1.bf16.msra.mxu0 0
      %4935 = vmatprep.subr.bf16.mxu0 0
      %4936 = vmatpush1.bf16.msra.mxu0 0
      %4937 = vmatprep.mubr.bf16.mxu0 0
      %4938 = vmatmul.mubr.bf16.gmra.mrb[0].mxu0 %v4803
      %v4939 = vpop.f32.mrb[0].mxu0
      %v4940 = vadd.f32 0.0, %v4939
      %v4941 = vpop.f32.mrb[0].mxu0
      %v4942 = vpop.f32.mrb[0].mxu0
      %v4943 = vadd.f32 0.0, %v4942
      %v4944 = vpop.f32.mrb[0].mxu0
      %4945 = vmatprep.mubr.bf16.mxu0 0
      %4946 = vmatmul.mubr.bf16.gmra.mrb[0].mxu0 %v4807
      %v4947 = vpop.f32.mrb[0].mxu0
      %v4948 = vadd.f32 0.0, %v4947
      %v4949 = vpop.f32.mrb[0].mxu0
      %v4950 = vpop.f32.mrb[0].mxu0
      %v4951 = vadd.f32 0.0, %v4950
      %v4952 = vpop.f32.mrb[0].mxu0
      %4953 = vmatprep.mubr.bf16.mxu0 0
      %4954 = vmatmul.mubr.bf16.gmra.mrb[0].mxu0 %v4811
      %v4955 = vpop.f32.mrb[0].mxu0
      %v4956 = vadd.f32 0.0, %v4955
      %v4957 = vpop.f32.mrb[0].mxu0
      %v4958 = vpop.f32.mrb[0].mxu0
      %v4959 = vadd.f32 0.0, %v4958
      %v4960 = vpop.f32.mrb[0].mxu0
      %4961 = vmatprep.mubr.bf16.mxu0 0
      %4962 = vmatmul.mubr.bf16.gmra.mrb[0].mxu0 %v4815
      %v4963 = vpop.f32.mrb[0].mxu0
      %v4964 = vadd.f32 0.0, %v4963
      %v4965 = vpop.f32.mrb[0].mxu0
      %v4966 = vpop.f32.mrb[0].mxu0
      %v4967 = vadd.f32 0.0, %v4966
      %v4968 = vpop.f32.mrb[0].mxu0
      %4969 = vmatprep.mubr.bf16.mxu0 0
      %4970 = vmatmul.mubr.bf16.gmra.mrb[0].mxu0 %v4819
      %v4971 = vpop.f32.mrb[0].mxu0
      %v4972 = vadd.f32 0.0, %v4971
      %v4973 = vpop.f32.mrb[0].mxu0
      %v4974 = vpop.f32.mrb[0].mxu0
      %v4975 = vadd.f32 0.0, %v4974
      %v4976 = vpop.f32.mrb[0].mxu0
      %4977 = vmatprep.mubr.bf16.mxu0 0
      %4978 = vmatmul.mubr.bf16.gmra.mrb[0].mxu0 %v4823
      %v4979 = vpop.f32.mrb[0].mxu0
      %v4980 = vadd.f32 0.0, %v4979
      %v4981 = vpop.f32.mrb[0].mxu0
      %v4982 = vpop.f32.mrb[0].mxu0
      %v4983 = vadd.f32 0.0, %v4982
      %v4984 = vpop.f32.mrb[0].mxu0
      %4985 = vmatprep.mubr.bf16.mxu0 0
      %4986 = vmatmul.mubr.bf16.gmra.mrb[0].mxu0 %v4827
      %v4987 = vpop.f32.mrb[0].mxu0
      %v4988 = vadd.f32 0.0, %v4987
      %v4989 = vpop.f32.mrb[0].mxu0
      %v4990 = vpop.f32.mrb[0].mxu0
      %v4991 = vadd.f32 0.0, %v4990
      %v4992 = vpop.f32.mrb[0].mxu0
      %4993 = vmatprep.mubr.bf16.mxu0 0
      %4994 = vmatmul.mubr.bf16.gmra.mrb[0].mxu0 %v4831
      %v4995 = vpop.f32.mrb[0].mxu0
      %v4996 = vadd.f32 0.0, %v4995
      %v4997 = vpop.f32.mrb[0].mxu0
      %v4998 = vpop.f32.mrb[0].mxu0
      %v4999 = vadd.f32 0.0, %v4998
      %v5000 = vpop.f32.mrb[0].mxu0
      %5001 = vmatprep.mubr.bf16.mxu0 0
      %5002 = vmatmul.mubr.bf16.gmra.mrb[0].mxu0 %v4837
      %v5003 = vpop.f32.mrb[0].mxu0
      %v5004 = vadd.f32 0.0, %v5003
      %v5005 = vpop.f32.mrb[0].mxu0
      %v5006 = vpop.f32.mrb[0].mxu0
      %v5007 = vadd.f32 0.0, %v5006
      %v5008 = vpop.f32.mrb[0].mxu0
      %5009 = vmatprep.mubr.bf16.mxu0 0
      %5010 = vmatmul.mubr.bf16.gmra.mrb[0].mxu0 %v4846
      %v5011 = vpop.f32.mrb[0].mxu0
      %v5012 = vadd.f32 0.0, %v5011
      %v5013 = vpop.f32.mrb[0].mxu0
      %v5014 = vpop.f32.mrb[0].mxu0
      %v5015 = vadd.f32 0.0, %v5014
      %v5016 = vpop.f32.mrb[0].mxu0
      %5017 = vdwg.mxu0
      %v5018 = vadd.f32 %v4760, %v4940
      %v5019 = vadd.f32 %v4761, %v4943
      %v5020 = vadd.f32 %v4762, %v4948
      %v5021 = vadd.f32 %v4763, %v4951
      %v5022 = vadd.f32 %v4764, %v4956
      %v5023 = vadd.f32 %v4765, %v4959
      %v5024 = vadd.f32 %v4766, %v4964
      %v5025 = vadd.f32 %v4767, %v4967
      %v5026 = vadd.f32 %v4768, %v4972
      %v5027 = vadd.f32 %v4769, %v4975
      %v5028 = vadd.f32 %v4770, %v4980
      %v5029 = vadd.f32 %v4771, %v4983
      %v5030 = vadd.f32 %v4772, %v4988
      %v5031 = vadd.f32 %v4773, %v4991
      %v5032 = vadd.f32 %v4774, %v4996
      %v5033 = vadd.f32 %v4775, %v4999
      %v5034 = vadd.f32 %v4776, %v5004
      %v5035 = vadd.f32 %v4777, %v5007
      %v5036 = vadd.f32 %v4778, %v5012
      %v5037 = vadd.f32 %v4779, %v5015
      %s5038 = scalar_lea.vmem %s3, 512
      %v5039 = vld [vmem:[%s5038] sm:$0xf]
      %v5040 = vld [vmem:[%s5038 + $0x4] sm:$0xf]
      %v5041 = vld [vmem:[%s5038 + $0x8] sm:$0xf]
      %v5042 = vld [vmem:[%s5038 + $0xc] sm:$0xf]
      %v5043 = vld [vmem:[%s5038 + $0x10] sm:$0xf]
      %v5044 = vld [vmem:[%s5038 + $0x14] sm:$0xf]
      %v5045 = vld [vmem:[%s5038 + $0x18] sm:$0xf]
      %v5046 = vld [vmem:[%s5038 + $0x1c] sm:$0xf]
      %v5047 = vld [vmem:[%s5038 + $0x20] sm:$0xf]
      %v5048 = vld [vmem:[%s5038 + $0x24] sm:$0xf]
      %v5049 = vld [vmem:[%s5038 + $0x28] sm:$0xf]
      %v5050 = vld [vmem:[%s5038 + $0x2c] sm:$0xf]
      %v5051 = vld [vmem:[%s5038 + $0x30] sm:$0xf]
      %v5052 = vld [vmem:[%s5038 + $0x34] sm:$0xf]
      %v5053 = vld [vmem:[%s5038 + $0x38] sm:$0xf]
      %v5054 = vld [vmem:[%s5038 + $0x3c] sm:$0xf]
      %v5055 = vrot.slane %v3143, 5
      %v5056 = vrot.slane %v3144, 5
      %v5057 = vsel %vm2661, %v5055, %v5056
      %v5058 = vrot.slane %v3145, 5
      %v5059 = vsel %vm2661, %v5056, %v5058
      %v5060 = vrot.slane %v3146, 5
      %v5061 = vsel %vm2661, %v5058, %v5060
      %v5062 = vrot.slane %v3147, 5
      %v5063 = vsel %vm2661, %v5060, %v5062
      %v5064 = vrot.slane %v3148, 5
      %v5065 = vsel %vm2661, %v5062, %v5064
      %v5066 = vrot.slane %v3149, 5
      %v5067 = vsel %vm2661, %v5064, %v5066
      %v5068 = vrot.slane %v3150, 5
      %v5069 = vsel %vm2661, %v5066, %v5068
      %v5070 = vrot.slane %v3151, 5
      %v5071 = vsel %vm2661, %v5068, %v5070
      %v5072 = vrot.slane %v3152, 5
      %v5073 = vsel %vm2661, %v5070, %v5072
      %v5074 = vrot.slane %v3153, 5
      %v5075 = vsel %vm2661, %v5072, %v5074
      %v5102 = vunpack.c.l.b16 %v5039
      %v5103 = vunpack.c.l.b16 %v5040
      %v5104 = vunpack.c.l.b16 %v5041
      %v5105 = vunpack.c.l.b16 %v5042
      %v5106 = vunpack.c.l.b16 %v5043
      %v5107 = vunpack.c.l.b16 %v5044
      %v5108 = vunpack.c.l.b16 %v5045
      %v5109 = vunpack.c.l.b16 %v5046
      %v5110 = vunpack.c.l.b16 %v5047
      %v5111 = vunpack.c.l.b16 %v5048
      %v5112 = vunpack.c.l.b16 %v5049
      %v5113 = vunpack.c.l.b16 %v5050
      %v5114 = vunpack.c.l.b16 %v5051
      %v5115 = vunpack.c.l.b16 %v5052
      %v5116 = vunpack.c.l.b16 %v5053
      %v5117 = vunpack.c.l.b16 %v5054
      %v5118 = vpack.c.b16 %v5103, %v5102
      %v5119 = vpack.c.b16 %v5105, %v5104
      %v5120 = vpack.c.b16 %v5107, %v5106
      %v5121 = vpack.c.b16 %v5109, %v5108
      %v5122 = vpack.c.b16 %v5111, %v5110
      %v5123 = vpack.c.b16 %v5113, %v5112
      %v5124 = vpack.c.b16 %v5115, %v5114
      %v5125 = vpack.c.b16 %v5117, %v5116
      %5134 = vmatprep.subr.bf16.mxu0 0
      %5135 = vmatpush1.bf16.msra.mxu0 %v5118
      %5136 = vmatprep.subr.bf16.mxu0 0
      %5137 = vmatpush1.bf16.msra.mxu0 %v5119
      %5138 = vmatprep.subr.bf16.mxu0 0
      %5139 = vmatpush1.bf16.msra.mxu0 %v5120
      %5140 = vmatprep.subr.bf16.mxu0 0
      %5141 = vmatpush1.bf16.msra.mxu0 %v5121
      %5142 = vmatprep.subr.bf16.mxu0 0
      %5143 = vmatpush1.bf16.msra.mxu0 %v5122
      %5144 = vmatprep.subr.bf16.mxu0 0
      %5145 = vmatpush1.bf16.msra.mxu0 %v5123
      %5146 = vmatprep.subr.bf16.mxu0 0
      %5147 = vmatpush1.bf16.msra.mxu0 %v5124
      %5148 = vmatprep.subr.bf16.mxu0 0
      %5149 = vmatpush1.bf16.msra.mxu0 %v5125
      %5150 = vmatprep.subr.bf16.mxu0 0
      %5151 = vmatpush1.bf16.msra.mxu0 0
      %5152 = vmatprep.subr.bf16.mxu0 0
      %5153 = vmatpush1.bf16.msra.mxu0 0
      %5154 = vmatprep.subr.bf16.mxu0 0
      %5155 = vmatpush1.bf16.msra.mxu0 0
      %5156 = vmatprep.subr.bf16.mxu0 0
      %5157 = vmatpush1.bf16.msra.mxu0 0
      %5158 = vmatprep.subr.bf16.mxu0 0
      %5159 = vmatpush1.bf16.msra.mxu0 0
      %5160 = vmatprep.subr.bf16.mxu0 0
      %5161 = vmatpush1.bf16.msra.mxu0 0
      %5162 = vmatprep.subr.bf16.mxu0 0
      %5163 = vmatpush1.bf16.msra.mxu0 0
      %5164 = vmatprep.subr.bf16.mxu0 0
      %5165 = vmatpush1.bf16.msra.mxu0 0
      %5166 = vmatprep.mubr.bf16.mxu0 0
      %5167 = vmatmul.mubr.bf16.gmra.mrb[0].mxu0 %v5057
      %v5168 = vpop.f32.mrb[0].mxu0
      %v5169 = vadd.f32 0.0, %v5168
      %v5170 = vpop.f32.mrb[0].mxu0
      %v5171 = vpop.f32.mrb[0].mxu0
      %v5172 = vadd.f32 0.0, %v5171
      %v5173 = vpop.f32.mrb[0].mxu0
      %5174 = vmatprep.mubr.bf16.mxu0 0
      %5175 = vmatmul.mubr.bf16.gmra.mrb[0].mxu0 %v5059
      %v5176 = vpop.f32.mrb[0].mxu0
      %v5177 = vadd.f32 0.0, %v5176
      %v5178 = vpop.f32.mrb[0].mxu0
      %v5179 = vpop.f32.mrb[0].mxu0
      %v5180 = vadd.f32 0.0, %v5179
      %v5181 = vpop.f32.mrb[0].mxu0
      %5182 = vmatprep.mubr.bf16.mxu0 0
      %5183 = vmatmul.mubr.bf16.gmra.mrb[0].mxu0 %v5061
      %v5184 = vpop.f32.mrb[0].mxu0
      %v5185 = vadd.f32 0.0, %v5184
      %v5186 = vpop.f32.mrb[0].mxu0
      %v5187 = vpop.f32.mrb[0].mxu0
      %v5188 = vadd.f32 0.0, %v5187
      %v5189 = vpop.f32.mrb[0].mxu0
      %5190 = vmatprep.mubr.bf16.mxu0 0
      %5191 = vmatmul.mubr.bf16.gmra.mrb[0].mxu0 %v5063
      %v5192 = vpop.f32.mrb[0].mxu0
      %v5193 = vadd.f32 0.0, %v5192
      %v5194 = vpop.f32.mrb[0].mxu0
      %v5195 = vpop.f32.mrb[0].mxu0
      %v5196 = vadd.f32 0.0, %v5195
      %v5197 = vpop.f32.mrb[0].mxu0
      %5198 = vmatprep.mubr.bf16.mxu0 0
      %5199 = vmatmul.mubr.bf16.gmra.mrb[0].mxu0 %v5065
      %v5200 = vpop.f32.mrb[0].mxu0
      %v5201 = vadd.f32 0.0, %v5200
      %v5202 = vpop.f32.mrb[0].mxu0
      %v5203 = vpop.f32.mrb[0].mxu0
      %v5204 = vadd.f32 0.0, %v5203
      %v5205 = vpop.f32.mrb[0].mxu0
      %5206 = vmatprep.mubr.bf16.mxu0 0
      %5207 = vmatmul.mubr.bf16.gmra.mrb[0].mxu0 %v5067
      %v5208 = vpop.f32.mrb[0].mxu0
      %v5209 = vadd.f32 0.0, %v5208
      %v5210 = vpop.f32.mrb[0].mxu0
      %v5211 = vpop.f32.mrb[0].mxu0
      %v5212 = vadd.f32 0.0, %v5211
      %v5213 = vpop.f32.mrb[0].mxu0
      %5214 = vmatprep.mubr.bf16.mxu0 0
      %5215 = vmatmul.mubr.bf16.gmra.mrb[0].mxu0 %v5069
      %v5216 = vpop.f32.mrb[0].mxu0
      %v5217 = vadd.f32 0.0, %v5216
      %v5218 = vpop.f32.mrb[0].mxu0
      %v5219 = vpop.f32.mrb[0].mxu0
      %v5220 = vadd.f32 0.0, %v5219
      %v5221 = vpop.f32.mrb[0].mxu0
      %5222 = vmatprep.mubr.bf16.mxu0 0
      %5223 = vmatmul.mubr.bf16.gmra.mrb[0].mxu0 %v5071
      %v5224 = vpop.f32.mrb[0].mxu0
      %v5225 = vadd.f32 0.0, %v5224
      %v5226 = vpop.f32.mrb[0].mxu0
      %v5227 = vpop.f32.mrb[0].mxu0
      %v5228 = vadd.f32 0.0, %v5227
      %v5229 = vpop.f32.mrb[0].mxu0
      %5230 = vmatprep.mubr.bf16.mxu0 0
      %5231 = vmatmul.mubr.bf16.gmra.mrb[0].mxu0 %v5073
      %v5232 = vpop.f32.mrb[0].mxu0
      %v5233 = vadd.f32 0.0, %v5232
      %v5234 = vpop.f32.mrb[0].mxu0
      %v5235 = vpop.f32.mrb[0].mxu0
      %v5236 = vadd.f32 0.0, %v5235
      %v5237 = vpop.f32.mrb[0].mxu0
      %5238 = vmatprep.mubr.bf16.mxu0 0
      %5239 = vmatmul.mubr.bf16.gmra.mrb[0].mxu0 %v5075
      %v5240 = vpop.f32.mrb[0].mxu0
      %v5241 = vadd.f32 0.0, %v5240
      %v5242 = vpop.f32.mrb[0].mxu0
      %v5243 = vpop.f32.mrb[0].mxu0
      %v5244 = vadd.f32 0.0, %v5243
      %v5245 = vpop.f32.mrb[0].mxu0
      %5246 = vdwg.mxu0
      %v5247 = vadd.f32 %v5018, %v5169
      %v5248 = vadd.f32 %v5019, %v5172
      %v5249 = vadd.f32 %v5020, %v5177
      %v5250 = vadd.f32 %v5021, %v5180
      %v5251 = vadd.f32 %v5022, %v5185
      %v5252 = vadd.f32 %v5023, %v5188
      %v5253 = vadd.f32 %v5024, %v5193
      %v5254 = vadd.f32 %v5025, %v5196
      %v5255 = vadd.f32 %v5026, %v5201
      %v5256 = vadd.f32 %v5027, %v5204
      %v5257 = vadd.f32 %v5028, %v5209
      %v5258 = vadd.f32 %v5029, %v5212
      %v5259 = vadd.f32 %v5030, %v5217
      %v5260 = vadd.f32 %v5031, %v5220
      %v5261 = vadd.f32 %v5032, %v5225
      %v5262 = vadd.f32 %v5033, %v5228
      %v5263 = vadd.f32 %v5034, %v5233
      %v5264 = vadd.f32 %v5035, %v5236
      %v5265 = vadd.f32 %v5036, %v5241
      %v5266 = vadd.f32 %v5037, %v5244
      %v5267 = vld [vmem:[%s4] sm:$0x1]
      %v5269 = vlaneseq
      %v5270 = vshrl.u32 %v5269, 7
      %v5271 = vsub.s32 0, %v5270
      %v5272 = vrot.slane %v5267, %v5271
      %v5274 = vadd.f32 %v5247, %v5272
      %v5275 = vadd.f32 %v5248, %v5272
      %v5276 = vadd.f32 %v5249, %v5272
      %v5277 = vadd.f32 %v5250, %v5272
      %v5278 = vadd.f32 %v5251, %v5272
      %v5279 = vadd.f32 %v5252, %v5272
      %v5280 = vadd.f32 %v5253, %v5272
      %v5281 = vadd.f32 %v5254, %v5272
      %v5282 = vadd.f32 %v5255, %v5272
      %v5283 = vadd.f32 %v5256, %v5272
      %v5284 = vadd.f32 %v5257, %v5272
      %v5285 = vadd.f32 %v5258, %v5272
      %v5286 = vadd.f32 %v5259, %v5272
      %v5287 = vadd.f32 %v5260, %v5272
      %v5288 = vadd.f32 %v5261, %v5272
      %v5289 = vadd.f32 %v5262, %v5272
      %v5290 = vadd.f32 %v5263, %v5272
      %v5291 = vadd.f32 %v5264, %v5272
      %v5292 = vadd.f32 %v5265, %v5272
      %v5293 = vadd.f32 %v5266, %v5272
      %v5294 = vmax.f32 %v5274, 0.0
      %v5295 = vmax.f32 %v5275, 0.0
      %v5296 = vmax.f32 %v5276, 0.0
      %v5297 = vmax.f32 %v5277, 0.0
      %v5298 = vmax.f32 %v5278, 0.0
      %v5299 = vmax.f32 %v5279, 0.0
      %v5300 = vmax.f32 %v5280, 0.0
      %v5301 = vmax.f32 %v5281, 0.0
      %v5302 = vmax.f32 %v5282, 0.0
      %v5303 = vmax.f32 %v5283, 0.0
      %v5304 = vmax.f32 %v5284, 0.0
      %v5305 = vmax.f32 %v5285, 0.0
      %v5306 = vmax.f32 %v5286, 0.0
      %v5307 = vmax.f32 %v5287, 0.0
      %v5308 = vmax.f32 %v5288, 0.0
      %v5309 = vmax.f32 %v5289, 0.0
      %v5310 = vmax.f32 %v5290, 0.0
      %v5311 = vmax.f32 %v5291, 0.0
      %v5312 = vmax.f32 %v5292, 0.0
      %v5313 = vmax.f32 %v5293, 0.0
      %5314 = vst [vmem:[%s249] sm:$0xff] %v5294
      %5315 = vst [vmem:[%s249 + $0x8] sm:$0xff] %v5295
      %s5316 = scalar_lea.vmem %s249, 16
      %5317 = vst [vmem:[%s5316 - $0x4] sm:$0xf0] %v5296
      %5318 = vst [vmem:[%s5316 + $0x4] sm:$0xff] %v5297
      %5319 = vst [vmem:[%s5316 + $0xc] sm:$0xf] %v5298
      %s5320 = scalar_lea.vmem %s249, 32
      %5321 = vst [vmem:[%s5320] sm:$0xff] %v5299
      %5322 = vst [vmem:[%s5320 + $0x8] sm:$0xff] %v5300
      %s5323 = scalar_lea.vmem %s249, 48
      %5324 = vst [vmem:[%s5323 - $0x4] sm:$0xf0] %v5301
      %5325 = vst [vmem:[%s5323 + $0x4] sm:$0xff] %v5302
      %5326 = vst [vmem:[%s5323 + $0xc] sm:$0xf] %v5303
      %s5327 = scalar_lea.vmem %s249, 64
      %5328 = vst [vmem:[%s5327] sm:$0xff] %v5304
      %5329 = vst [vmem:[%s5327 + $0x8] sm:$0xff] %v5305
      %s5330 = scalar_lea.vmem %s249, 80
      %5331 = vst [vmem:[%s5330 - $0x4] sm:$0xf0] %v5306
      %5332 = vst [vmem:[%s5330 + $0x4] sm:$0xff] %v5307
      %5333 = vst [vmem:[%s5330 + $0xc] sm:$0xf] %v5308
      %s5334 = scalar_lea.vmem %s249, 96
      %5335 = vst [vmem:[%s5334] sm:$0xff] %v5309
      %5336 = vst [vmem:[%s5334 + $0x8] sm:$0xff] %v5310
      %s5337 = scalar_lea.vmem %s249, 112
      %5338 = vst [vmem:[%s5337 - $0x4] sm:$0xf0] %v5311
      %5339 = vst [vmem:[%s5337 + $0x4] sm:$0xff] %v5312
      %5340 = vst [vmem:[%s5337 + $0xc] sm:$0xf] %v5313
      %s5341 = smul.u32 8, %s22
      %p5342 = scmp.lt.s32.totalorder %s21, 1
      %s5343 = scalar_select %p5342, %s21, 1
      %p5344 = scmp.lt.s32.totalorder %s5341, 15
      %s5345 = scalar_select %p5344, %s5341, 15
      %s5346 = smul.addr %s5345, 2
      %s5347 = smul.addr %s5343, 32
      %s5348 = sadd.s32 %s5346, %s5347
      %s5349 = smul.addr %s5348, 8
      %s5350 = scalar_lea.vmem %s6, %s5349
      // Predicated region
      $region117: #{double_conv.1} parent=39 // pred_check
        %p5351 = pneg %p159
      $region118: #{double_conv.1} parent=39 // pred_check_branch
        %5353 = sbr.rel (%p5351) target = $region120
      $region119: #{double_conv.1} parent=39 // pred_region
        %s5354 = smul.u32 8, %s22
      $region120: #{double_conv.1} parent=39 // pred_fallthru
        _
    $region40: #{double_conv.1} parent=5 // pred_fallthru
      _
    %p5355 = scmp.le.s32.totalorder 2, %s12
    // Predicated region
    $region121: #{double_conv.1} parent=5 // pred_check
      %p5356 = pneg %p5355
    $region122: #{double_conv.1} parent=5 // pred_check_branch
      %5358 = sbr.rel (%p5356) target = $region124
    $region123: #{double_conv.1} parent=5 // pred_region
      %s5359 = ssub.s32 %s12, 2
      // Predicated region
      $region125: #{double_conv.1} parent=123 // pred_check
        %p5360 = pneg %p165
      $region126: #{double_conv.1} parent=123 // pred_check_branch
        %5362 = sbr.rel (%p5360) target = $region128
      $region127: #{double_conv.1} parent=123 // pred_region
        %s5363 = smul.u32 8, %s24
        %p5364 = scmp.lt.s32.totalorder %s23, 1
        %s5365 = scalar_select %p5364, %s23, 1
        %p5366 = scmp.lt.s32.totalorder %s5363, 15
        %s5367 = scalar_select %p5366, %s5363, 15
        %s5368 = smul.addr %s5367, 2
        %s5369 = smul.addr %s5365, 32
        %s5370 = sadd.s32 %s5368, %s5369
        %s5371 = smul.addr %s5370, 8
        %s5372 = scalar_lea.vmem %s6, %s5371
      $region128: #{double_conv.1} parent=123 // pred_fallthru
        _
    $region124: #{double_conv.1} parent=5 // pred_fallthru
      _
  $region6: #{double_conv.1} parent=0 // loop_footer
    %s16 = sadd.s32 1, %s12
  $region7: #{double_conv.1} parent=0 // loop_footer_branch
    %11 = sbr.rel target = $region3
  $region8: #{double_conv.1} parent=0 // loop_exit
    _
  %5373 = vsyncmov [#allocation3]
  %s5374 = vpop.sfrf %5373
  %p5375 = scmp.eq.s32.totalorder %s5374, 0
  %p5376 = pneg %p5375
  %5378 = shalt.err (%p5376)
  %s5379 = scalar_lea.sflag [#allocation3], 1
  %5380 = vsyncmov %s5379
  %s5381 = vpop.sfrf %5380
  %p5382 = scmp.eq.s32.totalorder %s5381, 0
  %p5383 = pneg %p5382
  %5385 = shalt.err (%p5383)

</llo_original>
